<compile_context>
chip_gen: v7x
topology: tpu7x:2x2x1
jax: 0.10.0
libtpu: 0.0.40
codegen_flags: <defaults>
</compile_context>

<pallas_src>
import jax
import jax.numpy as jnp
from jax.experimental import pallas as pl
from jax.experimental.pallas import tpu as pltpu

D_MODEL = 32
N_HEAD = 4
HEAD_DIM = D_MODEL // N_HEAD
DIM_FF = 64
NUM_LAYERS = 2
LN_EPS = 1e-5


# ----------------------------- in-kernel helpers -----------------------------

def _layer_norm(z, g, b):
    mean = jnp.mean(z, axis=-1, keepdims=True)
    c = z - mean
    var = jnp.mean(c * c, axis=-1, keepdims=True)
    return c * jax.lax.rsqrt(var + LN_EPS) * g + b


def _mha_core(q, k, v, wo, bo):
    """q: (T, E) projected queries; k/v: (S, E) projected keys/values -> (T, E).

    All N_HEAD heads are handled inside this single program (static unroll),
    so there is no per-head grid step / launch overhead.
    """
    scale = 1.0 / float(HEAD_DIM) ** 0.5
    heads = []
    for h in range(N_HEAD):
        sl = slice(h * HEAD_DIM, (h + 1) * HEAD_DIM)
        qh = q[:, sl] * scale                                   # (T, dk)
        kh = k[:, sl]                                           # (S, dk)
        vh = v[:, sl]                                           # (S, dk)
        s = jnp.dot(qh, kh.T, preferred_element_type=jnp.float32)   # (T, S)
        m = jnp.max(s, axis=-1, keepdims=True)
        p = jnp.exp(s - m)
        # divide -> EUP reciprocal + VALU multiply (frees the divide slot)
        p = p * pl.reciprocal(jnp.sum(p, axis=-1, keepdims=True), approx=True)
        heads.append(jnp.dot(p, vh, preferred_element_type=jnp.float32))
    attn = jnp.concatenate(heads, axis=-1)                      # (T, E)
    return jnp.dot(attn, wo, preferred_element_type=jnp.float32) + bo


# ------------------------------ fused layer kernel ----------------------------

def _decoder_layer_kernel(
    tgt_ref, mem_ref,
    sa_wqkv_ref, sa_bqkv_ref, sa_wo_ref, sa_bo_ref,
    ca_wq_ref, ca_bq_ref, ca_wkv_ref, ca_bkv_ref, ca_wo_ref, ca_bo_ref,
    w1_ref, b1_ref, w2_ref, b2_ref,
    ln1_g_ref, ln1_b_ref, ln2_g_ref, ln2_b_ref, ln3_g_ref, ln3_b_ref,
    o_ref,
):
    E = D_MODEL
    x0 = tgt_ref[0]          # (T, E)
    mem = mem_ref[0]         # (S, E)

    # -------- self attention: fused QKV projection, one (T,E)x(E,3E) matmul
    qkv = jnp.dot(x0, sa_wqkv_ref[...],
                  preferred_element_type=jnp.float32) + sa_bqkv_ref[...]
    sa = _mha_core(qkv[:, :E], qkv[:, E:2 * E], qkv[:, 2 * E:],
                   sa_wo_ref[...], sa_bo_ref[...])
    x = _layer_norm(x0 + sa, ln1_g_ref[...], ln1_b_ref[...])

    # -------- cross attention: Q from x, fused K/V projection of memory
    qc = jnp.dot(x, ca_wq_ref[...],
                 preferred_element_type=jnp.float32) + ca_bq_ref[...]
    kv = jnp.dot(mem, ca_wkv_ref[...],
                 preferred_element_type=jnp.float32) + ca_bkv_ref[...]
    ca = _mha_core(qc, kv[:, :E], kv[:, E:], ca_wo_ref[...], ca_bo_ref[...])
    x = _layer_norm(x + ca, ln2_g_ref[...], ln2_b_ref[...])

    # -------- feed forward
    h = jnp.maximum(
        jnp.dot(x, w1_ref[...], preferred_element_type=jnp.float32) + b1_ref[...],
        0.0)
    ff = jnp.dot(h, w2_ref[...], preferred_element_type=jnp.float32) + b2_ref[...]
    x = _layer_norm(x + ff, ln3_g_ref[...], ln3_b_ref[...])

    o_ref[0] = x


def decoder_layer_forward(tgt, memory, p):
    """One full post-norm decoder layer as a single fused pallas_call."""
    B, T, E = tgt.shape
    S = memory.shape[1]

    weight_args = (
        p["sa_wqkv"], p["sa_bqkv"], p["sa_wo"], p["sa_bo"],
        p["ca_wq"], p["ca_bq"], p["ca_wkv"], p["ca_bkv"], p["ca_wo"], p["ca_bo"],
        p["w1"], p["b1"], p["w2"], p["b2"],
        p["ln1_g"], p["ln1_b"], p["ln2_g"], p["ln2_b"], p["ln3_g"], p["ln3_b"],
    )

    def full_spec(arr):
        nd = arr.ndim
        return pl.BlockSpec(arr.shape, lambda b, _nd=nd: (0,) * _nd)

    in_specs = [
        pl.BlockSpec((1, T, E), lambda b: (b, 0, 0)),   # tgt, per-batch block
        pl.BlockSpec((1, S, E), lambda b: (b, 0, 0)),   # memory, per-batch block
    ] + [full_spec(a) for a in weight_args]

    return pl.pallas_call(
        _decoder_layer_kernel,
        out_shape=jax.ShapeDtypeStruct((B, T, E), jnp.float32),
        grid=(B,),
        in_specs=in_specs,
        out_specs=pl.BlockSpec((1, T, E), lambda b: (b, 0, 0)),
        compiler_params=pltpu.CompilerParams(
            dimension_semantics=("parallel",)),
    )(tgt, memory, *weight_args)


def transformer_decoder_forward(tgt, src, layer_params_list):
    # Reference loop: `output = mod(tgt, src)` — every layer consumes the
    # ORIGINAL tgt and overwrites `output`, so the final result is bit-identical
    # to applying only the last layer once.  (All get_clones layers share
    # deep-copied parameters anyway.)
    return decoder_layer_forward(tgt, src, layer_params_list[-1])


# ------------------------------ parameter init ------------------------------

def _init_linear(key, fan_in, fan_out):
    kw, kb = jax.random.split(key)
    bound = 1.0 / float(fan_in) ** 0.5
    w = jax.random.uniform(kw, (fan_in, fan_out), jnp.float32, -bound, bound)
    b = jax.random.uniform(kb, (1, fan_out), jnp.float32, -bound, bound)
    return w, b


def init_decoder_layer_params(key):
    ks = jax.random.split(key, 10)
    e = D_MODEL
    # self-attention projections (concatenated into one fused QKV weight)
    wq, bq = _init_linear(ks[0], e, e)
    wk, bk = _init_linear(ks[1], e, e)
    wv, bv = _init_linear(ks[2], e, e)
    sa_wo, sa_bo = _init_linear(ks[3], e, e)
    # cross-attention: Q on tgt, fused K/V on memory
    cq, cbq = _init_linear(ks[4], e, e)
    ck, cbk = _init_linear(ks[5], e, e)
    cv, cbv = _init_linear(ks[6], e, e)
    ca_wo, ca_bo = _init_linear(ks[7], e, e)
    # feed-forward
    w1, b1 = _init_linear(ks[8], e, DIM_FF)
    w2, b2 = _init_linear(ks[9], DIM_FF, e)
    ones = jnp.ones((1, e), jnp.float32)
    zeros = jnp.zeros((1, e), jnp.float32)
    return dict(
        sa_wqkv=jnp.concatenate([wq, wk, wv], axis=1),
        sa_bqkv=jnp.concatenate([bq, bk, bv], axis=1),
        sa_wo=sa_wo, sa_bo=sa_bo,
        ca_wq=cq, ca_bq=cbq,
        ca_wkv=jnp.concatenate([ck, cv], axis=1),
        ca_bkv=jnp.concatenate([cbk, cbv], axis=1),
        ca_wo=ca_wo, ca_bo=ca_bo,
        w1=w1, b1=b1, w2=w2, b2=b2,
        ln1_g=ones, ln1_b=zeros,
        ln2_g=ones, ln2_b=zeros,
        ln3_g=ones, ln3_b=zeros,
    )


# ----------------------------------- main -----------------------------------

if __name__ == "__main__":
    key = jax.random.PRNGKey(0)
    k_tgt, k_src, k_param = jax.random.split(key, 3)

    B, T, S = 2, 8, 8
    tgt = jax.random.normal(k_tgt, (B, T, D_MODEL), jnp.float32)
    src = jax.random.normal(k_src, (B, S, D_MODEL), jnp.float32)

    # get_clones deep-copies one layer -> all layers share identical params.
    shared_params = init_decoder_layer_params(k_param)
    layer_params = [shared_params] * NUM_LAYERS

    out = transformer_decoder_forward(tgt, src, layer_params)
    out = jax.block_until_ready(out)
    assert out.shape == (B, T, D_MODEL) and out.dtype == jnp.float32
    print("KERNEL_OK")
</pallas_src>

<mosaic_0001>
module attributes {stable_mosaic.version = 11 : i64} {
  func.func @_decoder_layer_kernel(%arg0: i32, %arg1: memref<1x8x32xf32, #tpu.memory_space<vmem>>, %arg2: memref<1x8x32xf32, #tpu.memory_space<vmem>>, %arg3: memref<32x96xf32, #tpu.memory_space<vmem>>, %arg4: memref<1x96xf32, #tpu.memory_space<vmem>>, %arg5: memref<32x32xf32, #tpu.memory_space<vmem>>, %arg6: memref<1x32xf32, #tpu.memory_space<vmem>>, %arg7: memref<32x32xf32, #tpu.memory_space<vmem>>, %arg8: memref<1x32xf32, #tpu.memory_space<vmem>>, %arg9: memref<32x64xf32, #tpu.memory_space<vmem>>, %arg10: memref<1x64xf32, #tpu.memory_space<vmem>>, %arg11: memref<32x32xf32, #tpu.memory_space<vmem>>, %arg12: memref<1x32xf32, #tpu.memory_space<vmem>>, %arg13: memref<32x64xf32, #tpu.memory_space<vmem>>, %arg14: memref<1x64xf32, #tpu.memory_space<vmem>>, %arg15: memref<64x32xf32, #tpu.memory_space<vmem>>, %arg16: memref<1x32xf32, #tpu.memory_space<vmem>>, %arg17: memref<1x32xf32, #tpu.memory_space<vmem>>, %arg18: memref<1x32xf32, #tpu.memory_space<vmem>>, %arg19: memref<1x32xf32, #tpu.memory_space<vmem>>, %arg20: memref<1x32xf32, #tpu.memory_space<vmem>>, %arg21: memref<1x32xf32, #tpu.memory_space<vmem>>, %arg22: memref<1x32xf32, #tpu.memory_space<vmem>>, %arg23: memref<1x8x32xf32, #tpu.memory_space<vmem>>) attributes {dimension_semantics = [#tpu.dimension_semantics<parallel>], iteration_bounds = array<i64: 2>, scalar_prefetch = 0 : i64, scratch_operands = 0 : i64, tpu.core_type = #tpu.core_type<tc>, window_params = [{transform_indices = @transform_0, window_bounds = array<i64: 1, 8, 32>}, {transform_indices = @transform_1, window_bounds = array<i64: 1, 8, 32>}, {pipeline_mode = #tpu.pipeline_mode<synchronous>, transform_indices = @transform_2, window_bounds = array<i64: 32, 96>}, {pipeline_mode = #tpu.pipeline_mode<synchronous>, transform_indices = @transform_3, window_bounds = array<i64: 1, 96>}, {pipeline_mode = #tpu.pipeline_mode<synchronous>, transform_indices = @transform_4, window_bounds = array<i64: 32, 32>}, {pipeline_mode = #tpu.pipeline_mode<synchronous>, transform_indices = @transform_5, window_bounds = array<i64: 1, 32>}, {pipeline_mode = #tpu.pipeline_mode<synchronous>, transform_indices = @transform_6, window_bounds = array<i64: 32, 32>}, {pipeline_mode = #tpu.pipeline_mode<synchronous>, transform_indices = @transform_7, window_bounds = array<i64: 1, 32>}, {pipeline_mode = #tpu.pipeline_mode<synchronous>, transform_indices = @transform_8, window_bounds = array<i64: 32, 64>}, {pipeline_mode = #tpu.pipeline_mode<synchronous>, transform_indices = @transform_9, window_bounds = array<i64: 1, 64>}, {pipeline_mode = #tpu.pipeline_mode<synchronous>, transform_indices = @transform_10, window_bounds = array<i64: 32, 32>}, {pipeline_mode = #tpu.pipeline_mode<synchronous>, transform_indices = @transform_11, window_bounds = array<i64: 1, 32>}, {pipeline_mode = #tpu.pipeline_mode<synchronous>, transform_indices = @transform_12, window_bounds = array<i64: 32, 64>}, {pipeline_mode = #tpu.pipeline_mode<synchronous>, transform_indices = @transform_13, window_bounds = array<i64: 1, 64>}, {pipeline_mode = #tpu.pipeline_mode<synchronous>, transform_indices = @transform_14, window_bounds = array<i64: 64, 32>}, {pipeline_mode = #tpu.pipeline_mode<synchronous>, transform_indices = @transform_15, window_bounds = array<i64: 1, 32>}, {pipeline_mode = #tpu.pipeline_mode<synchronous>, transform_indices = @transform_16, window_bounds = array<i64: 1, 32>}, {pipeline_mode = #tpu.pipeline_mode<synchronous>, transform_indices = @transform_17, window_bounds = array<i64: 1, 32>}, {pipeline_mode = #tpu.pipeline_mode<synchronous>, transform_indices = @transform_18, window_bounds = array<i64: 1, 32>}, {pipeline_mode = #tpu.pipeline_mode<synchronous>, transform_indices = @transform_19, window_bounds = array<i64: 1, 32>}, {pipeline_mode = #tpu.pipeline_mode<synchronous>, transform_indices = @transform_20, window_bounds = array<i64: 1, 32>}, {pipeline_mode = #tpu.pipeline_mode<synchronous>, transform_indices = @transform_21, window_bounds = array<i64: 1, 32>}, {transform_indices = @transform_22, window_bounds = array<i64: 1, 8, 32>}]} {
    %c0 = arith.constant 0 : index
    %c0_0 = arith.constant 0 : index
    %c0_1 = arith.constant 0 : index
    %0 = vector.load %arg1[%c0, %c0_0, %c0_1] : memref<1x8x32xf32, #tpu.memory_space<vmem>>, vector<1x8x32xf32>
    %1 = vector.shape_cast %0 : vector<1x8x32xf32> to vector<8x32xf32>
    %c0_2 = arith.constant 0 : index
    %c0_3 = arith.constant 0 : index
    %c0_4 = arith.constant 0 : index
    %2 = vector.load %arg2[%c0_2, %c0_3, %c0_4] : memref<1x8x32xf32, #tpu.memory_space<vmem>>, vector<1x8x32xf32>
    %3 = vector.shape_cast %2 : vector<1x8x32xf32> to vector<8x32xf32>
    %c0_5 = arith.constant 0 : index
    %c0_6 = arith.constant 0 : index
    %4 = vector.load %arg3[%c0_5, %c0_6] : memref<32x96xf32, #tpu.memory_space<vmem>>, vector<32x96xf32>
    %cst = arith.constant dense<0.000000e+00> : vector<8x96xf32>
    %5 = tpu.matmul %1, %4, %cst {dimension_numbers = #tpu.dot_dimension_numbers<[1], [0], [0], [1], [0, 0, 1, 1], [], []>} : vector<8x32xf32>, vector<32x96xf32>, vector<8x96xf32> -> vector<8x96xf32>
    %c0_7 = arith.constant 0 : index
    %c0_8 = arith.constant 0 : index
    %6 = vector.load %arg4[%c0_7, %c0_8] : memref<1x96xf32, #tpu.memory_space<vmem>>, vector<1x96xf32>
    %7 = vector.broadcast %6 : vector<1x96xf32> to vector<8x96xf32>
    %8 = arith.addf %5, %7 : vector<8x96xf32>
    %9 = vector.extract_strided_slice %8 {offsets = [0, 0], sizes = [8, 32], strides = [1, 1]} : vector<8x96xf32> to vector<8x32xf32>
    %10 = vector.extract_strided_slice %8 {offsets = [0, 32], sizes = [8, 32], strides = [1, 1]} : vector<8x96xf32> to vector<8x32xf32>
    %11 = vector.extract_strided_slice %8 {offsets = [0, 64], sizes = [8, 32], strides = [1, 1]} : vector<8x96xf32> to vector<8x32xf32>
    %c0_9 = arith.constant 0 : index
    %c0_10 = arith.constant 0 : index
    %12 = vector.load %arg5[%c0_9, %c0_10] : memref<32x32xf32, #tpu.memory_space<vmem>>, vector<32x32xf32>
    %c0_11 = arith.constant 0 : index
    %c0_12 = arith.constant 0 : index
    %13 = vector.load %arg6[%c0_11, %c0_12] : memref<1x32xf32, #tpu.memory_space<vmem>>, vector<1x32xf32>
    %14 = vector.extract_strided_slice %9 {offsets = [0, 0], sizes = [8, 8], strides = [1, 1]} : vector<8x32xf32> to vector<8x8xf32>
    %cst_13 = arith.constant 0.353553385 : f32
    %15 = vector.broadcast %cst_13 : f32 to vector<8x8xf32>
    %16 = arith.mulf %14, %15 : vector<8x8xf32>
    %17 = vector.extract_strided_slice %10 {offsets = [0, 0], sizes = [8, 8], strides = [1, 1]} : vector<8x32xf32> to vector<8x8xf32>
    %18 = vector.extract_strided_slice %11 {offsets = [0, 0], sizes = [8, 8], strides = [1, 1]} : vector<8x32xf32> to vector<8x8xf32>
    %19 = tpu.transpose %17, [1, 0] : vector<8x8xf32> -> vector<8x8xf32>
    %cst_14 = arith.constant dense<0.000000e+00> : vector<8x8xf32>
    %20 = tpu.matmul %16, %19, %cst_14 {dimension_numbers = #tpu.dot_dimension_numbers<[1], [0], [0], [1], [0, 0, 1, 1], [], []>} : vector<8x8xf32>, vector<8x8xf32>, vector<8x8xf32> -> vector<8x8xf32>
    %cst_15 = arith.constant dense<0xFF800000> : vector<8xf32>
    %21 = vector.multi_reduction <maximumf>, %20, %cst_15 [1] : vector<8x8xf32> to vector<8xf32>
    %22 = vector.shape_cast %21 : vector<8xf32> to vector<8x1xf32>
    %23 = vector.broadcast %22 : vector<8x1xf32> to vector<8x8xf32>
    %24 = arith.subf %20, %23 : vector<8x8xf32>
    %25 = math.exp %24 : vector<8x8xf32>
    %cst_16 = arith.constant dense<0.000000e+00> : vector<8xf32>
    %26 = vector.multi_reduction <add>, %25, %cst_16 [1] : vector<8x8xf32> to vector<8xf32>
    %27 = vector.shape_cast %26 : vector<8xf32> to vector<8x1xf32>
    %28 = tpu.reciprocal %27 {approx = true} : vector<8x1xf32> -> vector<8x1xf32>
    %29 = vector.broadcast %28 : vector<8x1xf32> to vector<8x8xf32>
    %30 = arith.mulf %25, %29 : vector<8x8xf32>
    %cst_17 = arith.constant dense<0.000000e+00> : vector<8x8xf32>
    %31 = tpu.matmul %30, %18, %cst_17 {dimension_numbers = #tpu.dot_dimension_numbers<[1], [0], [0], [1], [0, 0, 1, 1], [], []>} : vector<8x8xf32>, vector<8x8xf32>, vector<8x8xf32> -> vector<8x8xf32>
    %32 = vector.extract_strided_slice %9 {offsets = [0, 8], sizes = [8, 8], strides = [1, 1]} : vector<8x32xf32> to vector<8x8xf32>
    %cst_18 = arith.constant 0.353553385 : f32
    %33 = vector.broadcast %cst_18 : f32 to vector<8x8xf32>
    %34 = arith.mulf %32, %33 : vector<8x8xf32>
    %35 = vector.extract_strided_slice %10 {offsets = [0, 8], sizes = [8, 8], strides = [1, 1]} : vector<8x32xf32> to vector<8x8xf32>
    %36 = vector.extract_strided_slice %11 {offsets = [0, 8], sizes = [8, 8], strides = [1, 1]} : vector<8x32xf32> to vector<8x8xf32>
    %37 = tpu.transpose %35, [1, 0] : vector<8x8xf32> -> vector<8x8xf32>
    %cst_19 = arith.constant dense<0.000000e+00> : vector<8x8xf32>
    %38 = tpu.matmul %34, %37, %cst_19 {dimension_numbers = #tpu.dot_dimension_numbers<[1], [0], [0], [1], [0, 0, 1, 1], [], []>} : vector<8x8xf32>, vector<8x8xf32>, vector<8x8xf32> -> vector<8x8xf32>
    %cst_20 = arith.constant dense<0xFF800000> : vector<8xf32>
    %39 = vector.multi_reduction <maximumf>, %38, %cst_20 [1] : vector<8x8xf32> to vector<8xf32>
    %40 = vector.shape_cast %39 : vector<8xf32> to vector<8x1xf32>
    %41 = vector.broadcast %40 : vector<8x1xf32> to vector<8x8xf32>
    %42 = arith.subf %38, %41 : vector<8x8xf32>
    %43 = math.exp %42 : vector<8x8xf32>
    %cst_21 = arith.constant dense<0.000000e+00> : vector<8xf32>
    %44 = vector.multi_reduction <add>, %43, %cst_21 [1] : vector<8x8xf32> to vector<8xf32>
    %45 = vector.shape_cast %44 : vector<8xf32> to vector<8x1xf32>
    %46 = tpu.reciprocal %45 {approx = true} : vector<8x1xf32> -> vector<8x1xf32>
    %47 = vector.broadcast %46 : vector<8x1xf32> to vector<8x8xf32>
    %48 = arith.mulf %43, %47 : vector<8x8xf32>
    %cst_22 = arith.constant dense<0.000000e+00> : vector<8x8xf32>
    %49 = tpu.matmul %48, %36, %cst_22 {dimension_numbers = #tpu.dot_dimension_numbers<[1], [0], [0], [1], [0, 0, 1, 1], [], []>} : vector<8x8xf32>, vector<8x8xf32>, vector<8x8xf32> -> vector<8x8xf32>
    %50 = vector.extract_strided_slice %9 {offsets = [0, 16], sizes = [8, 8], strides = [1, 1]} : vector<8x32xf32> to vector<8x8xf32>
    %cst_23 = arith.constant 0.353553385 : f32
    %51 = vector.broadcast %cst_23 : f32 to vector<8x8xf32>
    %52 = arith.mulf %50, %51 : vector<8x8xf32>
    %53 = vector.extract_strided_slice %10 {offsets = [0, 16], sizes = [8, 8], strides = [1, 1]} : vector<8x32xf32> to vector<8x8xf32>
    %54 = vector.extract_strided_slice %11 {offsets = [0, 16], sizes = [8, 8], strides = [1, 1]} : vector<8x32xf32> to vector<8x8xf32>
    %55 = tpu.transpose %53, [1, 0] : vector<8x8xf32> -> vector<8x8xf32>
    %cst_24 = arith.constant dense<0.000000e+00> : vector<8x8xf32>
    %56 = tpu.matmul %52, %55, %cst_24 {dimension_numbers = #tpu.dot_dimension_numbers<[1], [0], [0], [1], [0, 0, 1, 1], [], []>} : vector<8x8xf32>, vector<8x8xf32>, vector<8x8xf32> -> vector<8x8xf32>
    %cst_25 = arith.constant dense<0xFF800000> : vector<8xf32>
    %57 = vector.multi_reduction <maximumf>, %56, %cst_25 [1] : vector<8x8xf32> to vector<8xf32>
    %58 = vector.shape_cast %57 : vector<8xf32> to vector<8x1xf32>
    %59 = vector.broadcast %58 : vector<8x1xf32> to vector<8x8xf32>
    %60 = arith.subf %56, %59 : vector<8x8xf32>
    %61 = math.exp %60 : vector<8x8xf32>
    %cst_26 = arith.constant dense<0.000000e+00> : vector<8xf32>
    %62 = vector.multi_reduction <add>, %61, %cst_26 [1] : vector<8x8xf32> to vector<8xf32>
    %63 = vector.shape_cast %62 : vector<8xf32> to vector<8x1xf32>
    %64 = tpu.reciprocal %63 {approx = true} : vector<8x1xf32> -> vector<8x1xf32>
    %65 = vector.broadcast %64 : vector<8x1xf32> to vector<8x8xf32>
    %66 = arith.mulf %61, %65 : vector<8x8xf32>
    %cst_27 = arith.constant dense<0.000000e+00> : vector<8x8xf32>
    %67 = tpu.matmul %66, %54, %cst_27 {dimension_numbers = #tpu.dot_dimension_numbers<[1], [0], [0], [1], [0, 0, 1, 1], [], []>} : vector<8x8xf32>, vector<8x8xf32>, vector<8x8xf32> -> vector<8x8xf32>
    %68 = vector.extract_strided_slice %9 {offsets = [0, 24], sizes = [8, 8], strides = [1, 1]} : vector<8x32xf32> to vector<8x8xf32>
    %cst_28 = arith.constant 0.353553385 : f32
    %69 = vector.broadcast %cst_28 : f32 to vector<8x8xf32>
    %70 = arith.mulf %68, %69 : vector<8x8xf32>
    %71 = vector.extract_strided_slice %10 {offsets = [0, 24], sizes = [8, 8], strides = [1, 1]} : vector<8x32xf32> to vector<8x8xf32>
    %72 = vector.extract_strided_slice %11 {offsets = [0, 24], sizes = [8, 8], strides = [1, 1]} : vector<8x32xf32> to vector<8x8xf32>
    %73 = tpu.transpose %71, [1, 0] : vector<8x8xf32> -> vector<8x8xf32>
    %cst_29 = arith.constant dense<0.000000e+00> : vector<8x8xf32>
    %74 = tpu.matmul %70, %73, %cst_29 {dimension_numbers = #tpu.dot_dimension_numbers<[1], [0], [0], [1], [0, 0, 1, 1], [], []>} : vector<8x8xf32>, vector<8x8xf32>, vector<8x8xf32> -> vector<8x8xf32>
    %cst_30 = arith.constant dense<0xFF800000> : vector<8xf32>
    %75 = vector.multi_reduction <maximumf>, %74, %cst_30 [1] : vector<8x8xf32> to vector<8xf32>
    %76 = vector.shape_cast %75 : vector<8xf32> to vector<8x1xf32>
    %77 = vector.broadcast %76 : vector<8x1xf32> to vector<8x8xf32>
    %78 = arith.subf %74, %77 : vector<8x8xf32>
    %79 = math.exp %78 : vector<8x8xf32>
    %cst_31 = arith.constant dense<0.000000e+00> : vector<8xf32>
    %80 = vector.multi_reduction <add>, %79, %cst_31 [1] : vector<8x8xf32> to vector<8xf32>
    %81 = vector.shape_cast %80 : vector<8xf32> to vector<8x1xf32>
    %82 = tpu.reciprocal %81 {approx = true} : vector<8x1xf32> -> vector<8x1xf32>
    %83 = vector.broadcast %82 : vector<8x1xf32> to vector<8x8xf32>
    %84 = arith.mulf %79, %83 : vector<8x8xf32>
    %cst_32 = arith.constant dense<0.000000e+00> : vector<8x8xf32>
    %85 = tpu.matmul %84, %72, %cst_32 {dimension_numbers = #tpu.dot_dimension_numbers<[1], [0], [0], [1], [0, 0, 1, 1], [], []>} : vector<8x8xf32>, vector<8x8xf32>, vector<8x8xf32> -> vector<8x8xf32>
    %86 = tpu.concatenate %31, %49, %67, %85 in 1 : vector<8x8xf32>, vector<8x8xf32>, vector<8x8xf32>, vector<8x8xf32> -> vector<8x32xf32>
    %cst_33 = arith.constant dense<0.000000e+00> : vector<8x32xf32>
    %87 = tpu.matmul %86, %12, %cst_33 {dimension_numbers = #tpu.dot_dimension_numbers<[1], [0], [0], [1], [0, 0, 1, 1], [], []>} : vector<8x32xf32>, vector<32x32xf32>, vector<8x32xf32> -> vector<8x32xf32>
    %88 = vector.broadcast %13 : vector<1x32xf32> to vector<8x32xf32>
    %89 = arith.addf %87, %88 : vector<8x32xf32>
    %90 = arith.addf %1, %89 : vector<8x32xf32>
    %c0_34 = arith.constant 0 : index
    %c0_35 = arith.constant 0 : index
    %91 = vector.load %arg17[%c0_34, %c0_35] : memref<1x32xf32, #tpu.memory_space<vmem>>, vector<1x32xf32>
    %c0_36 = arith.constant 0 : index
    %c0_37 = arith.constant 0 : index
    %92 = vector.load %arg18[%c0_36, %c0_37] : memref<1x32xf32, #tpu.memory_space<vmem>>, vector<1x32xf32>
    %cst_38 = arith.constant dense<0.000000e+00> : vector<8xf32>
    %93 = vector.multi_reduction <add>, %90, %cst_38 [1] : vector<8x32xf32> to vector<8xf32>
    %94 = vector.shape_cast %93 : vector<8xf32> to vector<8x1xf32>
    %cst_39 = arith.constant 3.200000e+01 : f32
    %95 = vector.broadcast %cst_39 : f32 to vector<8x1xf32>
    %96 = arith.divf %94, %95 : vector<8x1xf32>
    %97 = vector.broadcast %96 : vector<8x1xf32> to vector<8x32xf32>
    %98 = arith.subf %90, %97 : vector<8x32xf32>
    %99 = arith.mulf %98, %98 : vector<8x32xf32>
    %cst_40 = arith.constant dense<0.000000e+00> : vector<8xf32>
    %100 = vector.multi_reduction <add>, %99, %cst_40 [1] : vector<8x32xf32> to vector<8xf32>
    %101 = vector.shape_cast %100 : vector<8xf32> to vector<8x1xf32>
    %cst_41 = arith.constant 3.200000e+01 : f32
    %102 = vector.broadcast %cst_41 : f32 to vector<8x1xf32>
    %103 = arith.divf %101, %102 : vector<8x1xf32>
    %cst_42 = arith.constant 9.99999974E-6 : f32
    %104 = vector.broadcast %cst_42 : f32 to vector<8x1xf32>
    %105 = arith.addf %103, %104 : vector<8x1xf32>
    %106 = math.rsqrt %105 : vector<8x1xf32>
    %107 = vector.broadcast %106 : vector<8x1xf32> to vector<8x32xf32>
    %108 = arith.mulf %98, %107 : vector<8x32xf32>
    %109 = vector.broadcast %91 : vector<1x32xf32> to vector<8x32xf32>
    %110 = arith.mulf %108, %109 : vector<8x32xf32>
    %111 = vector.broadcast %92 : vector<1x32xf32> to vector<8x32xf32>
    %112 = arith.addf %110, %111 : vector<8x32xf32>
    %c0_43 = arith.constant 0 : index
    %c0_44 = arith.constant 0 : index
    %113 = vector.load %arg7[%c0_43, %c0_44] : memref<32x32xf32, #tpu.memory_space<vmem>>, vector<32x32xf32>
    %cst_45 = arith.constant dense<0.000000e+00> : vector<8x32xf32>
    %114 = tpu.matmul %112, %113, %cst_45 {dimension_numbers = #tpu.dot_dimension_numbers<[1], [0], [0], [1], [0, 0, 1, 1], [], []>} : vector<8x32xf32>, vector<32x32xf32>, vector<8x32xf32> -> vector<8x32xf32>
    %c0_46 = arith.constant 0 : index
    %c0_47 = arith.constant 0 : index
    %115 = vector.load %arg8[%c0_46, %c0_47] : memref<1x32xf32, #tpu.memory_space<vmem>>, vector<1x32xf32>
    %116 = vector.broadcast %115 : vector<1x32xf32> to vector<8x32xf32>
    %117 = arith.addf %114, %116 : vector<8x32xf32>
    %c0_48 = arith.constant 0 : index
    %c0_49 = arith.constant 0 : index
    %118 = vector.load %arg9[%c0_48, %c0_49] : memref<32x64xf32, #tpu.memory_space<vmem>>, vector<32x64xf32>
    %cst_50 = arith.constant dense<0.000000e+00> : vector<8x64xf32>
    %119 = tpu.matmul %3, %118, %cst_50 {dimension_numbers = #tpu.dot_dimension_numbers<[1], [0], [0], [1], [0, 0, 1, 1], [], []>} : vector<8x32xf32>, vector<32x64xf32>, vector<8x64xf32> -> vector<8x64xf32>
    %c0_51 = arith.constant 0 : index
    %c0_52 = arith.constant 0 : index
    %120 = vector.load %arg10[%c0_51, %c0_52] : memref<1x64xf32, #tpu.memory_space<vmem>>, vector<1x64xf32>
    %121 = vector.broadcast %120 : vector<1x64xf32> to vector<8x64xf32>
    %122 = arith.addf %119, %121 : vector<8x64xf32>
    %123 = vector.extract_strided_slice %122 {offsets = [0, 0], sizes = [8, 32], strides = [1, 1]} : vector<8x64xf32> to vector<8x32xf32>
    %124 = vector.extract_strided_slice %122 {offsets = [0, 32], sizes = [8, 32], strides = [1, 1]} : vector<8x64xf32> to vector<8x32xf32>
    %c0_53 = arith.constant 0 : index
    %c0_54 = arith.constant 0 : index
    %125 = vector.load %arg11[%c0_53, %c0_54] : memref<32x32xf32, #tpu.memory_space<vmem>>, vector<32x32xf32>
    %c0_55 = arith.constant 0 : index
    %c0_56 = arith.constant 0 : index
    %126 = vector.load %arg12[%c0_55, %c0_56] : memref<1x32xf32, #tpu.memory_space<vmem>>, vector<1x32xf32>
    %127 = vector.extract_strided_slice %117 {offsets = [0, 0], sizes = [8, 8], strides = [1, 1]} : vector<8x32xf32> to vector<8x8xf32>
    %cst_57 = arith.constant 0.353553385 : f32
    %128 = vector.broadcast %cst_57 : f32 to vector<8x8xf32>
    %129 = arith.mulf %127, %128 : vector<8x8xf32>
    %130 = vector.extract_strided_slice %123 {offsets = [0, 0], sizes = [8, 8], strides = [1, 1]} : vector<8x32xf32> to vector<8x8xf32>
    %131 = vector.extract_strided_slice %124 {offsets = [0, 0], sizes = [8, 8], strides = [1, 1]} : vector<8x32xf32> to vector<8x8xf32>
    %132 = tpu.transpose %130, [1, 0] : vector<8x8xf32> -> vector<8x8xf32>
    %cst_58 = arith.constant dense<0.000000e+00> : vector<8x8xf32>
    %133 = tpu.matmul %129, %132, %cst_58 {dimension_numbers = #tpu.dot_dimension_numbers<[1], [0], [0], [1], [0, 0, 1, 1], [], []>} : vector<8x8xf32>, vector<8x8xf32>, vector<8x8xf32> -> vector<8x8xf32>
    %cst_59 = arith.constant dense<0xFF800000> : vector<8xf32>
    %134 = vector.multi_reduction <maximumf>, %133, %cst_59 [1] : vector<8x8xf32> to vector<8xf32>
    %135 = vector.shape_cast %134 : vector<8xf32> to vector<8x1xf32>
    %136 = vector.broadcast %135 : vector<8x1xf32> to vector<8x8xf32>
    %137 = arith.subf %133, %136 : vector<8x8xf32>
    %138 = math.exp %137 : vector<8x8xf32>
    %cst_60 = arith.constant dense<0.000000e+00> : vector<8xf32>
    %139 = vector.multi_reduction <add>, %138, %cst_60 [1] : vector<8x8xf32> to vector<8xf32>
    %140 = vector.shape_cast %139 : vector<8xf32> to vector<8x1xf32>
    %141 = tpu.reciprocal %140 {approx = true} : vector<8x1xf32> -> vector<8x1xf32>
    %142 = vector.broadcast %141 : vector<8x1xf32> to vector<8x8xf32>
    %143 = arith.mulf %138, %142 : vector<8x8xf32>
    %cst_61 = arith.constant dense<0.000000e+00> : vector<8x8xf32>
    %144 = tpu.matmul %143, %131, %cst_61 {dimension_numbers = #tpu.dot_dimension_numbers<[1], [0], [0], [1], [0, 0, 1, 1], [], []>} : vector<8x8xf32>, vector<8x8xf32>, vector<8x8xf32> -> vector<8x8xf32>
    %145 = vector.extract_strided_slice %117 {offsets = [0, 8], sizes = [8, 8], strides = [1, 1]} : vector<8x32xf32> to vector<8x8xf32>
    %cst_62 = arith.constant 0.353553385 : f32
    %146 = vector.broadcast %cst_62 : f32 to vector<8x8xf32>
    %147 = arith.mulf %145, %146 : vector<8x8xf32>
    %148 = vector.extract_strided_slice %123 {offsets = [0, 8], sizes = [8, 8], strides = [1, 1]} : vector<8x32xf32> to vector<8x8xf32>
    %149 = vector.extract_strided_slice %124 {offsets = [0, 8], sizes = [8, 8], strides = [1, 1]} : vector<8x32xf32> to vector<8x8xf32>
    %150 = tpu.transpose %148, [1, 0] : vector<8x8xf32> -> vector<8x8xf32>
    %cst_63 = arith.constant dense<0.000000e+00> : vector<8x8xf32>
    %151 = tpu.matmul %147, %150, %cst_63 {dimension_numbers = #tpu.dot_dimension_numbers<[1], [0], [0], [1], [0, 0, 1, 1], [], []>} : vector<8x8xf32>, vector<8x8xf32>, vector<8x8xf32> -> vector<8x8xf32>
    %cst_64 = arith.constant dense<0xFF800000> : vector<8xf32>
    %152 = vector.multi_reduction <maximumf>, %151, %cst_64 [1] : vector<8x8xf32> to vector<8xf32>
    %153 = vector.shape_cast %152 : vector<8xf32> to vector<8x1xf32>
    %154 = vector.broadcast %153 : vector<8x1xf32> to vector<8x8xf32>
    %155 = arith.subf %151, %154 : vector<8x8xf32>
    %156 = math.exp %155 : vector<8x8xf32>
    %cst_65 = arith.constant dense<0.000000e+00> : vector<8xf32>
    %157 = vector.multi_reduction <add>, %156, %cst_65 [1] : vector<8x8xf32> to vector<8xf32>
    %158 = vector.shape_cast %157 : vector<8xf32> to vector<8x1xf32>
    %159 = tpu.reciprocal %158 {approx = true} : vector<8x1xf32> -> vector<8x1xf32>
    %160 = vector.broadcast %159 : vector<8x1xf32> to vector<8x8xf32>
    %161 = arith.mulf %156, %160 : vector<8x8xf32>
    %cst_66 = arith.constant dense<0.000000e+00> : vector<8x8xf32>
    %162 = tpu.matmul %161, %149, %cst_66 {dimension_numbers = #tpu.dot_dimension_numbers<[1], [0], [0], [1], [0, 0, 1, 1], [], []>} : vector<8x8xf32>, vector<8x8xf32>, vector<8x8xf32> -> vector<8x8xf32>
    %163 = vector.extract_strided_slice %117 {offsets = [0, 16], sizes = [8, 8], strides = [1, 1]} : vector<8x32xf32> to vector<8x8xf32>
    %cst_67 = arith.constant 0.353553385 : f32
    %164 = vector.broadcast %cst_67 : f32 to vector<8x8xf32>
    %165 = arith.mulf %163, %164 : vector<8x8xf32>
    %166 = vector.extract_strided_slice %123 {offsets = [0, 16], sizes = [8, 8], strides = [1, 1]} : vector<8x32xf32> to vector<8x8xf32>
    %167 = vector.extract_strided_slice %124 {offsets = [0, 16], sizes = [8, 8], strides = [1, 1]} : vector<8x32xf32> to vector<8x8xf32>
    %168 = tpu.transpose %166, [1, 0] : vector<8x8xf32> -> vector<8x8xf32>
    %cst_68 = arith.constant dense<0.000000e+00> : vector<8x8xf32>
    %169 = tpu.matmul %165, %168, %cst_68 {dimension_numbers = #tpu.dot_dimension_numbers<[1], [0], [0], [1], [0, 0, 1, 1], [], []>} : vector<8x8xf32>, vector<8x8xf32>, vector<8x8xf32> -> vector<8x8xf32>
    %cst_69 = arith.constant dense<0xFF800000> : vector<8xf32>
    %170 = vector.multi_reduction <maximumf>, %169, %cst_69 [1] : vector<8x8xf32> to vector<8xf32>
    %171 = vector.shape_cast %170 : vector<8xf32> to vector<8x1xf32>
    %172 = vector.broadcast %171 : vector<8x1xf32> to vector<8x8xf32>
    %173 = arith.subf %169, %172 : vector<8x8xf32>
    %174 = math.exp %173 : vector<8x8xf32>
    %cst_70 = arith.constant dense<0.000000e+00> : vector<8xf32>
    %175 = vector.multi_reduction <add>, %174, %cst_70 [1] : vector<8x8xf32> to vector<8xf32>
    %176 = vector.shape_cast %175 : vector<8xf32> to vector<8x1xf32>
    %177 = tpu.reciprocal %176 {approx = true} : vector<8x1xf32> -> vector<8x1xf32>
    %178 = vector.broadcast %177 : vector<8x1xf32> to vector<8x8xf32>
    %179 = arith.mulf %174, %178 : vector<8x8xf32>
    %cst_71 = arith.constant dense<0.000000e+00> : vector<8x8xf32>
    %180 = tpu.matmul %179, %167, %cst_71 {dimension_numbers = #tpu.dot_dimension_numbers<[1], [0], [0], [1], [0, 0, 1, 1], [], []>} : vector<8x8xf32>, vector<8x8xf32>, vector<8x8xf32> -> vector<8x8xf32>
    %181 = vector.extract_strided_slice %117 {offsets = [0, 24], sizes = [8, 8], strides = [1, 1]} : vector<8x32xf32> to vector<8x8xf32>
    %cst_72 = arith.constant 0.353553385 : f32
    %182 = vector.broadcast %cst_72 : f32 to vector<8x8xf32>
    %183 = arith.mulf %181, %182 : vector<8x8xf32>
    %184 = vector.extract_strided_slice %123 {offsets = [0, 24], sizes = [8, 8], strides = [1, 1]} : vector<8x32xf32> to vector<8x8xf32>
    %185 = vector.extract_strided_slice %124 {offsets = [0, 24], sizes = [8, 8], strides = [1, 1]} : vector<8x32xf32> to vector<8x8xf32>
    %186 = tpu.transpose %184, [1, 0] : vector<8x8xf32> -> vector<8x8xf32>
    %cst_73 = arith.constant dense<0.000000e+00> : vector<8x8xf32>
    %187 = tpu.matmul %183, %186, %cst_73 {dimension_numbers = #tpu.dot_dimension_numbers<[1], [0], [0], [1], [0, 0, 1, 1], [], []>} : vector<8x8xf32>, vector<8x8xf32>, vector<8x8xf32> -> vector<8x8xf32>
    %cst_74 = arith.constant dense<0xFF800000> : vector<8xf32>
    %188 = vector.multi_reduction <maximumf>, %187, %cst_74 [1] : vector<8x8xf32> to vector<8xf32>
    %189 = vector.shape_cast %188 : vector<8xf32> to vector<8x1xf32>
    %190 = vector.broadcast %189 : vector<8x1xf32> to vector<8x8xf32>
    %191 = arith.subf %187, %190 : vector<8x8xf32>
    %192 = math.exp %191 : vector<8x8xf32>
    %cst_75 = arith.constant dense<0.000000e+00> : vector<8xf32>
    %193 = vector.multi_reduction <add>, %192, %cst_75 [1] : vector<8x8xf32> to vector<8xf32>
    %194 = vector.shape_cast %193 : vector<8xf32> to vector<8x1xf32>
    %195 = tpu.reciprocal %194 {approx = true} : vector<8x1xf32> -> vector<8x1xf32>
    %196 = vector.broadcast %195 : vector<8x1xf32> to vector<8x8xf32>
    %197 = arith.mulf %192, %196 : vector<8x8xf32>
    %cst_76 = arith.constant dense<0.000000e+00> : vector<8x8xf32>
    %198 = tpu.matmul %197, %185, %cst_76 {dimension_numbers = #tpu.dot_dimension_numbers<[1], [0], [0], [1], [0, 0, 1, 1], [], []>} : vector<8x8xf32>, vector<8x8xf32>, vector<8x8xf32> -> vector<8x8xf32>
    %199 = tpu.concatenate %144, %162, %180, %198 in 1 : vector<8x8xf32>, vector<8x8xf32>, vector<8x8xf32>, vector<8x8xf32> -> vector<8x32xf32>
    %cst_77 = arith.constant dense<0.000000e+00> : vector<8x32xf32>
    %200 = tpu.matmul %199, %125, %cst_77 {dimension_numbers = #tpu.dot_dimension_numbers<[1], [0], [0], [1], [0, 0, 1, 1], [], []>} : vector<8x32xf32>, vector<32x32xf32>, vector<8x32xf32> -> vector<8x32xf32>
    %201 = vector.broadcast %126 : vector<1x32xf32> to vector<8x32xf32>
    %202 = arith.addf %200, %201 : vector<8x32xf32>
    %203 = arith.addf %112, %202 : vector<8x32xf32>
    %c0_78 = arith.constant 0 : index
    %c0_79 = arith.constant 0 : index
    %204 = vector.load %arg19[%c0_78, %c0_79] : memref<1x32xf32, #tpu.memory_space<vmem>>, vector<1x32xf32>
    %c0_80 = arith.constant 0 : index
    %c0_81 = arith.constant 0 : index
    %205 = vector.load %arg20[%c0_80, %c0_81] : memref<1x32xf32, #tpu.memory_space<vmem>>, vector<1x32xf32>
    %cst_82 = arith.constant dense<0.000000e+00> : vector<8xf32>
    %206 = vector.multi_reduction <add>, %203, %cst_82 [1] : vector<8x32xf32> to vector<8xf32>
    %207 = vector.shape_cast %206 : vector<8xf32> to vector<8x1xf32>
    %cst_83 = arith.constant 3.200000e+01 : f32
    %208 = vector.broadcast %cst_83 : f32 to vector<8x1xf32>
    %209 = arith.divf %207, %208 : vector<8x1xf32>
    %210 = vector.broadcast %209 : vector<8x1xf32> to vector<8x32xf32>
    %211 = arith.subf %203, %210 : vector<8x32xf32>
    %212 = arith.mulf %211, %211 : vector<8x32xf32>
    %cst_84 = arith.constant dense<0.000000e+00> : vector<8xf32>
    %213 = vector.multi_reduction <add>, %212, %cst_84 [1] : vector<8x32xf32> to vector<8xf32>
    %214 = vector.shape_cast %213 : vector<8xf32> to vector<8x1xf32>
    %cst_85 = arith.constant 3.200000e+01 : f32
    %215 = vector.broadcast %cst_85 : f32 to vector<8x1xf32>
    %216 = arith.divf %214, %215 : vector<8x1xf32>
    %cst_86 = arith.constant 9.99999974E-6 : f32
    %217 = vector.broadcast %cst_86 : f32 to vector<8x1xf32>
    %218 = arith.addf %216, %217 : vector<8x1xf32>
    %219 = math.rsqrt %218 : vector<8x1xf32>
    %220 = vector.broadcast %219 : vector<8x1xf32> to vector<8x32xf32>
    %221 = arith.mulf %211, %220 : vector<8x32xf32>
    %222 = vector.broadcast %204 : vector<1x32xf32> to vector<8x32xf32>
    %223 = arith.mulf %221, %222 : vector<8x32xf32>
    %224 = vector.broadcast %205 : vector<1x32xf32> to vector<8x32xf32>
    %225 = arith.addf %223, %224 : vector<8x32xf32>
    %c0_87 = arith.constant 0 : index
    %c0_88 = arith.constant 0 : index
    %226 = vector.load %arg13[%c0_87, %c0_88] : memref<32x64xf32, #tpu.memory_space<vmem>>, vector<32x64xf32>
    %cst_89 = arith.constant dense<0.000000e+00> : vector<8x64xf32>
    %227 = tpu.matmul %225, %226, %cst_89 {dimension_numbers = #tpu.dot_dimension_numbers<[1], [0], [0], [1], [0, 0, 1, 1], [], []>} : vector<8x32xf32>, vector<32x64xf32>, vector<8x64xf32> -> vector<8x64xf32>
    %c0_90 = arith.constant 0 : index
    %c0_91 = arith.constant 0 : index
    %228 = vector.load %arg14[%c0_90, %c0_91] : memref<1x64xf32, #tpu.memory_space<vmem>>, vector<1x64xf32>
    %229 = vector.broadcast %228 : vector<1x64xf32> to vector<8x64xf32>
    %230 = arith.addf %227, %229 : vector<8x64xf32>
    %cst_92 = arith.constant 0.000000e+00 : f32
    %231 = vector.broadcast %cst_92 : f32 to vector<8x64xf32>
    %232 = arith.maximumf %230, %231 : vector<8x64xf32>
    %c0_93 = arith.constant 0 : index
    %c0_94 = arith.constant 0 : index
    %233 = vector.load %arg15[%c0_93, %c0_94] : memref<64x32xf32, #tpu.memory_space<vmem>>, vector<64x32xf32>
    %cst_95 = arith.constant dense<0.000000e+00> : vector<8x32xf32>
    %234 = tpu.matmul %232, %233, %cst_95 {dimension_numbers = #tpu.dot_dimension_numbers<[1], [0], [0], [1], [0, 0, 1, 1], [], []>} : vector<8x64xf32>, vector<64x32xf32>, vector<8x32xf32> -> vector<8x32xf32>
    %c0_96 = arith.constant 0 : index
    %c0_97 = arith.constant 0 : index
    %235 = vector.load %arg16[%c0_96, %c0_97] : memref<1x32xf32, #tpu.memory_space<vmem>>, vector<1x32xf32>
    %236 = vector.broadcast %235 : vector<1x32xf32> to vector<8x32xf32>
    %237 = arith.addf %234, %236 : vector<8x32xf32>
    %238 = arith.addf %225, %237 : vector<8x32xf32>
    %c0_98 = arith.constant 0 : index
    %c0_99 = arith.constant 0 : index
    %239 = vector.load %arg21[%c0_98, %c0_99] : memref<1x32xf32, #tpu.memory_space<vmem>>, vector<1x32xf32>
    %c0_100 = arith.constant 0 : index
    %c0_101 = arith.constant 0 : index
    %240 = vector.load %arg22[%c0_100, %c0_101] : memref<1x32xf32, #tpu.memory_space<vmem>>, vector<1x32xf32>
    %cst_102 = arith.constant dense<0.000000e+00> : vector<8xf32>
    %241 = vector.multi_reduction <add>, %238, %cst_102 [1] : vector<8x32xf32> to vector<8xf32>
    %242 = vector.shape_cast %241 : vector<8xf32> to vector<8x1xf32>
    %cst_103 = arith.constant 3.200000e+01 : f32
    %243 = vector.broadcast %cst_103 : f32 to vector<8x1xf32>
    %244 = arith.divf %242, %243 : vector<8x1xf32>
    %245 = vector.broadcast %244 : vector<8x1xf32> to vector<8x32xf32>
    %246 = arith.subf %238, %245 : vector<8x32xf32>
    %247 = arith.mulf %246, %246 : vector<8x32xf32>
    %cst_104 = arith.constant dense<0.000000e+00> : vector<8xf32>
    %248 = vector.multi_reduction <add>, %247, %cst_104 [1] : vector<8x32xf32> to vector<8xf32>
    %249 = vector.shape_cast %248 : vector<8xf32> to vector<8x1xf32>
    %cst_105 = arith.constant 3.200000e+01 : f32
    %250 = vector.broadcast %cst_105 : f32 to vector<8x1xf32>
    %251 = arith.divf %249, %250 : vector<8x1xf32>
    %cst_106 = arith.constant 9.99999974E-6 : f32
    %252 = vector.broadcast %cst_106 : f32 to vector<8x1xf32>
    %253 = arith.addf %251, %252 : vector<8x1xf32>
    %254 = math.rsqrt %253 : vector<8x1xf32>
    %255 = vector.broadcast %254 : vector<8x1xf32> to vector<8x32xf32>
    %256 = arith.mulf %246, %255 : vector<8x32xf32>
    %257 = vector.broadcast %239 : vector<1x32xf32> to vector<8x32xf32>
    %258 = arith.mulf %256, %257 : vector<8x32xf32>
    %259 = vector.broadcast %240 : vector<1x32xf32> to vector<8x32xf32>
    %260 = arith.addf %258, %259 : vector<8x32xf32>
    %c0_107 = arith.constant 0 : index
    %c0_108 = arith.constant 0 : index
    %c0_109 = arith.constant 0 : index
    %261 = vector.load %arg23[%c0_107, %c0_108, %c0_109] : memref<1x8x32xf32, #tpu.memory_space<vmem>>, vector<1x8x32xf32>
    %262 = vector.shape_cast %261 : vector<1x8x32xf32> to vector<8x32xf32>
    %263 = vector.shape_cast %260 : vector<8x32xf32> to vector<1x8x32xf32>
    tpu.vector_store %arg23[%c0_107, %c0_108, %c0_109], %263 {strides = array<i32>} : memref<1x8x32xf32, #tpu.memory_space<vmem>>, vector<1x8x32xf32>,
    return
  }
  func.func @transform_0(%arg0: i32) -> (i32, i32, i32) {
    %c0_i32 = arith.constant 0 : i32
    %c0_i32_0 = arith.constant 0 : i32
    %c0_i32_1 = arith.constant 0 : i32
    return %arg0, %c0_i32, %c0_i32_0 : i32, i32, i32
  }
  func.func @transform_1(%arg0: i32) -> (i32, i32, i32) {
    %c0_i32 = arith.constant 0 : i32
    %c0_i32_0 = arith.constant 0 : i32
    %c0_i32_1 = arith.constant 0 : i32
    return %arg0, %c0_i32, %c0_i32_0 : i32, i32, i32
  }
  func.func @transform_2(%arg0: i32) -> (i32, i32) {
    %c0_i32 = arith.constant 0 : i32
    %c0_i32_0 = arith.constant 0 : i32
    %c0_i32_1 = arith.constant 0 : i32
    return %c0_i32, %c0_i32_0 : i32, i32
  }
  func.func @transform_3(%arg0: i32) -> (i32, i32) {
    %c0_i32 = arith.constant 0 : i32
    %c0_i32_0 = arith.constant 0 : i32
    %c0_i32_1 = arith.constant 0 : i32
    return %c0_i32, %c0_i32_0 : i32, i32
  }
  func.func @transform_4(%arg0: i32) -> (i32, i32) {
    %c0_i32 = arith.constant 0 : i32
    %c0_i32_0 = arith.constant 0 : i32
    %c0_i32_1 = arith.constant 0 : i32
    return %c0_i32, %c0_i32_0 : i32, i32
  }
  func.func @transform_5(%arg0: i32) -> (i32, i32) {
    %c0_i32 = arith.constant 0 : i32
    %c0_i32_0 = arith.constant 0 : i32
    %c0_i32_1 = arith.constant 0 : i32
    return %c0_i32, %c0_i32_0 : i32, i32
  }
  func.func @transform_6(%arg0: i32) -> (i32, i32) {
    %c0_i32 = arith.constant 0 : i32
    %c0_i32_0 = arith.constant 0 : i32
    %c0_i32_1 = arith.constant 0 : i32
    return %c0_i32, %c0_i32_0 : i32, i32
  }
  func.func @transform_7(%arg0: i32) -> (i32, i32) {
    %c0_i32 = arith.constant 0 : i32
    %c0_i32_0 = arith.constant 0 : i32
    %c0_i32_1 = arith.constant 0 : i32
    return %c0_i32, %c0_i32_0 : i32, i32
  }
  func.func @transform_8(%arg0: i32) -> (i32, i32) {
    %c0_i32 = arith.constant 0 : i32
    %c0_i32_0 = arith.constant 0 : i32
    %c0_i32_1 = arith.constant 0 : i32
    return %c0_i32, %c0_i32_0 : i32, i32
  }
  func.func @transform_9(%arg0: i32) -> (i32, i32) {
    %c0_i32 = arith.constant 0 : i32
    %c0_i32_0 = arith.constant 0 : i32
    %c0_i32_1 = arith.constant 0 : i32
    return %c0_i32, %c0_i32_0 : i32, i32
  }
  func.func @transform_10(%arg0: i32) -> (i32, i32) {
    %c0_i32 = arith.constant 0 : i32
    %c0_i32_0 = arith.constant 0 : i32
    %c0_i32_1 = arith.constant 0 : i32
    return %c0_i32, %c0_i32_0 : i32, i32
  }
  func.func @transform_11(%arg0: i32) -> (i32, i32) {
    %c0_i32 = arith.constant 0 : i32
    %c0_i32_0 = arith.constant 0 : i32
    %c0_i32_1 = arith.constant 0 : i32
    return %c0_i32, %c0_i32_0 : i32, i32
  }
  func.func @transform_12(%arg0: i32) -> (i32, i32) {
    %c0_i32 = arith.constant 0 : i32
    %c0_i32_0 = arith.constant 0 : i32
    %c0_i32_1 = arith.constant 0 : i32
    return %c0_i32, %c0_i32_0 : i32, i32
  }
  func.func @transform_13(%arg0: i32) -> (i32, i32) {
    %c0_i32 = arith.constant 0 : i32
    %c0_i32_0 = arith.constant 0 : i32
    %c0_i32_1 = arith.constant 0 : i32
    return %c0_i32, %c0_i32_0 : i32, i32
  }
  func.func @transform_14(%arg0: i32) -> (i32, i32) {
    %c0_i32 = arith.constant 0 : i32
    %c0_i32_0 = arith.constant 0 : i32
    %c0_i32_1 = arith.constant 0 : i32
    return %c0_i32, %c0_i32_0 : i32, i32
  }
  func.func @transform_15(%arg0: i32) -> (i32, i32) {
    %c0_i32 = arith.constant 0 : i32
    %c0_i32_0 = arith.constant 0 : i32
    %c0_i32_1 = arith.constant 0 : i32
    return %c0_i32, %c0_i32_0 : i32, i32
  }
  func.func @transform_16(%arg0: i32) -> (i32, i32) {
    %c0_i32 = arith.constant 0 : i32
    %c0_i32_0 = arith.constant 0 : i32
    %c0_i32_1 = arith.constant 0 : i32
    return %c0_i32, %c0_i32_0 : i32, i32
  }
  func.func @transform_17(%arg0: i32) -> (i32, i32) {
    %c0_i32 = arith.constant 0 : i32
    %c0_i32_0 = arith.constant 0 : i32
    %c0_i32_1 = arith.constant 0 : i32
    return %c0_i32, %c0_i32_0 : i32, i32
  }
  func.func @transform_18(%arg0: i32) -> (i32, i32) {
    %c0_i32 = arith.constant 0 : i32
    %c0_i32_0 = arith.constant 0 : i32
    %c0_i32_1 = arith.constant 0 : i32
    return %c0_i32, %c0_i32_0 : i32, i32
  }
  func.func @transform_19(%arg0: i32) -> (i32, i32) {
    %c0_i32 = arith.constant 0 : i32
    %c0_i32_0 = arith.constant 0 : i32
    %c0_i32_1 = arith.constant 0 : i32
    return %c0_i32, %c0_i32_0 : i32, i32
  }
  func.func @transform_20(%arg0: i32) -> (i32, i32) {
    %c0_i32 = arith.constant 0 : i32
    %c0_i32_0 = arith.constant 0 : i32
    %c0_i32_1 = arith.constant 0 : i32
    return %c0_i32, %c0_i32_0 : i32, i32
  }
  func.func @transform_21(%arg0: i32) -> (i32, i32) {
    %c0_i32 = arith.constant 0 : i32
    %c0_i32_0 = arith.constant 0 : i32
    %c0_i32_1 = arith.constant 0 : i32
    return %c0_i32, %c0_i32_0 : i32, i32
  }
  func.func @transform_22(%arg0: i32) -> (i32, i32, i32) {
    %c0_i32 = arith.constant 0 : i32
    %c0_i32_0 = arith.constant 0 : i32
    %c0_i32_1 = arith.constant 0 : i32
    return %arg0, %c0_i32, %c0_i32_0 : i32, i32, i32
  }
}

</mosaic_0001>

<llo_original>
// kernel: tpu_custom_call.1
$region0: #{tpu_custom_call.1}
  #allocation0 [shape = 'u32[]', space=smem, size = 0x4, offset = 0x4, fixed_abs, tag = 'smem constant byte address 0x4 - core index']
  #allocation1 [shape = 'u32[144,128]{1,0:T(1,128)}', space=vmem, size = 0x12000, scoped, tag = 'internal scratch']
  %s0 = inlined_call_operand.hbm [shape: f32[2,8,32], index: 0, kind: input, shape index: {}]
  %s1 = inlined_call_operand.hbm [shape: f32[2,8,32], index: 1, kind: input, shape index: {}]
  %s2 = inlined_call_operand.vmem [shape: f32[32,96], index: 2, kind: input, shape index: {}]
  %s3 = inlined_call_operand.vmem [shape: f32[1,96], index: 3, kind: input, shape index: {}]
  %s4 = inlined_call_operand.vmem [shape: f32[32,32], index: 4, kind: input, shape index: {}]
  %s5 = inlined_call_operand.vmem [shape: f32[1,32], index: 5, kind: input, shape index: {}]
  %s6 = inlined_call_operand.vmem [shape: f32[32,32], index: 6, kind: input, shape index: {}]
  %s7 = inlined_call_operand.vmem [shape: f32[1,32], index: 7, kind: input, shape index: {}]
  %s8 = inlined_call_operand.hbm [shape: f32[32,64], index: 8, kind: input, shape index: {}]
  %s9 = inlined_call_operand.vmem [shape: f32[1,64], index: 9, kind: input, shape index: {}]
  %s10 = inlined_call_operand.hbm [shape: f32[32,32], index: 10, kind: input, shape index: {}]
  %s11 = inlined_call_operand.vmem [shape: f32[1,32], index: 11, kind: input, shape index: {}]
  %s12 = inlined_call_operand.hbm [shape: f32[32,64], index: 12, kind: input, shape index: {}]
  %s13 = inlined_call_operand.vmem [shape: f32[1,64], index: 13, kind: input, shape index: {}]
  %s14 = inlined_call_operand.vmem [shape: f32[64,32], index: 14, kind: input, shape index: {}]
  %s15 = inlined_call_operand.vmem [shape: f32[1,32], index: 15, kind: input, shape index: {}]
  %s16 = inlined_call_operand.vmem [shape: f32[1,32], index: 16, kind: input, shape index: {}]
  %s17 = inlined_call_operand.vmem [shape: f32[1,32], index: 17, kind: input, shape index: {}]
  %s18 = inlined_call_operand.vmem [shape: f32[1,32], index: 18, kind: input, shape index: {}]
  %s19 = inlined_call_operand.vmem [shape: f32[1,32], index: 19, kind: input, shape index: {}]
  %s20 = inlined_call_operand.vmem [shape: f32[1,32], index: 20, kind: input, shape index: {}]
  %s21 = inlined_call_operand.vmem [shape: f32[1,32], index: 21, kind: input, shape index: {}]
  %s22 = inlined_call_operand.hbm [shape: f32[2,8,32], index: 22, kind: output, shape index: {}]
  %s23 = sld [smem:[#allocation0]]
  $region141: #{tpu_custom_call.1} parent=0
    _
  %s25 = ssub.s32 1, %s23
  %s26 = scalar_select 0, %s25, %s23
  $region1: #{tpu_custom_call.1} parent=0
    #allocation2 [shape = 'u8[8192]{0}', space=vmem, size = 0x2000, scoped, tag = 'input window, operand 0']
    #allocation3 [shape = 's32[2]{0}', space=sflag, size = 0x8, scoped, tag = 'scoped memory for tpu_custom_call.1']
    #allocation4 [shape = 's32[2]{0}', space=sflag, size = 0x8, scoped, tag = 'scoped memory for tpu_custom_call.1']
    #allocation5 [shape = 'u8[8192]{0}', space=vmem, size = 0x2000, scoped, tag = 'input window, operand 1']
    #allocation6 [shape = 's32[2]{0}', space=sflag, size = 0x8, scoped, tag = 'scoped memory for tpu_custom_call.1']
    #allocation7 [shape = 'u8[16384]{0}', space=vmem, size = 0x4000, scoped, tag = 'input window, operand 8, single buffered']
    #allocation8 [shape = 'u8[16384]{0}', space=vmem, size = 0x4000, scoped, tag = 'input window, operand 10, single buffered']
    #allocation9 [shape = 's32[1]{0}', space=sflag, size = 0x4, scoped, tag = 'scoped memory for tpu_custom_call.1']
    #allocation10 [shape = 'u8[16384]{0}', space=vmem, size = 0x4000, scoped, tag = 'input window, operand 12, single buffered']
    #allocation11 [shape = 'u8[8192]{0}', space=vmem, size = 0x2000, scoped, tag = 'output window, operand 0']
    %27 = vsyncpa [#allocation3], 0
    %s28 = scalar_lea.sflag [#allocation3], 1
    %29 = vsyncpa %s28, 0
    %30 = vsyncpa [#allocation6], 0
    %s31 = scalar_lea.sflag [#allocation6], 1
    %32 = vsyncpa %s31, 0
    %33 = vsyncpa [#allocation9], 0
    %34 = vsyncpa [#allocation4], 0
    %s35 = scalar_lea.sflag [#allocation4], 1
    %36 = vsyncpa %s35, 0
    loop: start=0, step=1, limit=4
    $region2: #{tpu_custom_call.1} parent=1 // loop_pre_header
      _
    $region3: #{tpu_custom_call.1} parent=1 // loop_header
      %s38 = sphi 0, %s42
      %p39 = scmp.ge.s32.totalorder %s38, 4
      %s48 = sphi 0, %s50
      %s51 = sphi 0, %s48
      %s52 = sphi 0, %s51
      %s68 = sphi 0, %s52
      %s74 = sphi 0, %s76
      %s77 = sphi 0, %s74
      %s78 = sphi 0, %s77
      %s94 = sphi 0, %s78
      %s98 = sphi 0, %s98
      %s100 = sphi 0, %s98
      %s101 = sphi 0, %s100
      %s115 = sphi 0, %s101
      %s119 = sphi 0, %s119
      %s121 = sphi 0, %s119
      %s122 = sphi 0, %s121
      %s136 = sphi 0, %s122
      %s140 = sphi 0, %s140
      %s142 = sphi 0, %s140
      %s143 = sphi 0, %s142
      %s157 = sphi 0, %s143
      %s161 = sphi 0, %s161
      %s163 = sphi 0, %s161
      %s164 = sphi 0, %s163
      %s178 = sphi 0, %s164
      %s182 = sphi 0, %s182
      %s184 = sphi 0, %s182
      %s185 = sphi 0, %s184
      %s199 = sphi 0, %s185
      %s203 = sphi 0, %s203
      %s205 = sphi 0, %s203
      %s206 = sphi 0, %s205
      %s220 = sphi 0, %s206
      %s224 = sphi 0, %s224
      %s226 = sphi 0, %s224
      %s227 = sphi 0, %s226
      %s241 = sphi 0, %s227
      %s245 = sphi 0, %s245
      %s247 = sphi 0, %s245
      %s248 = sphi 0, %s247
      %s262 = sphi 0, %s248
      %s266 = sphi 0, %s266
      %s268 = sphi 0, %s266
      %s269 = sphi 0, %s268
      %s283 = sphi 0, %s269
      %s287 = sphi 0, %s287
      %s289 = sphi 0, %s287
      %s290 = sphi 0, %s289
      %s304 = sphi 0, %s290
      %s308 = sphi 0, %s308
      %s310 = sphi 0, %s308
      %s311 = sphi 0, %s310
      %s325 = sphi 0, %s311
      %s329 = sphi 0, %s329
      %s331 = sphi 0, %s329
      %s332 = sphi 0, %s331
      %s346 = sphi 0, %s332
      %s350 = sphi 0, %s350
      %s352 = sphi 0, %s350
      %s353 = sphi 0, %s352
      %s367 = sphi 0, %s353
      %s371 = sphi 0, %s371
      %s373 = sphi 0, %s371
      %s374 = sphi 0, %s373
      %s388 = sphi 0, %s374
      %s392 = sphi 0, %s392
      %s394 = sphi 0, %s392
      %s395 = sphi 0, %s394
      %s409 = sphi 0, %s395
      %s413 = sphi 0, %s413
      %s415 = sphi 0, %s413
      %s416 = sphi 0, %s415
      %s430 = sphi 0, %s416
      %s434 = sphi 0, %s434
      %s436 = sphi 0, %s434
      %s437 = sphi 0, %s436
      %s451 = sphi 0, %s437
      %s455 = sphi 0, %s455
      %s457 = sphi 0, %s455
      %s458 = sphi 0, %s457
      %s472 = sphi 0, %s458
      %s476 = sphi 0, %s476
      %s478 = sphi 0, %s476
      %s479 = sphi 0, %s478
      %s493 = sphi 0, %s479
      %s497 = sphi 0, %s497
      %s499 = sphi 0, %s497
      %s500 = sphi 0, %s499
      %s514 = sphi 0, %s500
      %s520 = sphi 0, %s522
      %s523 = sphi 0, %s520
      %s524 = sphi 0, %s523
      %s540 = sphi 0, %s524
    $region4: #{tpu_custom_call.1} parent=1 // loop_header_branch
      %41 = sbr.rel (%p39) target = $region8
    $region5: #{tpu_custom_call.1} parent=1 // loop_body
      %s43 = ssub.s32 %s38, 1
      %s44 = ssub.s32 %s38, 2
      %s45 = sadd.s32 %s38, 1
      %s46 = ssub.s32 %s38, %s45
      %p47 = scmp.eq.s32.totalorder %s46, 0
      %s49 = sadd.s32 %s48, 1
      %s50 = scalar_select %p47, %s48, %s49
      %p53 = pneg %p47
      %p54 = scmp.eq.s32.totalorder %s38, 1
      %p55 = por %p53, %p54
      %p56 = scmp.ne.s32.totalorder %s48, %s51
      %p57 = scmp.eq.s32.totalorder %s38, 0
      %p58 = por %p56, %p57
      %p59 = scmp.ne.s32.totalorder %s48, %s51
      %p60 = scmp.eq.s32.totalorder %s43, 1
      %p61 = por %p59, %p60
      %p62 = scmp.ne.s32.totalorder %s51, %s52
      %p63 = scmp.eq.s32.totalorder %s43, 0
      %p64 = por %p62, %p63
      %p65 = scmp.ne.s32.totalorder %s51, %s52
      %p66 = scmp.eq.s32.totalorder %s44, 1
      %p67 = por %p65, %p66
      %p69 = scmp.ne.s32.totalorder %s52, %s68
      %p70 = scmp.eq.s32.totalorder %s44, 0
      %p71 = por %p69, %p70
      %s72 = ssub.s32 %s38, %s45
      %p73 = scmp.eq.s32.totalorder %s72, 0
      %s75 = sadd.s32 %s74, 1
      %s76 = scalar_select %p73, %s74, %s75
      %p79 = pneg %p73
      %p80 = scmp.eq.s32.totalorder %s38, 1
      %p81 = por %p79, %p80
      %p82 = scmp.ne.s32.totalorder %s74, %s77
      %p83 = scmp.eq.s32.totalorder %s38, 0
      %p84 = por %p82, %p83
      %p85 = scmp.ne.s32.totalorder %s74, %s77
      %p86 = scmp.eq.s32.totalorder %s43, 1
      %p87 = por %p85, %p86
      %p88 = scmp.ne.s32.totalorder %s77, %s78
      %p89 = scmp.eq.s32.totalorder %s43, 0
      %p90 = por %p88, %p89
      %p91 = scmp.ne.s32.totalorder %s77, %s78
      %p92 = scmp.eq.s32.totalorder %s44, 1
      %p93 = por %p91, %p92
      %p95 = scmp.ne.s32.totalorder %s78, %s94
      %p96 = scmp.eq.s32.totalorder %s44, 0
      %p97 = por %p95, %p96
      %s99 = sadd.s32 %s98, 1
      %p102 = scmp.eq.s32.totalorder %s38, 1
      %p103 = scmp.ne.s32.totalorder %s98, %s100
      %p104 = scmp.eq.s32.totalorder %s38, 0
      %p105 = por %p103, %p104
      %p106 = scmp.ne.s32.totalorder %s98, %s100
      %p107 = scmp.eq.s32.totalorder %s43, 1
      %p108 = por %p106, %p107
      %p109 = scmp.ne.s32.totalorder %s100, %s101
      %p110 = scmp.eq.s32.totalorder %s43, 0
      %p111 = por %p109, %p110
      %p112 = scmp.ne.s32.totalorder %s100, %s101
      %p113 = scmp.eq.s32.totalorder %s44, 1
      %p114 = por %p112, %p113
      %p116 = scmp.ne.s32.totalorder %s101, %s115
      %p117 = scmp.eq.s32.totalorder %s44, 0
      %p118 = por %p116, %p117
      %s120 = sadd.s32 %s119, 1
      %p123 = scmp.eq.s32.totalorder %s38, 1
      %p124 = scmp.ne.s32.totalorder %s119, %s121
      %p125 = scmp.eq.s32.totalorder %s38, 0
      %p126 = por %p124, %p125
      %p127 = scmp.ne.s32.totalorder %s119, %s121
      %p128 = scmp.eq.s32.totalorder %s43, 1
      %p129 = por %p127, %p128
      %p130 = scmp.ne.s32.totalorder %s121, %s122
      %p131 = scmp.eq.s32.totalorder %s43, 0
      %p132 = por %p130, %p131
      %p133 = scmp.ne.s32.totalorder %s121, %s122
      %p134 = scmp.eq.s32.totalorder %s44, 1
      %p135 = por %p133, %p134
      %p137 = scmp.ne.s32.totalorder %s122, %s136
      %p138 = scmp.eq.s32.totalorder %s44, 0
      %p139 = por %p137, %p138
      %s141 = sadd.s32 %s140, 1
      %p144 = scmp.eq.s32.totalorder %s38, 1
      %p145 = scmp.ne.s32.totalorder %s140, %s142
      %p146 = scmp.eq.s32.totalorder %s38, 0
      %p147 = por %p145, %p146
      %p148 = scmp.ne.s32.totalorder %s140, %s142
      %p149 = scmp.eq.s32.totalorder %s43, 1
      %p150 = por %p148, %p149
      %p151 = scmp.ne.s32.totalorder %s142, %s143
      %p152 = scmp.eq.s32.totalorder %s43, 0
      %p153 = por %p151, %p152
      %p154 = scmp.ne.s32.totalorder %s142, %s143
      %p155 = scmp.eq.s32.totalorder %s44, 1
      %p156 = por %p154, %p155
      %p158 = scmp.ne.s32.totalorder %s143, %s157
      %p159 = scmp.eq.s32.totalorder %s44, 0
      %p160 = por %p158, %p159
      %s162 = sadd.s32 %s161, 1
      %p165 = scmp.eq.s32.totalorder %s38, 1
      %p166 = scmp.ne.s32.totalorder %s161, %s163
      %p167 = scmp.eq.s32.totalorder %s38, 0
      %p168 = por %p166, %p167
      %p169 = scmp.ne.s32.totalorder %s161, %s163
      %p170 = scmp.eq.s32.totalorder %s43, 1
      %p171 = por %p169, %p170
      %p172 = scmp.ne.s32.totalorder %s163, %s164
      %p173 = scmp.eq.s32.totalorder %s43, 0
      %p174 = por %p172, %p173
      %p175 = scmp.ne.s32.totalorder %s163, %s164
      %p176 = scmp.eq.s32.totalorder %s44, 1
      %p177 = por %p175, %p176
      %p179 = scmp.ne.s32.totalorder %s164, %s178
      %p180 = scmp.eq.s32.totalorder %s44, 0
      %p181 = por %p179, %p180
      %s183 = sadd.s32 %s182, 1
      %p186 = scmp.eq.s32.totalorder %s38, 1
      %p187 = scmp.ne.s32.totalorder %s182, %s184
      %p188 = scmp.eq.s32.totalorder %s38, 0
      %p189 = por %p187, %p188
      %p190 = scmp.ne.s32.totalorder %s182, %s184
      %p191 = scmp.eq.s32.totalorder %s43, 1
      %p192 = por %p190, %p191
      %p193 = scmp.ne.s32.totalorder %s184, %s185
      %p194 = scmp.eq.s32.totalorder %s43, 0
      %p195 = por %p193, %p194
      %p196 = scmp.ne.s32.totalorder %s184, %s185
      %p197 = scmp.eq.s32.totalorder %s44, 1
      %p198 = por %p196, %p197
      %p200 = scmp.ne.s32.totalorder %s185, %s199
      %p201 = scmp.eq.s32.totalorder %s44, 0
      %p202 = por %p200, %p201
      %s204 = sadd.s32 %s203, 1
      %p207 = scmp.eq.s32.totalorder %s38, 1
      %p208 = scmp.ne.s32.totalorder %s203, %s205
      %p209 = scmp.eq.s32.totalorder %s38, 0
      %p210 = por %p208, %p209
      %p211 = scmp.ne.s32.totalorder %s203, %s205
      %p212 = scmp.eq.s32.totalorder %s43, 1
      %p213 = por %p211, %p212
      %p214 = scmp.ne.s32.totalorder %s205, %s206
      %p215 = scmp.eq.s32.totalorder %s43, 0
      %p216 = por %p214, %p215
      %p217 = scmp.ne.s32.totalorder %s205, %s206
      %p218 = scmp.eq.s32.totalorder %s44, 1
      %p219 = por %p217, %p218
      %p221 = scmp.ne.s32.totalorder %s206, %s220
      %p222 = scmp.eq.s32.totalorder %s44, 0
      %p223 = por %p221, %p222
      %s225 = sadd.s32 %s224, 1
      %p228 = scmp.eq.s32.totalorder %s38, 1
      %p229 = scmp.ne.s32.totalorder %s224, %s226
      %p230 = scmp.eq.s32.totalorder %s38, 0
      %p231 = por %p229, %p230
      %p232 = scmp.ne.s32.totalorder %s224, %s226
      %p233 = scmp.eq.s32.totalorder %s43, 1
      %p234 = por %p232, %p233
      %p235 = scmp.ne.s32.totalorder %s226, %s227
      %p236 = scmp.eq.s32.totalorder %s43, 0
      %p237 = por %p235, %p236
      %p238 = scmp.ne.s32.totalorder %s226, %s227
      %p239 = scmp.eq.s32.totalorder %s44, 1
      %p240 = por %p238, %p239
      %p242 = scmp.ne.s32.totalorder %s227, %s241
      %p243 = scmp.eq.s32.totalorder %s44, 0
      %p244 = por %p242, %p243
      %s246 = sadd.s32 %s245, 1
      %p249 = scmp.eq.s32.totalorder %s38, 1
      %p250 = scmp.ne.s32.totalorder %s245, %s247
      %p251 = scmp.eq.s32.totalorder %s38, 0
      %p252 = por %p250, %p251
      %p253 = scmp.ne.s32.totalorder %s245, %s247
      %p254 = scmp.eq.s32.totalorder %s43, 1
      %p255 = por %p253, %p254
      %p256 = scmp.ne.s32.totalorder %s247, %s248
      %p257 = scmp.eq.s32.totalorder %s43, 0
      %p258 = por %p256, %p257
      %p259 = scmp.ne.s32.totalorder %s247, %s248
      %p260 = scmp.eq.s32.totalorder %s44, 1
      %p261 = por %p259, %p260
      %p263 = scmp.ne.s32.totalorder %s248, %s262
      %p264 = scmp.eq.s32.totalorder %s44, 0
      %p265 = por %p263, %p264
      %s267 = sadd.s32 %s266, 1
      %p270 = scmp.eq.s32.totalorder %s38, 1
      %p271 = scmp.ne.s32.totalorder %s266, %s268
      %p272 = scmp.eq.s32.totalorder %s38, 0
      %p273 = por %p271, %p272
      %p274 = scmp.ne.s32.totalorder %s266, %s268
      %p275 = scmp.eq.s32.totalorder %s43, 1
      %p276 = por %p274, %p275
      %p277 = scmp.ne.s32.totalorder %s268, %s269
      %p278 = scmp.eq.s32.totalorder %s43, 0
      %p279 = por %p277, %p278
      %p280 = scmp.ne.s32.totalorder %s268, %s269
      %p281 = scmp.eq.s32.totalorder %s44, 1
      %p282 = por %p280, %p281
      %p284 = scmp.ne.s32.totalorder %s269, %s283
      %p285 = scmp.eq.s32.totalorder %s44, 0
      %p286 = por %p284, %p285
      %s288 = sadd.s32 %s287, 1
      %p291 = scmp.eq.s32.totalorder %s38, 1
      %p292 = scmp.ne.s32.totalorder %s287, %s289
      %p293 = scmp.eq.s32.totalorder %s38, 0
      %p294 = por %p292, %p293
      %p295 = scmp.ne.s32.totalorder %s287, %s289
      %p296 = scmp.eq.s32.totalorder %s43, 1
      %p297 = por %p295, %p296
      %p298 = scmp.ne.s32.totalorder %s289, %s290
      %p299 = scmp.eq.s32.totalorder %s43, 0
      %p300 = por %p298, %p299
      %p301 = scmp.ne.s32.totalorder %s289, %s290
      %p302 = scmp.eq.s32.totalorder %s44, 1
      %p303 = por %p301, %p302
      %p305 = scmp.ne.s32.totalorder %s290, %s304
      %p306 = scmp.eq.s32.totalorder %s44, 0
      %p307 = por %p305, %p306
      %s309 = sadd.s32 %s308, 1
      %p312 = scmp.eq.s32.totalorder %s38, 1
      %p313 = scmp.ne.s32.totalorder %s308, %s310
      %p314 = scmp.eq.s32.totalorder %s38, 0
      %p315 = por %p313, %p314
      %p316 = scmp.ne.s32.totalorder %s308, %s310
      %p317 = scmp.eq.s32.totalorder %s43, 1
      %p318 = por %p316, %p317
      %p319 = scmp.ne.s32.totalorder %s310, %s311
      %p320 = scmp.eq.s32.totalorder %s43, 0
      %p321 = por %p319, %p320
      %p322 = scmp.ne.s32.totalorder %s310, %s311
      %p323 = scmp.eq.s32.totalorder %s44, 1
      %p324 = por %p322, %p323
      %p326 = scmp.ne.s32.totalorder %s311, %s325
      %p327 = scmp.eq.s32.totalorder %s44, 0
      %p328 = por %p326, %p327
      %s330 = sadd.s32 %s329, 1
      %p333 = scmp.eq.s32.totalorder %s38, 1
      %p334 = scmp.ne.s32.totalorder %s329, %s331
      %p335 = scmp.eq.s32.totalorder %s38, 0
      %p336 = por %p334, %p335
      %p337 = scmp.ne.s32.totalorder %s329, %s331
      %p338 = scmp.eq.s32.totalorder %s43, 1
      %p339 = por %p337, %p338
      %p340 = scmp.ne.s32.totalorder %s331, %s332
      %p341 = scmp.eq.s32.totalorder %s43, 0
      %p342 = por %p340, %p341
      %p343 = scmp.ne.s32.totalorder %s331, %s332
      %p344 = scmp.eq.s32.totalorder %s44, 1
      %p345 = por %p343, %p344
      %p347 = scmp.ne.s32.totalorder %s332, %s346
      %p348 = scmp.eq.s32.totalorder %s44, 0
      %p349 = por %p347, %p348
      %s351 = sadd.s32 %s350, 1
      %p354 = scmp.eq.s32.totalorder %s38, 1
      %p355 = scmp.ne.s32.totalorder %s350, %s352
      %p356 = scmp.eq.s32.totalorder %s38, 0
      %p357 = por %p355, %p356
      %p358 = scmp.ne.s32.totalorder %s350, %s352
      %p359 = scmp.eq.s32.totalorder %s43, 1
      %p360 = por %p358, %p359
      %p361 = scmp.ne.s32.totalorder %s352, %s353
      %p362 = scmp.eq.s32.totalorder %s43, 0
      %p363 = por %p361, %p362
      %p364 = scmp.ne.s32.totalorder %s352, %s353
      %p365 = scmp.eq.s32.totalorder %s44, 1
      %p366 = por %p364, %p365
      %p368 = scmp.ne.s32.totalorder %s353, %s367
      %p369 = scmp.eq.s32.totalorder %s44, 0
      %p370 = por %p368, %p369
      %s372 = sadd.s32 %s371, 1
      %p375 = scmp.eq.s32.totalorder %s38, 1
      %p376 = scmp.ne.s32.totalorder %s371, %s373
      %p377 = scmp.eq.s32.totalorder %s38, 0
      %p378 = por %p376, %p377
      %p379 = scmp.ne.s32.totalorder %s371, %s373
      %p380 = scmp.eq.s32.totalorder %s43, 1
      %p381 = por %p379, %p380
      %p382 = scmp.ne.s32.totalorder %s373, %s374
      %p383 = scmp.eq.s32.totalorder %s43, 0
      %p384 = por %p382, %p383
      %p385 = scmp.ne.s32.totalorder %s373, %s374
      %p386 = scmp.eq.s32.totalorder %s44, 1
      %p387 = por %p385, %p386
      %p389 = scmp.ne.s32.totalorder %s374, %s388
      %p390 = scmp.eq.s32.totalorder %s44, 0
      %p391 = por %p389, %p390
      %s393 = sadd.s32 %s392, 1
      %p396 = scmp.eq.s32.totalorder %s38, 1
      %p397 = scmp.ne.s32.totalorder %s392, %s394
      %p398 = scmp.eq.s32.totalorder %s38, 0
      %p399 = por %p397, %p398
      %p400 = scmp.ne.s32.totalorder %s392, %s394
      %p401 = scmp.eq.s32.totalorder %s43, 1
      %p402 = por %p400, %p401
      %p403 = scmp.ne.s32.totalorder %s394, %s395
      %p404 = scmp.eq.s32.totalorder %s43, 0
      %p405 = por %p403, %p404
      %p406 = scmp.ne.s32.totalorder %s394, %s395
      %p407 = scmp.eq.s32.totalorder %s44, 1
      %p408 = por %p406, %p407
      %p410 = scmp.ne.s32.totalorder %s395, %s409
      %p411 = scmp.eq.s32.totalorder %s44, 0
      %p412 = por %p410, %p411
      %s414 = sadd.s32 %s413, 1
      %p417 = scmp.eq.s32.totalorder %s38, 1
      %p418 = scmp.ne.s32.totalorder %s413, %s415
      %p419 = scmp.eq.s32.totalorder %s38, 0
      %p420 = por %p418, %p419
      %p421 = scmp.ne.s32.totalorder %s413, %s415
      %p422 = scmp.eq.s32.totalorder %s43, 1
      %p423 = por %p421, %p422
      %p424 = scmp.ne.s32.totalorder %s415, %s416
      %p425 = scmp.eq.s32.totalorder %s43, 0
      %p426 = por %p424, %p425
      %p427 = scmp.ne.s32.totalorder %s415, %s416
      %p428 = scmp.eq.s32.totalorder %s44, 1
      %p429 = por %p427, %p428
      %p431 = scmp.ne.s32.totalorder %s416, %s430
      %p432 = scmp.eq.s32.totalorder %s44, 0
      %p433 = por %p431, %p432
      %s435 = sadd.s32 %s434, 1
      %p438 = scmp.eq.s32.totalorder %s38, 1
      %p439 = scmp.ne.s32.totalorder %s434, %s436
      %p440 = scmp.eq.s32.totalorder %s38, 0
      %p441 = por %p439, %p440
      %p442 = scmp.ne.s32.totalorder %s434, %s436
      %p443 = scmp.eq.s32.totalorder %s43, 1
      %p444 = por %p442, %p443
      %p445 = scmp.ne.s32.totalorder %s436, %s437
      %p446 = scmp.eq.s32.totalorder %s43, 0
      %p447 = por %p445, %p446
      %p448 = scmp.ne.s32.totalorder %s436, %s437
      %p449 = scmp.eq.s32.totalorder %s44, 1
      %p450 = por %p448, %p449
      %p452 = scmp.ne.s32.totalorder %s437, %s451
      %p453 = scmp.eq.s32.totalorder %s44, 0
      %p454 = por %p452, %p453
      %s456 = sadd.s32 %s455, 1
      %p459 = scmp.eq.s32.totalorder %s38, 1
      %p460 = scmp.ne.s32.totalorder %s455, %s457
      %p461 = scmp.eq.s32.totalorder %s38, 0
      %p462 = por %p460, %p461
      %p463 = scmp.ne.s32.totalorder %s455, %s457
      %p464 = scmp.eq.s32.totalorder %s43, 1
      %p465 = por %p463, %p464
      %p466 = scmp.ne.s32.totalorder %s457, %s458
      %p467 = scmp.eq.s32.totalorder %s43, 0
      %p468 = por %p466, %p467
      %p469 = scmp.ne.s32.totalorder %s457, %s458
      %p470 = scmp.eq.s32.totalorder %s44, 1
      %p471 = por %p469, %p470
      %p473 = scmp.ne.s32.totalorder %s458, %s472
      %p474 = scmp.eq.s32.totalorder %s44, 0
      %p475 = por %p473, %p474
      %s477 = sadd.s32 %s476, 1
      %p480 = scmp.eq.s32.totalorder %s38, 1
      %p481 = scmp.ne.s32.totalorder %s476, %s478
      %p482 = scmp.eq.s32.totalorder %s38, 0
      %p483 = por %p481, %p482
      %p484 = scmp.ne.s32.totalorder %s476, %s478
      %p485 = scmp.eq.s32.totalorder %s43, 1
      %p486 = por %p484, %p485
      %p487 = scmp.ne.s32.totalorder %s478, %s479
      %p488 = scmp.eq.s32.totalorder %s43, 0
      %p489 = por %p487, %p488
      %p490 = scmp.ne.s32.totalorder %s478, %s479
      %p491 = scmp.eq.s32.totalorder %s44, 1
      %p492 = por %p490, %p491
      %p494 = scmp.ne.s32.totalorder %s479, %s493
      %p495 = scmp.eq.s32.totalorder %s44, 0
      %p496 = por %p494, %p495
      %s498 = sadd.s32 %s497, 1
      %p501 = scmp.eq.s32.totalorder %s38, 1
      %p502 = scmp.ne.s32.totalorder %s497, %s499
      %p503 = scmp.eq.s32.totalorder %s38, 0
      %p504 = por %p502, %p503
      %p505 = scmp.ne.s32.totalorder %s497, %s499
      %p506 = scmp.eq.s32.totalorder %s43, 1
      %p507 = por %p505, %p506
      %p508 = scmp.ne.s32.totalorder %s499, %s500
      %p509 = scmp.eq.s32.totalorder %s43, 0
      %p510 = por %p508, %p509
      %p511 = scmp.ne.s32.totalorder %s499, %s500
      %p512 = scmp.eq.s32.totalorder %s44, 1
      %p513 = por %p511, %p512
      %p515 = scmp.ne.s32.totalorder %s500, %s514
      %p516 = scmp.eq.s32.totalorder %s44, 0
      %p517 = por %p515, %p516
      %s518 = ssub.s32 %s38, %s45
      %p519 = scmp.eq.s32.totalorder %s518, 0
      %s521 = sadd.s32 %s520, 1
      %s522 = scalar_select %p519, %s520, %s521
      %p525 = pneg %p519
      %p526 = scmp.eq.s32.totalorder %s38, 1
      %p527 = por %p525, %p526
      %p528 = scmp.ne.s32.totalorder %s520, %s523
      %p529 = scmp.eq.s32.totalorder %s38, 0
      %p530 = por %p528, %p529
      %p531 = scmp.ne.s32.totalorder %s520, %s523
      %p532 = scmp.eq.s32.totalorder %s43, 1
      %p533 = por %p531, %p532
      %p534 = scmp.ne.s32.totalorder %s523, %s524
      %p535 = scmp.eq.s32.totalorder %s43, 0
      %p536 = por %p534, %p535
      %p537 = scmp.ne.s32.totalorder %s523, %s524
      %p538 = scmp.eq.s32.totalorder %s44, 1
      %p539 = por %p537, %p538
      %p541 = scmp.ne.s32.totalorder %s524, %s540
      %p542 = scmp.eq.s32.totalorder %s44, 0
      %p543 = por %p541, %p542
      %p544 = scmp.le.s32.totalorder 1, %s38
      %p545 = scmp.lt.s32.totalorder %s38, 3
      %p546 = pnand %p544, %p545
      %p547 = pneg %p546
      // Predicated region
      $region9: #{tpu_custom_call.1} parent=5 // pred_check
        _
      $region10: #{tpu_custom_call.1} parent=5 // pred_check_branch
        %549 = sbr.rel (%p546) target = $region12
      $region11: #{tpu_custom_call.1} parent=5 // pred_region
        %s550 = ssub.s32 %s38, 1
        // Predicated region
        $region13: #{tpu_custom_call.1} parent=11 // pred_check
          %p551 = pneg %p111
        $region14: #{tpu_custom_call.1} parent=11 // pred_check_branch
          %553 = sbr.rel (%p551) target = $region16
        $region15: #{tpu_custom_call.1} parent=11 // pred_region
          _
        $region16: #{tpu_custom_call.1} parent=11 // pred_fallthru
          _
        // Predicated region
        $region17: #{tpu_custom_call.1} parent=11 // pred_check
          %p554 = pneg %p132
        $region18: #{tpu_custom_call.1} parent=11 // pred_check_branch
          %556 = sbr.rel (%p554) target = $region20
        $region19: #{tpu_custom_call.1} parent=11 // pred_region
          _
        $region20: #{tpu_custom_call.1} parent=11 // pred_fallthru
          _
        // Predicated region
        $region21: #{tpu_custom_call.1} parent=11 // pred_check
          %p557 = pneg %p153
        $region22: #{tpu_custom_call.1} parent=11 // pred_check_branch
          %559 = sbr.rel (%p557) target = $region24
        $region23: #{tpu_custom_call.1} parent=11 // pred_region
          _
        $region24: #{tpu_custom_call.1} parent=11 // pred_fallthru
          _
        // Predicated region
        $region25: #{tpu_custom_call.1} parent=11 // pred_check
          %p560 = pneg %p174
        $region26: #{tpu_custom_call.1} parent=11 // pred_check_branch
          %562 = sbr.rel (%p560) target = $region28
        $region27: #{tpu_custom_call.1} parent=11 // pred_region
          _
        $region28: #{tpu_custom_call.1} parent=11 // pred_fallthru
          _
        // Predicated region
        $region29: #{tpu_custom_call.1} parent=11 // pred_check
          %p563 = pneg %p195
        $region30: #{tpu_custom_call.1} parent=11 // pred_check_branch
          %565 = sbr.rel (%p563) target = $region32
        $region31: #{tpu_custom_call.1} parent=11 // pred_region
          _
        $region32: #{tpu_custom_call.1} parent=11 // pred_fallthru
          _
        // Predicated region
        $region33: #{tpu_custom_call.1} parent=11 // pred_check
          %p566 = pneg %p216
        $region34: #{tpu_custom_call.1} parent=11 // pred_check_branch
          %568 = sbr.rel (%p566) target = $region36
        $region35: #{tpu_custom_call.1} parent=11 // pred_region
          _
        $region36: #{tpu_custom_call.1} parent=11 // pred_fallthru
          _
        // Predicated region
        $region37: #{tpu_custom_call.1} parent=11 // pred_check
          %p569 = pneg %p237
        $region38: #{tpu_custom_call.1} parent=11 // pred_check_branch
          %571 = sbr.rel (%p569) target = $region40
        $region39: #{tpu_custom_call.1} parent=11 // pred_region
          %s573 = ssub.s32 512, 512
          %574 = vsyncadd [#allocation6], %s573
          %s575 = sshll.u32 [#allocation7], 4
          %s576 = int_to_ptr.vmem [resolvable:$true] %s575
          %581 = dma.hbm_to_vmem [thread:$0]  %s8, 512, %s576, [#allocation6], 128, 128, 8
        $region40: #{tpu_custom_call.1} parent=11 // pred_fallthru
          _
        // Predicated region
        $region41: #{tpu_custom_call.1} parent=11 // pred_check
          %p582 = pneg %p258
        $region42: #{tpu_custom_call.1} parent=11 // pred_check_branch
          %584 = sbr.rel (%p582) target = $region44
        $region43: #{tpu_custom_call.1} parent=11 // pred_region
          _
        $region44: #{tpu_custom_call.1} parent=11 // pred_fallthru
          _
        // Predicated region
        $region45: #{tpu_custom_call.1} parent=11 // pred_check
          %p585 = pneg %p279
        $region46: #{tpu_custom_call.1} parent=11 // pred_check_branch
          %587 = sbr.rel (%p585) target = $region48
        $region47: #{tpu_custom_call.1} parent=11 // pred_region
          %s589 = ssub.s32 512, 512
          %590 = vsyncadd [#allocation9], %s589
          %s591 = sshll.u32 [#allocation8], 4
          %s592 = int_to_ptr.vmem [resolvable:$true] %s591
          %597 = dma.hbm_to_vmem [thread:$0]  %s10, 512, %s592, [#allocation9], 128, 128, 8
        $region48: #{tpu_custom_call.1} parent=11 // pred_fallthru
          _
        // Predicated region
        $region49: #{tpu_custom_call.1} parent=11 // pred_check
          %p598 = pneg %p300
        $region50: #{tpu_custom_call.1} parent=11 // pred_check_branch
          %600 = sbr.rel (%p598) target = $region52
        $region51: #{tpu_custom_call.1} parent=11 // pred_region
          _
        $region52: #{tpu_custom_call.1} parent=11 // pred_fallthru
          _
        // Predicated region
        $region53: #{tpu_custom_call.1} parent=11 // pred_check
          %p601 = pneg %p321
        $region54: #{tpu_custom_call.1} parent=11 // pred_check_branch
          %603 = sbr.rel (%p601) target = $region56
        $region55: #{tpu_custom_call.1} parent=11 // pred_region
          %s605 = ssub.s32 512, 512
          %606 = vsyncadd [#allocation9], %s605
          %s607 = sshll.u32 [#allocation10], 4
          %s608 = int_to_ptr.vmem [resolvable:$true] %s607
          %613 = dma.hbm_to_vmem [thread:$0]  %s12, 512, %s608, [#allocation9], 128, 128, 8
        $region56: #{tpu_custom_call.1} parent=11 // pred_fallthru
          _
        // Predicated region
        $region57: #{tpu_custom_call.1} parent=11 // pred_check
          %p614 = pneg %p342
        $region58: #{tpu_custom_call.1} parent=11 // pred_check_branch
          %616 = sbr.rel (%p614) target = $region60
        $region59: #{tpu_custom_call.1} parent=11 // pred_region
          _
        $region60: #{tpu_custom_call.1} parent=11 // pred_fallthru
          _
        // Predicated region
        $region61: #{tpu_custom_call.1} parent=11 // pred_check
          %p617 = pneg %p363
        $region62: #{tpu_custom_call.1} parent=11 // pred_check_branch
          %619 = sbr.rel (%p617) target = $region64
        $region63: #{tpu_custom_call.1} parent=11 // pred_region
          _
        $region64: #{tpu_custom_call.1} parent=11 // pred_fallthru
          _
        // Predicated region
        $region65: #{tpu_custom_call.1} parent=11 // pred_check
          %p620 = pneg %p384
        $region66: #{tpu_custom_call.1} parent=11 // pred_check_branch
          %622 = sbr.rel (%p620) target = $region68
        $region67: #{tpu_custom_call.1} parent=11 // pred_region
          _
        $region68: #{tpu_custom_call.1} parent=11 // pred_fallthru
          _
        // Predicated region
        $region69: #{tpu_custom_call.1} parent=11 // pred_check
          %p623 = pneg %p405
        $region70: #{tpu_custom_call.1} parent=11 // pred_check_branch
          %625 = sbr.rel (%p623) target = $region72
        $region71: #{tpu_custom_call.1} parent=11 // pred_region
          _
        $region72: #{tpu_custom_call.1} parent=11 // pred_fallthru
          _
        // Predicated region
        $region73: #{tpu_custom_call.1} parent=11 // pred_check
          %p626 = pneg %p426
        $region74: #{tpu_custom_call.1} parent=11 // pred_check_branch
          %628 = sbr.rel (%p626) target = $region76
        $region75: #{tpu_custom_call.1} parent=11 // pred_region
          _
        $region76: #{tpu_custom_call.1} parent=11 // pred_fallthru
          _
        // Predicated region
        $region77: #{tpu_custom_call.1} parent=11 // pred_check
          %p629 = pneg %p447
        $region78: #{tpu_custom_call.1} parent=11 // pred_check_branch
          %631 = sbr.rel (%p629) target = $region80
        $region79: #{tpu_custom_call.1} parent=11 // pred_region
          _
        $region80: #{tpu_custom_call.1} parent=11 // pred_fallthru
          _
        // Predicated region
        $region81: #{tpu_custom_call.1} parent=11 // pred_check
          %p632 = pneg %p468
        $region82: #{tpu_custom_call.1} parent=11 // pred_check_branch
          %634 = sbr.rel (%p632) target = $region84
        $region83: #{tpu_custom_call.1} parent=11 // pred_region
          _
        $region84: #{tpu_custom_call.1} parent=11 // pred_fallthru
          _
        // Predicated region
        $region85: #{tpu_custom_call.1} parent=11 // pred_check
          %p635 = pneg %p489
        $region86: #{tpu_custom_call.1} parent=11 // pred_check_branch
          %637 = sbr.rel (%p635) target = $region88
        $region87: #{tpu_custom_call.1} parent=11 // pred_region
          _
        $region88: #{tpu_custom_call.1} parent=11 // pred_fallthru
          _
        // Predicated region
        $region89: #{tpu_custom_call.1} parent=11 // pred_check
          %p638 = pneg %p510
        $region90: #{tpu_custom_call.1} parent=11 // pred_check_branch
          %640 = sbr.rel (%p638) target = $region92
        $region91: #{tpu_custom_call.1} parent=11 // pred_region
          _
        $region92: #{tpu_custom_call.1} parent=11 // pred_fallthru
          _
      $region12: #{tpu_custom_call.1} parent=5 // pred_fallthru
        _
      %p641 = scmp.lt.s32.totalorder %s38, 2
      // Predicated region
      $region93: #{tpu_custom_call.1} parent=5 // pred_check
        %p642 = pneg %p641
      $region94: #{tpu_custom_call.1} parent=5 // pred_check_branch
        %644 = sbr.rel (%p642) target = $region96
      $region95: #{tpu_custom_call.1} parent=5 // pred_region
        // Predicated region
        $region97: #{tpu_custom_call.1} parent=95 // pred_check
          %p645 = pneg %p58
        $region98: #{tpu_custom_call.1} parent=95 // pred_check_branch
          %647 = sbr.rel (%p645) target = $region100
        $region99: #{tpu_custom_call.1} parent=95 // pred_region
          %s648 = sand.u32 %s48, 1
          %s649 = scalar_lea.sflag [#allocation3], %s648
          %s650 = sand.u32 %s48, 1
          %s651 = smul.addr %s650, 8
          %s652 = scalar_lea.vmem [#allocation2], %s651
          %s654 = ssub.s32 128, 128
          %655 = vsyncadd %s649, %s654
          %s656 = smul.addr %s38, 128
          %s657 = scalar_lea.hbm %s0, %s656
          %s659 = sshll.u32 %s652, 4
          %s660 = int_to_ptr.vmem [resolvable:$true] %s659
          %662 = dma.hbm_to_vmem [thread:$0]  %s657, 128, %s660, %s649
        $region100: #{tpu_custom_call.1} parent=95 // pred_fallthru
          _
        // Predicated region
        $region101: #{tpu_custom_call.1} parent=95 // pred_check
          %p663 = pneg %p84
        $region102: #{tpu_custom_call.1} parent=95 // pred_check_branch
          %665 = sbr.rel (%p663) target = $region104
        $region103: #{tpu_custom_call.1} parent=95 // pred_region
          %s666 = sand.u32 %s38, 1
          %s667 = scalar_lea.sflag [#allocation6], %s666
          %s668 = sand.u32 %s74, 1
          %s669 = smul.addr %s668, 8
          %s670 = scalar_lea.vmem [#allocation5], %s669
          %s672 = ssub.s32 128, 128
          %673 = vsyncadd %s667, %s672
          %s674 = smul.addr %s38, 128
          %s675 = scalar_lea.hbm %s1, %s674
          %s677 = sshll.u32 %s670, 4
          %s678 = int_to_ptr.vmem [resolvable:$true] %s677
          %680 = dma.hbm_to_vmem [thread:$0]  %s675, 128, %s678, %s667
        $region104: #{tpu_custom_call.1} parent=95 // pred_fallthru
          _
      $region96: #{tpu_custom_call.1} parent=5 // pred_fallthru
        _
      %p681 = scmp.le.s32.totalorder 1, %s38
      %p682 = scmp.lt.s32.totalorder %s38, 3
      %p683 = pnand %p681, %p682
      %p684 = pneg %p683
      // Predicated region
      $region105: #{tpu_custom_call.1} parent=5 // pred_check
        _
      $region106: #{tpu_custom_call.1} parent=5 // pred_check_branch
        %686 = sbr.rel (%p683) target = $region108
      $region107: #{tpu_custom_call.1} parent=5 // pred_region
        %s687 = ssub.s32 %s38, 1
        %s688 = sand.u32 %s51, 1
        %s689 = scalar_lea.sflag [#allocation3], %s688
        %s690 = sand.u32 %s51, 1
        %s691 = smul.addr %s690, 8
        %s692 = scalar_lea.vmem [#allocation2], %s691
        // Predicated region
        $region109: #{tpu_custom_call.1} parent=107 // pred_check
          %p693 = pneg %p64
        $region110: #{tpu_custom_call.1} parent=107 // pred_check_branch
          %695 = sbr.rel (%p693) target = $region112
        $region111: #{tpu_custom_call.1} parent=107 // pred_region
          %696 = dma.done %s689, 128
        $region112: #{tpu_custom_call.1} parent=107 // pred_fallthru
          _
        %s697 = sand.u32 %s43, 1
        %s698 = scalar_lea.sflag [#allocation6], %s697
        %s699 = sand.u32 %s77, 1
        %s700 = smul.addr %s699, 8
        %s701 = scalar_lea.vmem [#allocation5], %s700
        // Predicated region
        $region113: #{tpu_custom_call.1} parent=107 // pred_check
          %p702 = pneg %p90
        $region114: #{tpu_custom_call.1} parent=107 // pred_check_branch
          %704 = sbr.rel (%p702) target = $region116
        $region115: #{tpu_custom_call.1} parent=107 // pred_region
          %705 = dma.done %s698, 128
        $region116: #{tpu_custom_call.1} parent=107 // pred_fallthru
          _
        // Predicated region
        $region117: #{tpu_custom_call.1} parent=107 // pred_check
          %p706 = pneg %p237
        $region118: #{tpu_custom_call.1} parent=107 // pred_check_branch
          %708 = sbr.rel (%p706) target = $region120
        $region119: #{tpu_custom_call.1} parent=107 // pred_region
          %709 = dma.done [#allocation6], 512
        $region120: #{tpu_custom_call.1} parent=107 // pred_fallthru
          _
        // Predicated region
        $region121: #{tpu_custom_call.1} parent=107 // pred_check
          %p710 = pneg %p279
        $region122: #{tpu_custom_call.1} parent=107 // pred_check_branch
          %712 = sbr.rel (%p710) target = $region124
        $region123: #{tpu_custom_call.1} parent=107 // pred_region
          %713 = dma.done [#allocation9], 512
        $region124: #{tpu_custom_call.1} parent=107 // pred_fallthru
          _
        // Predicated region
        $region125: #{tpu_custom_call.1} parent=107 // pred_check
          %p714 = pneg %p321
        $region126: #{tpu_custom_call.1} parent=107 // pred_check_branch
          %716 = sbr.rel (%p714) target = $region128
        $region127: #{tpu_custom_call.1} parent=107 // pred_region
          %717 = dma.done [#allocation9], 512
        $region128: #{tpu_custom_call.1} parent=107 // pred_fallthru
          _
        %s718 = sand.u32 %s51, 1
        %s719 = scalar_lea.sflag [#allocation3], %s718
        %s720 = sand.u32 %s51, 1
        %s721 = smul.addr %s720, 8
        %s722 = scalar_lea.vmem [#allocation2], %s721
        %p723 = pneg %p64
        %p724 = pneg %p61
        %s725 = sand.u32 %s43, 1
        %s726 = scalar_lea.sflag [#allocation6], %s725
        %s727 = sand.u32 %s77, 1
        %s728 = smul.addr %s727, 8
        %s729 = scalar_lea.vmem [#allocation5], %s728
        %p730 = pneg %p90
        %p731 = pneg %p87
        %p732 = pneg %p111
        %p733 = pneg %p108
        %p734 = pneg %p132
        %p735 = pneg %p129
        %p736 = pneg %p153
        %p737 = pneg %p150
        %p738 = pneg %p174
        %p739 = pneg %p171
        %p740 = pneg %p195
        %p741 = pneg %p192
        %p742 = pneg %p216
        %p743 = pneg %p213
        %p744 = pneg %p237
        %p745 = pneg %p234
        %p746 = pneg %p258
        %p747 = pneg %p255
        %p748 = pneg %p279
        %p749 = pneg %p276
        %p750 = pneg %p300
        %p751 = pneg %p297
        %p752 = pneg %p321
        %p753 = pneg %p318
        %p754 = pneg %p342
        %p755 = pneg %p339
        %p756 = pneg %p363
        %p757 = pneg %p360
        %p758 = pneg %p384
        %p759 = pneg %p381
        %p760 = pneg %p405
        %p761 = pneg %p402
        %p762 = pneg %p426
        %p763 = pneg %p423
        %p764 = pneg %p447
        %p765 = pneg %p444
        %p766 = pneg %p468
        %p767 = pneg %p465
        %p768 = pneg %p489
        %p769 = pneg %p486
        %p770 = pneg %p510
        %p771 = pneg %p507
        %p772 = pneg %p536
        %p773 = pneg %p533
        %s774 = sand.u32 %s523, 1
        %s775 = scalar_lea.sflag [#allocation4], %s774
        %s776 = sand.u32 %s523, 1
        %s777 = smul.addr %s776, 8
        %s778 = scalar_lea.vmem [#allocation11], %s777
        %v779 = vld [vmem:[%s692] sm:$0xff]
        %v780 = vld [vmem:[%s701] sm:$0xff]
        %v781 = vld [vmem:[%s2] sm:$0xff]
        %v782 = vld [vmem:[%s2 + $0x8] sm:$0xff]
        %v783 = vld [vmem:[%s2 + $0x10] sm:$0xff]
        %v784 = vld [vmem:[%s2 + $0x18] sm:$0xff]
        %v785 = vld [vmem:[%s3] sm:$0x1]
        %v787 = vlaneseq
        %v788 = vshrl.u32 %v787, 7
        %v789 = vsub.s32 0, %v788
        %v790 = vrot.slane %v785, %v789
        %vm792 = vcmask 261120
        %v794 = vsel %vm792, %v779, 0
        %796 = vmatprep.subr.mxu0 0.0
        %797 = vmatpush1.msra.mxu0 %v781
        %798 = vmatprep.subr.mxu0 0.0
        %799 = vmatpush1.msra.mxu0 %v782
        %800 = vmatprep.subr.mxu0 0.0
        %801 = vmatpush1.msra.mxu0 %v783
        %802 = vmatprep.subr.mxu0 0.0
        %803 = vmatpush1.msra.mxu0 %v784
        %804 = vmatprep.subr.mxu0 0.0
        %805 = vmatpush1.msra.mxu0 0.0
        %806 = vmatprep.subr.mxu0 0.0
        %807 = vmatpush1.msra.mxu0 0.0
        %808 = vmatprep.subr.mxu0 0.0
        %809 = vmatpush1.msra.mxu0 0.0
        %810 = vmatprep.subr.mxu0 0.0
        %811 = vmatpush1.msra.mxu0 0.0
        %812 = vmatprep.subr.mxu0 0.0
        %813 = vmatpush1.msra.mxu0 0.0
        %814 = vmatprep.subr.mxu0 0.0
        %815 = vmatpush1.msra.mxu0 0.0
        %816 = vmatprep.subr.mxu0 0.0
        %817 = vmatpush1.msra.mxu0 0.0
        %818 = vmatprep.subr.mxu0 0.0
        %819 = vmatpush1.msra.mxu0 0.0
        %820 = vmatprep.subr.mxu0 0.0
        %821 = vmatpush1.msra.mxu0 0.0
        %822 = vmatprep.subr.mxu0 0.0
        %823 = vmatpush1.msra.mxu0 0.0
        %824 = vmatprep.subr.mxu0 0.0
        %825 = vmatpush1.msra.mxu0 0.0
        %826 = vmatprep.subr.mxu0 0.0
        %827 = vmatpush1.msra.mxu0 0.0
        %828 = vmatprep.subr.mxu0 0.0
        %829 = vmatpush1.msra.mxu0 0.0
        %830 = vmatprep.subr.mxu0 0.0
        %831 = vmatpush1.msra.mxu0 0.0
        %832 = vmatprep.subr.mxu0 0.0
        %833 = vmatpush1.msra.mxu0 0.0
        %834 = vmatprep.subr.mxu0 0.0
        %835 = vmatpush1.msra.mxu0 0.0
        %836 = vmatprep.subr.mxu0 0.0
        %837 = vmatpush1.msra.mxu0 0.0
        %838 = vmatprep.subr.mxu0 0.0
        %839 = vmatpush1.msra.mxu0 0.0
        %840 = vmatprep.subr.mxu0 0.0
        %841 = vmatpush1.msra.mxu0 0.0
        %842 = vmatprep.subr.mxu0 0.0
        %843 = vmatpush1.msra.mxu0 0.0
        %844 = vmatprep.subr.mxu0 0.0
        %845 = vmatpush1.msra.mxu0 0.0
        %846 = vmatprep.subr.mxu0 0.0
        %847 = vmatpush1.msra.mxu0 0.0
        %848 = vmatprep.subr.mxu0 0.0
        %849 = vmatpush1.msra.mxu0 0.0
        %850 = vmatprep.subr.mxu0 0.0
        %851 = vmatpush1.msra.mxu0 0.0
        %852 = vmatprep.subr.mxu0 0.0
        %853 = vmatpush1.msra.mxu0 0.0
        %854 = vmatprep.subr.mxu0 0.0
        %855 = vmatpush1.msra.mxu0 0.0
        %856 = vmatprep.subr.mxu0 0.0
        %857 = vmatpush1.msra.mxu0 0.0
        %858 = vmatprep.subr.mxu0 0.0
        %859 = vmatpush1.msra.mxu0 0.0
        %860 = vmatprep.mubr.f32.mxu0 0.0
        %861 = vmatmul.mubr.f32.gmra.mrb[0].mxu0 %v794
        %v862 = vpop.f32.mrb[0].mxu0
        %v863 = vadd.f32 %v790, %v862
        %v864 = vpop.f32.mrb[0].mxu0
        %865 = vdwg.mxu0
        %v866 = vld [vmem:[%s4] sm:$0xff]
        %v867 = vld [vmem:[%s4 + $0x8] sm:$0xff]
        %v868 = vld [vmem:[%s4 + $0x10] sm:$0xff]
        %v869 = vld [vmem:[%s4 + $0x18] sm:$0xff]
        %v870 = vld [vmem:[%s5] sm:$0x1]
        %v871 = vmul.f32 %v863, 0.35355338
        %873 = vrot.lane.b32.xlu0 %v863, 96
        %v874 = vpop.permute.xlu0 %873
        %vm875 = vcmask 64512
        %v877 = vsel %vm875, %v871, 0
        %v879 = vsel %vm875, %v874, 0
        %881 = vmatprep.subr.mxu0 0.0
        %882 = vmatpush1.xpose.msra.mxu0 %v879
        %883 = vmatprep.subr.mxu0 0.0
        %884 = vmatpush1.xpose.msra.mxu0 0.0
        %885 = vmatprep.subr.mxu0 0.0
        %886 = vmatpush1.xpose.msra.mxu0 0.0
        %887 = vmatprep.subr.mxu0 0.0
        %888 = vmatpush1.xpose.msra.mxu0 0.0
        %889 = vmatprep.subr.mxu0 0.0
        %890 = vmatpush1.xpose.msra.mxu0 0.0
        %891 = vmatprep.subr.mxu0 0.0
        %892 = vmatpush1.xpose.msra.mxu0 0.0
        %893 = vmatprep.subr.mxu0 0.0
        %894 = vmatpush1.xpose.msra.mxu0 0.0
        %895 = vmatprep.subr.mxu0 0.0
        %896 = vmatpush1.xpose.msra.mxu0 0.0
        %897 = vmatprep.subr.mxu0 0.0
        %898 = vmatpush1.xpose.msra.mxu0 0.0
        %899 = vmatprep.subr.mxu0 0.0
        %900 = vmatpush1.xpose.msra.mxu0 0.0
        %901 = vmatprep.subr.mxu0 0.0
        %902 = vmatpush1.xpose.msra.mxu0 0.0
        %903 = vmatprep.subr.mxu0 0.0
        %904 = vmatpush1.xpose.msra.mxu0 0.0
        %905 = vmatprep.subr.mxu0 0.0
        %906 = vmatpush1.xpose.msra.mxu0 0.0
        %907 = vmatprep.subr.mxu0 0.0
        %908 = vmatpush1.xpose.msra.mxu0 0.0
        %909 = vmatprep.subr.mxu0 0.0
        %910 = vmatpush1.xpose.msra.mxu0 0.0
        %911 = vmatprep.subr.mxu0 0.0
        %912 = vmatpush1.xpose.msra.mxu0 0.0
        %913 = vmatprep.subr.mxu0 0.0
        %914 = vmatpush1.xpose.msra.mxu0 0.0
        %915 = vmatprep.subr.mxu0 0.0
        %916 = vmatpush1.xpose.msra.mxu0 0.0
        %917 = vmatprep.subr.mxu0 0.0
        %918 = vmatpush1.xpose.msra.mxu0 0.0
        %919 = vmatprep.subr.mxu0 0.0
        %920 = vmatpush1.xpose.msra.mxu0 0.0
        %921 = vmatprep.subr.mxu0 0.0
        %922 = vmatpush1.xpose.msra.mxu0 0.0
        %923 = vmatprep.subr.mxu0 0.0
        %924 = vmatpush1.xpose.msra.mxu0 0.0
        %925 = vmatprep.subr.mxu0 0.0
        %926 = vmatpush1.xpose.msra.mxu0 0.0
        %927 = vmatprep.subr.mxu0 0.0
        %928 = vmatpush1.xpose.msra.mxu0 0.0
        %929 = vmatprep.subr.mxu0 0.0
        %930 = vmatpush1.xpose.msra.mxu0 0.0
        %931 = vmatprep.subr.mxu0 0.0
        %932 = vmatpush1.xpose.msra.mxu0 0.0
        %933 = vmatprep.subr.mxu0 0.0
        %934 = vmatpush1.xpose.msra.mxu0 0.0
        %935 = vmatprep.subr.mxu0 0.0
        %936 = vmatpush1.xpose.msra.mxu0 0.0
        %937 = vmatprep.subr.mxu0 0.0
        %938 = vmatpush1.xpose.msra.mxu0 0.0
        %939 = vmatprep.subr.mxu0 0.0
        %940 = vmatpush1.xpose.msra.mxu0 0.0
        %941 = vmatprep.subr.mxu0 0.0
        %942 = vmatpush1.xpose.msra.mxu0 0.0
        %943 = vmatprep.subr.mxu0 0.0
        %944 = vmatpush1.xpose.msra.mxu0 0.0
        %945 = vmatprep.mubr.f32.mxu0 0.0
        %946 = vmatmul.mubr.f32.gmra.mrb[0].mxu0 %v877
        %v947 = vpop.f32.mrb[0].mxu0
        %v948 = vadd.f32 0.0, %v947
        %v949 = vpop.f32.mrb[0].mxu0
        %950 = vdwg.mxu0
        %v951 = vsel %vm875, %v948, -inf
        %952 = vmax.xlane.f32.xlu0 %v951
        %v953 = vpop.xlane.xlu0 %952
        %v954 = vsub.f32 %v948, %v953
        %v955 = vmul.f32 %v954, 1.442695
        %v956 = vpow.pop %v955
        %v957 = vsel %vm875, %v956, 0.0
        %958 = vadd.xlane.f32.xlu0 %v957
        %v959 = vpop.xlane.xlu0 %958
        %v960 = vrcp.pop %v959
        %v961 = vmul.f32 %v956, %v960
        %962 = vrot.lane.b32.xlu0 %v863, 64
        %v963 = vpop.permute.xlu0 %962
        %v966 = vsel %vm875, %v961, 0
        %968 = vmatprep.subr.mxu0 0.0
        %969 = vmatpush1.msra.mxu0 %v963
        %970 = vmatprep.subr.mxu0 0.0
        %971 = vmatpush1.msra.mxu0 0.0
        %972 = vmatprep.subr.mxu0 0.0
        %973 = vmatpush1.msra.mxu0 0.0
        %974 = vmatprep.subr.mxu0 0.0
        %975 = vmatpush1.msra.mxu0 0.0
        %976 = vmatprep.subr.mxu0 0.0
        %977 = vmatpush1.msra.mxu0 0.0
        %978 = vmatprep.subr.mxu0 0.0
        %979 = vmatpush1.msra.mxu0 0.0
        %980 = vmatprep.subr.mxu0 0.0
        %981 = vmatpush1.msra.mxu0 0.0
        %982 = vmatprep.subr.mxu0 0.0
        %983 = vmatpush1.msra.mxu0 0.0
        %984 = vmatprep.subr.mxu0 0.0
        %985 = vmatpush1.msra.mxu0 0.0
        %986 = vmatprep.subr.mxu0 0.0
        %987 = vmatpush1.msra.mxu0 0.0
        %988 = vmatprep.subr.mxu0 0.0
        %989 = vmatpush1.msra.mxu0 0.0
        %990 = vmatprep.subr.mxu0 0.0
        %991 = vmatpush1.msra.mxu0 0.0
        %992 = vmatprep.subr.mxu0 0.0
        %993 = vmatpush1.msra.mxu0 0.0
        %994 = vmatprep.subr.mxu0 0.0
        %995 = vmatpush1.msra.mxu0 0.0
        %996 = vmatprep.subr.mxu0 0.0
        %997 = vmatpush1.msra.mxu0 0.0
        %998 = vmatprep.subr.mxu0 0.0
        %999 = vmatpush1.msra.mxu0 0.0
        %1000 = vmatprep.subr.mxu0 0.0
        %1001 = vmatpush1.msra.mxu0 0.0
        %1002 = vmatprep.subr.mxu0 0.0
        %1003 = vmatpush1.msra.mxu0 0.0
        %1004 = vmatprep.subr.mxu0 0.0
        %1005 = vmatpush1.msra.mxu0 0.0
        %1006 = vmatprep.subr.mxu0 0.0
        %1007 = vmatpush1.msra.mxu0 0.0
        %1008 = vmatprep.subr.mxu0 0.0
        %1009 = vmatpush1.msra.mxu0 0.0
        %1010 = vmatprep.subr.mxu0 0.0
        %1011 = vmatpush1.msra.mxu0 0.0
        %1012 = vmatprep.subr.mxu0 0.0
        %1013 = vmatpush1.msra.mxu0 0.0
        %1014 = vmatprep.subr.mxu0 0.0
        %1015 = vmatpush1.msra.mxu0 0.0
        %1016 = vmatprep.subr.mxu0 0.0
        %1017 = vmatpush1.msra.mxu0 0.0
        %1018 = vmatprep.subr.mxu0 0.0
        %1019 = vmatpush1.msra.mxu0 0.0
        %1020 = vmatprep.subr.mxu0 0.0
        %1021 = vmatpush1.msra.mxu0 0.0
        %1022 = vmatprep.subr.mxu0 0.0
        %1023 = vmatpush1.msra.mxu0 0.0
        %1024 = vmatprep.subr.mxu0 0.0
        %1025 = vmatpush1.msra.mxu0 0.0
        %1026 = vmatprep.subr.mxu0 0.0
        %1027 = vmatpush1.msra.mxu0 0.0
        %1028 = vmatprep.subr.mxu0 0.0
        %1029 = vmatpush1.msra.mxu0 0.0
        %1030 = vmatprep.subr.mxu0 0.0
        %1031 = vmatpush1.msra.mxu0 0.0
        %1032 = vmatprep.mubr.f32.mxu0 0.0
        %1033 = vmatmul.mubr.f32.gmra.mrb[0].mxu0 %v966
        %v1034 = vpop.f32.mrb[0].mxu0
        %v1035 = vadd.f32 0.0, %v1034
        %v1036 = vpop.f32.mrb[0].mxu0
        %1037 = vdwg.mxu0
        %1038 = vrot.lane.b32.xlu0 %v871, 120
        %v1039 = vpop.permute.xlu0 %1038
        %1040 = vrot.lane.b32.xlu0 %v863, 88
        %v1041 = vpop.permute.xlu0 %1040
        %v1042 = vsel %vm875, %v1039, 0
        %v1044 = vsel %vm875, %v1041, 0
        %1046 = vmatprep.subr.mxu0 0.0
        %1047 = vmatpush1.xpose.msra.mxu0 %v1044
        %1048 = vmatprep.subr.mxu0 0.0
        %1049 = vmatpush1.xpose.msra.mxu0 0.0
        %1050 = vmatprep.subr.mxu0 0.0
        %1051 = vmatpush1.xpose.msra.mxu0 0.0
        %1052 = vmatprep.subr.mxu0 0.0
        %1053 = vmatpush1.xpose.msra.mxu0 0.0
        %1054 = vmatprep.subr.mxu0 0.0
        %1055 = vmatpush1.xpose.msra.mxu0 0.0
        %1056 = vmatprep.subr.mxu0 0.0
        %1057 = vmatpush1.xpose.msra.mxu0 0.0
        %1058 = vmatprep.subr.mxu0 0.0
        %1059 = vmatpush1.xpose.msra.mxu0 0.0
        %1060 = vmatprep.subr.mxu0 0.0
        %1061 = vmatpush1.xpose.msra.mxu0 0.0
        %1062 = vmatprep.subr.mxu0 0.0
        %1063 = vmatpush1.xpose.msra.mxu0 0.0
        %1064 = vmatprep.subr.mxu0 0.0
        %1065 = vmatpush1.xpose.msra.mxu0 0.0
        %1066 = vmatprep.subr.mxu0 0.0
        %1067 = vmatpush1.xpose.msra.mxu0 0.0
        %1068 = vmatprep.subr.mxu0 0.0
        %1069 = vmatpush1.xpose.msra.mxu0 0.0
        %1070 = vmatprep.subr.mxu0 0.0
        %1071 = vmatpush1.xpose.msra.mxu0 0.0
        %1072 = vmatprep.subr.mxu0 0.0
        %1073 = vmatpush1.xpose.msra.mxu0 0.0
        %1074 = vmatprep.subr.mxu0 0.0
        %1075 = vmatpush1.xpose.msra.mxu0 0.0
        %1076 = vmatprep.subr.mxu0 0.0
        %1077 = vmatpush1.xpose.msra.mxu0 0.0
        %1078 = vmatprep.subr.mxu0 0.0
        %1079 = vmatpush1.xpose.msra.mxu0 0.0
        %1080 = vmatprep.subr.mxu0 0.0
        %1081 = vmatpush1.xpose.msra.mxu0 0.0
        %1082 = vmatprep.subr.mxu0 0.0
        %1083 = vmatpush1.xpose.msra.mxu0 0.0
        %1084 = vmatprep.subr.mxu0 0.0
        %1085 = vmatpush1.xpose.msra.mxu0 0.0
        %1086 = vmatprep.subr.mxu0 0.0
        %1087 = vmatpush1.xpose.msra.mxu0 0.0
        %1088 = vmatprep.subr.mxu0 0.0
        %1089 = vmatpush1.xpose.msra.mxu0 0.0
        %1090 = vmatprep.subr.mxu0 0.0
        %1091 = vmatpush1.xpose.msra.mxu0 0.0
        %1092 = vmatprep.subr.mxu0 0.0
        %1093 = vmatpush1.xpose.msra.mxu0 0.0
        %1094 = vmatprep.subr.mxu0 0.0
        %1095 = vmatpush1.xpose.msra.mxu0 0.0
        %1096 = vmatprep.subr.mxu0 0.0
        %1097 = vmatpush1.xpose.msra.mxu0 0.0
        %1098 = vmatprep.subr.mxu0 0.0
        %1099 = vmatpush1.xpose.msra.mxu0 0.0
        %1100 = vmatprep.subr.mxu0 0.0
        %1101 = vmatpush1.xpose.msra.mxu0 0.0
        %1102 = vmatprep.subr.mxu0 0.0
        %1103 = vmatpush1.xpose.msra.mxu0 0.0
        %1104 = vmatprep.subr.mxu0 0.0
        %1105 = vmatpush1.xpose.msra.mxu0 0.0
        %1106 = vmatprep.subr.mxu0 0.0
        %1107 = vmatpush1.xpose.msra.mxu0 0.0
        %1108 = vmatprep.subr.mxu0 0.0
        %1109 = vmatpush1.xpose.msra.mxu0 0.0
        %1110 = vmatprep.mubr.f32.mxu0 0.0
        %1111 = vmatmul.mubr.f32.gmra.mrb[0].mxu0 %v1042
        %v1112 = vpop.f32.mrb[0].mxu0
        %v1113 = vadd.f32 0.0, %v1112
        %v1114 = vpop.f32.mrb[0].mxu0
        %1115 = vdwg.mxu0
        %v1116 = vsel %vm875, %v1113, -inf
        %1117 = vmax.xlane.f32.xlu0 %v1116
        %v1118 = vpop.xlane.xlu0 %1117
        %v1119 = vsub.f32 %v1113, %v1118
        %v1120 = vmul.f32 %v1119, 1.442695
        %v1121 = vpow.pop %v1120
        %v1122 = vsel %vm875, %v1121, 0.0
        %1123 = vadd.xlane.f32.xlu0 %v1122
        %v1124 = vpop.xlane.xlu0 %1123
        %v1125 = vrcp.pop %v1124
        %v1126 = vmul.f32 %v1121, %v1125
        %1127 = vrot.lane.b32.xlu0 %v863, 56
        %v1128 = vpop.permute.xlu0 %1127
        %v1131 = vsel %vm875, %v1126, 0
        %1133 = vmatprep.subr.mxu0 0.0
        %1134 = vmatpush1.msra.mxu0 %v1128
        %1135 = vmatprep.subr.mxu0 0.0
        %1136 = vmatpush1.msra.mxu0 0.0
        %1137 = vmatprep.subr.mxu0 0.0
        %1138 = vmatpush1.msra.mxu0 0.0
        %1139 = vmatprep.subr.mxu0 0.0
        %1140 = vmatpush1.msra.mxu0 0.0
        %1141 = vmatprep.subr.mxu0 0.0
        %1142 = vmatpush1.msra.mxu0 0.0
        %1143 = vmatprep.subr.mxu0 0.0
        %1144 = vmatpush1.msra.mxu0 0.0
        %1145 = vmatprep.subr.mxu0 0.0
        %1146 = vmatpush1.msra.mxu0 0.0
        %1147 = vmatprep.subr.mxu0 0.0
        %1148 = vmatpush1.msra.mxu0 0.0
        %1149 = vmatprep.subr.mxu0 0.0
        %1150 = vmatpush1.msra.mxu0 0.0
        %1151 = vmatprep.subr.mxu0 0.0
        %1152 = vmatpush1.msra.mxu0 0.0
        %1153 = vmatprep.subr.mxu0 0.0
        %1154 = vmatpush1.msra.mxu0 0.0
        %1155 = vmatprep.subr.mxu0 0.0
        %1156 = vmatpush1.msra.mxu0 0.0
        %1157 = vmatprep.subr.mxu0 0.0
        %1158 = vmatpush1.msra.mxu0 0.0
        %1159 = vmatprep.subr.mxu0 0.0
        %1160 = vmatpush1.msra.mxu0 0.0
        %1161 = vmatprep.subr.mxu0 0.0
        %1162 = vmatpush1.msra.mxu0 0.0
        %1163 = vmatprep.subr.mxu0 0.0
        %1164 = vmatpush1.msra.mxu0 0.0
        %1165 = vmatprep.subr.mxu0 0.0
        %1166 = vmatpush1.msra.mxu0 0.0
        %1167 = vmatprep.subr.mxu0 0.0
        %1168 = vmatpush1.msra.mxu0 0.0
        %1169 = vmatprep.subr.mxu0 0.0
        %1170 = vmatpush1.msra.mxu0 0.0
        %1171 = vmatprep.subr.mxu0 0.0
        %1172 = vmatpush1.msra.mxu0 0.0
        %1173 = vmatprep.subr.mxu0 0.0
        %1174 = vmatpush1.msra.mxu0 0.0
        %1175 = vmatprep.subr.mxu0 0.0
        %1176 = vmatpush1.msra.mxu0 0.0
        %1177 = vmatprep.subr.mxu0 0.0
        %1178 = vmatpush1.msra.mxu0 0.0
        %1179 = vmatprep.subr.mxu0 0.0
        %1180 = vmatpush1.msra.mxu0 0.0
        %1181 = vmatprep.subr.mxu0 0.0
        %1182 = vmatpush1.msra.mxu0 0.0
        %1183 = vmatprep.subr.mxu0 0.0
        %1184 = vmatpush1.msra.mxu0 0.0
        %1185 = vmatprep.subr.mxu0 0.0
        %1186 = vmatpush1.msra.mxu0 0.0
        %1187 = vmatprep.subr.mxu0 0.0
        %1188 = vmatpush1.msra.mxu0 0.0
        %1189 = vmatprep.subr.mxu0 0.0
        %1190 = vmatpush1.msra.mxu0 0.0
        %1191 = vmatprep.subr.mxu0 0.0
        %1192 = vmatpush1.msra.mxu0 0.0
        %1193 = vmatprep.subr.mxu0 0.0
        %1194 = vmatpush1.msra.mxu0 0.0
        %1195 = vmatprep.subr.mxu0 0.0
        %1196 = vmatpush1.msra.mxu0 0.0
        %1197 = vmatprep.mubr.f32.mxu0 0.0
        %1198 = vmatmul.mubr.f32.gmra.mrb[0].mxu0 %v1131
        %v1199 = vpop.f32.mrb[0].mxu0
        %v1200 = vadd.f32 0.0, %v1199
        %v1201 = vpop.f32.mrb[0].mxu0
        %1202 = vdwg.mxu0
        %1203 = vrot.lane.b32.xlu0 %v871, 112
        %v1204 = vpop.permute.xlu0 %1203
        %1205 = vrot.lane.b32.xlu0 %v863, 80
        %v1206 = vpop.permute.xlu0 %1205
        %v1207 = vsel %vm875, %v1204, 0
        %v1209 = vsel %vm875, %v1206, 0
        %1211 = vmatprep.subr.mxu0 0.0
        %1212 = vmatpush1.xpose.msra.mxu0 %v1209
        %1213 = vmatprep.subr.mxu0 0.0
        %1214 = vmatpush1.xpose.msra.mxu0 0.0
        %1215 = vmatprep.subr.mxu0 0.0
        %1216 = vmatpush1.xpose.msra.mxu0 0.0
        %1217 = vmatprep.subr.mxu0 0.0
        %1218 = vmatpush1.xpose.msra.mxu0 0.0
        %1219 = vmatprep.subr.mxu0 0.0
        %1220 = vmatpush1.xpose.msra.mxu0 0.0
        %1221 = vmatprep.subr.mxu0 0.0
        %1222 = vmatpush1.xpose.msra.mxu0 0.0
        %1223 = vmatprep.subr.mxu0 0.0
        %1224 = vmatpush1.xpose.msra.mxu0 0.0
        %1225 = vmatprep.subr.mxu0 0.0
        %1226 = vmatpush1.xpose.msra.mxu0 0.0
        %1227 = vmatprep.subr.mxu0 0.0
        %1228 = vmatpush1.xpose.msra.mxu0 0.0
        %1229 = vmatprep.subr.mxu0 0.0
        %1230 = vmatpush1.xpose.msra.mxu0 0.0
        %1231 = vmatprep.subr.mxu0 0.0
        %1232 = vmatpush1.xpose.msra.mxu0 0.0
        %1233 = vmatprep.subr.mxu0 0.0
        %1234 = vmatpush1.xpose.msra.mxu0 0.0
        %1235 = vmatprep.subr.mxu0 0.0
        %1236 = vmatpush1.xpose.msra.mxu0 0.0
        %1237 = vmatprep.subr.mxu0 0.0
        %1238 = vmatpush1.xpose.msra.mxu0 0.0
        %1239 = vmatprep.subr.mxu0 0.0
        %1240 = vmatpush1.xpose.msra.mxu0 0.0
        %1241 = vmatprep.subr.mxu0 0.0
        %1242 = vmatpush1.xpose.msra.mxu0 0.0
        %1243 = vmatprep.subr.mxu0 0.0
        %1244 = vmatpush1.xpose.msra.mxu0 0.0
        %1245 = vmatprep.subr.mxu0 0.0
        %1246 = vmatpush1.xpose.msra.mxu0 0.0
        %1247 = vmatprep.subr.mxu0 0.0
        %1248 = vmatpush1.xpose.msra.mxu0 0.0
        %1249 = vmatprep.subr.mxu0 0.0
        %1250 = vmatpush1.xpose.msra.mxu0 0.0
        %1251 = vmatprep.subr.mxu0 0.0
        %1252 = vmatpush1.xpose.msra.mxu0 0.0
        %1253 = vmatprep.subr.mxu0 0.0
        %1254 = vmatpush1.xpose.msra.mxu0 0.0
        %1255 = vmatprep.subr.mxu0 0.0
        %1256 = vmatpush1.xpose.msra.mxu0 0.0
        %1257 = vmatprep.subr.mxu0 0.0
        %1258 = vmatpush1.xpose.msra.mxu0 0.0
        %1259 = vmatprep.subr.mxu0 0.0
        %1260 = vmatpush1.xpose.msra.mxu0 0.0
        %1261 = vmatprep.subr.mxu0 0.0
        %1262 = vmatpush1.xpose.msra.mxu0 0.0
        %1263 = vmatprep.subr.mxu0 0.0
        %1264 = vmatpush1.xpose.msra.mxu0 0.0
        %1265 = vmatprep.subr.mxu0 0.0
        %1266 = vmatpush1.xpose.msra.mxu0 0.0
        %1267 = vmatprep.subr.mxu0 0.0
        %1268 = vmatpush1.xpose.msra.mxu0 0.0
        %1269 = vmatprep.subr.mxu0 0.0
        %1270 = vmatpush1.xpose.msra.mxu0 0.0
        %1271 = vmatprep.subr.mxu0 0.0
        %1272 = vmatpush1.xpose.msra.mxu0 0.0
        %1273 = vmatprep.subr.mxu0 0.0
        %1274 = vmatpush1.xpose.msra.mxu0 0.0
        %1275 = vmatprep.mubr.f32.mxu0 0.0
        %1276 = vmatmul.mubr.f32.gmra.mrb[0].mxu0 %v1207
        %v1277 = vpop.f32.mrb[0].mxu0
        %v1278 = vadd.f32 0.0, %v1277
        %v1279 = vpop.f32.mrb[0].mxu0
        %1280 = vdwg.mxu0
        %v1281 = vsel %vm875, %v1278, -inf
        %1282 = vmax.xlane.f32.xlu0 %v1281
        %v1283 = vpop.xlane.xlu0 %1282
        %v1284 = vsub.f32 %v1278, %v1283
        %v1285 = vmul.f32 %v1284, 1.442695
        %v1286 = vpow.pop %v1285
        %v1287 = vsel %vm875, %v1286, 0.0
        %1288 = vadd.xlane.f32.xlu0 %v1287
        %v1289 = vpop.xlane.xlu0 %1288
        %v1290 = vrcp.pop %v1289
        %v1291 = vmul.f32 %v1286, %v1290
        %1292 = vrot.lane.b32.xlu0 %v863, 48
        %v1293 = vpop.permute.xlu0 %1292
        %v1296 = vsel %vm875, %v1291, 0
        %1298 = vmatprep.subr.mxu0 0.0
        %1299 = vmatpush1.msra.mxu0 %v1293
        %1300 = vmatprep.subr.mxu0 0.0
        %1301 = vmatpush1.msra.mxu0 0.0
        %1302 = vmatprep.subr.mxu0 0.0
        %1303 = vmatpush1.msra.mxu0 0.0
        %1304 = vmatprep.subr.mxu0 0.0
        %1305 = vmatpush1.msra.mxu0 0.0
        %1306 = vmatprep.subr.mxu0 0.0
        %1307 = vmatpush1.msra.mxu0 0.0
        %1308 = vmatprep.subr.mxu0 0.0
        %1309 = vmatpush1.msra.mxu0 0.0
        %1310 = vmatprep.subr.mxu0 0.0
        %1311 = vmatpush1.msra.mxu0 0.0
        %1312 = vmatprep.subr.mxu0 0.0
        %1313 = vmatpush1.msra.mxu0 0.0
        %1314 = vmatprep.subr.mxu0 0.0
        %1315 = vmatpush1.msra.mxu0 0.0
        %1316 = vmatprep.subr.mxu0 0.0
        %1317 = vmatpush1.msra.mxu0 0.0
        %1318 = vmatprep.subr.mxu0 0.0
        %1319 = vmatpush1.msra.mxu0 0.0
        %1320 = vmatprep.subr.mxu0 0.0
        %1321 = vmatpush1.msra.mxu0 0.0
        %1322 = vmatprep.subr.mxu0 0.0
        %1323 = vmatpush1.msra.mxu0 0.0
        %1324 = vmatprep.subr.mxu0 0.0
        %1325 = vmatpush1.msra.mxu0 0.0
        %1326 = vmatprep.subr.mxu0 0.0
        %1327 = vmatpush1.msra.mxu0 0.0
        %1328 = vmatprep.subr.mxu0 0.0
        %1329 = vmatpush1.msra.mxu0 0.0
        %1330 = vmatprep.subr.mxu0 0.0
        %1331 = vmatpush1.msra.mxu0 0.0
        %1332 = vmatprep.subr.mxu0 0.0
        %1333 = vmatpush1.msra.mxu0 0.0
        %1334 = vmatprep.subr.mxu0 0.0
        %1335 = vmatpush1.msra.mxu0 0.0
        %1336 = vmatprep.subr.mxu0 0.0
        %1337 = vmatpush1.msra.mxu0 0.0
        %1338 = vmatprep.subr.mxu0 0.0
        %1339 = vmatpush1.msra.mxu0 0.0
        %1340 = vmatprep.subr.mxu0 0.0
        %1341 = vmatpush1.msra.mxu0 0.0
        %1342 = vmatprep.subr.mxu0 0.0
        %1343 = vmatpush1.msra.mxu0 0.0
        %1344 = vmatprep.subr.mxu0 0.0
        %1345 = vmatpush1.msra.mxu0 0.0
        %1346 = vmatprep.subr.mxu0 0.0
        %1347 = vmatpush1.msra.mxu0 0.0
        %1348 = vmatprep.subr.mxu0 0.0
        %1349 = vmatpush1.msra.mxu0 0.0
        %1350 = vmatprep.subr.mxu0 0.0
        %1351 = vmatpush1.msra.mxu0 0.0
        %1352 = vmatprep.subr.mxu0 0.0
        %1353 = vmatpush1.msra.mxu0 0.0
        %1354 = vmatprep.subr.mxu0 0.0
        %1355 = vmatpush1.msra.mxu0 0.0
        %1356 = vmatprep.subr.mxu0 0.0
        %1357 = vmatpush1.msra.mxu0 0.0
        %1358 = vmatprep.subr.mxu0 0.0
        %1359 = vmatpush1.msra.mxu0 0.0
        %1360 = vmatprep.subr.mxu0 0.0
        %1361 = vmatpush1.msra.mxu0 0.0
        %1362 = vmatprep.mubr.f32.mxu0 0.0
        %1363 = vmatmul.mubr.f32.gmra.mrb[0].mxu0 %v1296
        %v1364 = vpop.f32.mrb[0].mxu0
        %v1365 = vadd.f32 0.0, %v1364
        %v1366 = vpop.f32.mrb[0].mxu0
        %1367 = vdwg.mxu0
        %1368 = vrot.lane.b32.xlu0 %v871, 104
        %v1369 = vpop.permute.xlu0 %1368
        %1370 = vrot.lane.b32.xlu0 %v863, 72
        %v1371 = vpop.permute.xlu0 %1370
        %v1372 = vsel %vm875, %v1369, 0
        %v1374 = vsel %vm875, %v1371, 0
        %1376 = vmatprep.subr.mxu0 0.0
        %1377 = vmatpush1.xpose.msra.mxu0 %v1374
        %1378 = vmatprep.subr.mxu0 0.0
        %1379 = vmatpush1.xpose.msra.mxu0 0.0
        %1380 = vmatprep.subr.mxu0 0.0
        %1381 = vmatpush1.xpose.msra.mxu0 0.0
        %1382 = vmatprep.subr.mxu0 0.0
        %1383 = vmatpush1.xpose.msra.mxu0 0.0
        %1384 = vmatprep.subr.mxu0 0.0
        %1385 = vmatpush1.xpose.msra.mxu0 0.0
        %1386 = vmatprep.subr.mxu0 0.0
        %1387 = vmatpush1.xpose.msra.mxu0 0.0
        %1388 = vmatprep.subr.mxu0 0.0
        %1389 = vmatpush1.xpose.msra.mxu0 0.0
        %1390 = vmatprep.subr.mxu0 0.0
        %1391 = vmatpush1.xpose.msra.mxu0 0.0
        %1392 = vmatprep.subr.mxu0 0.0
        %1393 = vmatpush1.xpose.msra.mxu0 0.0
        %1394 = vmatprep.subr.mxu0 0.0
        %1395 = vmatpush1.xpose.msra.mxu0 0.0
        %1396 = vmatprep.subr.mxu0 0.0
        %1397 = vmatpush1.xpose.msra.mxu0 0.0
        %1398 = vmatprep.subr.mxu0 0.0
        %1399 = vmatpush1.xpose.msra.mxu0 0.0
        %1400 = vmatprep.subr.mxu0 0.0
        %1401 = vmatpush1.xpose.msra.mxu0 0.0
        %1402 = vmatprep.subr.mxu0 0.0
        %1403 = vmatpush1.xpose.msra.mxu0 0.0
        %1404 = vmatprep.subr.mxu0 0.0
        %1405 = vmatpush1.xpose.msra.mxu0 0.0
        %1406 = vmatprep.subr.mxu0 0.0
        %1407 = vmatpush1.xpose.msra.mxu0 0.0
        %1408 = vmatprep.subr.mxu0 0.0
        %1409 = vmatpush1.xpose.msra.mxu0 0.0
        %1410 = vmatprep.subr.mxu0 0.0
        %1411 = vmatpush1.xpose.msra.mxu0 0.0
        %1412 = vmatprep.subr.mxu0 0.0
        %1413 = vmatpush1.xpose.msra.mxu0 0.0
        %1414 = vmatprep.subr.mxu0 0.0
        %1415 = vmatpush1.xpose.msra.mxu0 0.0
        %1416 = vmatprep.subr.mxu0 0.0
        %1417 = vmatpush1.xpose.msra.mxu0 0.0
        %1418 = vmatprep.subr.mxu0 0.0
        %1419 = vmatpush1.xpose.msra.mxu0 0.0
        %1420 = vmatprep.subr.mxu0 0.0
        %1421 = vmatpush1.xpose.msra.mxu0 0.0
        %1422 = vmatprep.subr.mxu0 0.0
        %1423 = vmatpush1.xpose.msra.mxu0 0.0
        %1424 = vmatprep.subr.mxu0 0.0
        %1425 = vmatpush1.xpose.msra.mxu0 0.0
        %1426 = vmatprep.subr.mxu0 0.0
        %1427 = vmatpush1.xpose.msra.mxu0 0.0
        %1428 = vmatprep.subr.mxu0 0.0
        %1429 = vmatpush1.xpose.msra.mxu0 0.0
        %1430 = vmatprep.subr.mxu0 0.0
        %1431 = vmatpush1.xpose.msra.mxu0 0.0
        %1432 = vmatprep.subr.mxu0 0.0
        %1433 = vmatpush1.xpose.msra.mxu0 0.0
        %1434 = vmatprep.subr.mxu0 0.0
        %1435 = vmatpush1.xpose.msra.mxu0 0.0
        %1436 = vmatprep.subr.mxu0 0.0
        %1437 = vmatpush1.xpose.msra.mxu0 0.0
        %1438 = vmatprep.subr.mxu0 0.0
        %1439 = vmatpush1.xpose.msra.mxu0 0.0
        %1440 = vmatprep.mubr.f32.mxu0 0.0
        %1441 = vmatmul.mubr.f32.gmra.mrb[0].mxu0 %v1372
        %v1442 = vpop.f32.mrb[0].mxu0
        %v1443 = vadd.f32 0.0, %v1442
        %v1444 = vpop.f32.mrb[0].mxu0
        %1445 = vdwg.mxu0
        %v1446 = vsel %vm875, %v1443, -inf
        %1447 = vmax.xlane.f32.xlu0 %v1446
        %v1448 = vpop.xlane.xlu0 %1447
        %v1449 = vsub.f32 %v1443, %v1448
        %v1450 = vmul.f32 %v1449, 1.442695
        %v1451 = vpow.pop %v1450
        %v1452 = vsel %vm875, %v1451, 0.0
        %1453 = vadd.xlane.f32.xlu0 %v1452
        %v1454 = vpop.xlane.xlu0 %1453
        %v1455 = vrcp.pop %v1454
        %v1456 = vmul.f32 %v1451, %v1455
        %1457 = vrot.lane.b32.xlu0 %v863, 40
        %v1458 = vpop.permute.xlu0 %1457
        %v1461 = vsel %vm875, %v1456, 0
        %1463 = vmatprep.subr.mxu0 0.0
        %1464 = vmatpush1.msra.mxu0 %v1458
        %1465 = vmatprep.subr.mxu0 0.0
        %1466 = vmatpush1.msra.mxu0 0.0
        %1467 = vmatprep.subr.mxu0 0.0
        %1468 = vmatpush1.msra.mxu0 0.0
        %1469 = vmatprep.subr.mxu0 0.0
        %1470 = vmatpush1.msra.mxu0 0.0
        %1471 = vmatprep.subr.mxu0 0.0
        %1472 = vmatpush1.msra.mxu0 0.0
        %1473 = vmatprep.subr.mxu0 0.0
        %1474 = vmatpush1.msra.mxu0 0.0
        %1475 = vmatprep.subr.mxu0 0.0
        %1476 = vmatpush1.msra.mxu0 0.0
        %1477 = vmatprep.subr.mxu0 0.0
        %1478 = vmatpush1.msra.mxu0 0.0
        %1479 = vmatprep.subr.mxu0 0.0
        %1480 = vmatpush1.msra.mxu0 0.0
        %1481 = vmatprep.subr.mxu0 0.0
        %1482 = vmatpush1.msra.mxu0 0.0
        %1483 = vmatprep.subr.mxu0 0.0
        %1484 = vmatpush1.msra.mxu0 0.0
        %1485 = vmatprep.subr.mxu0 0.0
        %1486 = vmatpush1.msra.mxu0 0.0
        %1487 = vmatprep.subr.mxu0 0.0
        %1488 = vmatpush1.msra.mxu0 0.0
        %1489 = vmatprep.subr.mxu0 0.0
        %1490 = vmatpush1.msra.mxu0 0.0
        %1491 = vmatprep.subr.mxu0 0.0
        %1492 = vmatpush1.msra.mxu0 0.0
        %1493 = vmatprep.subr.mxu0 0.0
        %1494 = vmatpush1.msra.mxu0 0.0
        %1495 = vmatprep.subr.mxu0 0.0
        %1496 = vmatpush1.msra.mxu0 0.0
        %1497 = vmatprep.subr.mxu0 0.0
        %1498 = vmatpush1.msra.mxu0 0.0
        %1499 = vmatprep.subr.mxu0 0.0
        %1500 = vmatpush1.msra.mxu0 0.0
        %1501 = vmatprep.subr.mxu0 0.0
        %1502 = vmatpush1.msra.mxu0 0.0
        %1503 = vmatprep.subr.mxu0 0.0
        %1504 = vmatpush1.msra.mxu0 0.0
        %1505 = vmatprep.subr.mxu0 0.0
        %1506 = vmatpush1.msra.mxu0 0.0
        %1507 = vmatprep.subr.mxu0 0.0
        %1508 = vmatpush1.msra.mxu0 0.0
        %1509 = vmatprep.subr.mxu0 0.0
        %1510 = vmatpush1.msra.mxu0 0.0
        %1511 = vmatprep.subr.mxu0 0.0
        %1512 = vmatpush1.msra.mxu0 0.0
        %1513 = vmatprep.subr.mxu0 0.0
        %1514 = vmatpush1.msra.mxu0 0.0
        %1515 = vmatprep.subr.mxu0 0.0
        %1516 = vmatpush1.msra.mxu0 0.0
        %1517 = vmatprep.subr.mxu0 0.0
        %1518 = vmatpush1.msra.mxu0 0.0
        %1519 = vmatprep.subr.mxu0 0.0
        %1520 = vmatpush1.msra.mxu0 0.0
        %1521 = vmatprep.subr.mxu0 0.0
        %1522 = vmatpush1.msra.mxu0 0.0
        %1523 = vmatprep.subr.mxu0 0.0
        %1524 = vmatpush1.msra.mxu0 0.0
        %1525 = vmatprep.subr.mxu0 0.0
        %1526 = vmatpush1.msra.mxu0 0.0
        %1527 = vmatprep.mubr.f32.mxu0 0.0
        %1528 = vmatmul.mubr.f32.gmra.mrb[0].mxu0 %v1461
        %v1529 = vpop.f32.mrb[0].mxu0
        %v1530 = vadd.f32 0.0, %v1529
        %v1531 = vpop.f32.mrb[0].mxu0
        %1532 = vdwg.mxu0
        %1534 = vrot.lane.b32.xlu0 %v1200, 8
        %v1535 = vpop.permute.xlu0 %1534
        %1538 = vrot.lane.b32.xlu0 %v1365, 16
        %v1539 = vpop.permute.xlu0 %1538
        %1542 = vrot.lane.b32.xlu0 %v1530, 24
        %v1543 = vpop.permute.xlu0 %1542
        %v1545 = vsel %vm875, %v1035, %v1535
        %vm1546 = vcmask 130048
        %v1547 = vsel %vm1546, %v1545, %v1539
        %vm1548 = vcmask 195584
        %v1549 = vsel %vm1548, %v1547, %v1543
        %v1551 = vlaneseq
        %v1552 = vshrl.u32 %v1551, 7
        %v1553 = vsub.s32 0, %v1552
        %v1554 = vrot.slane %v870, %v1553
        %v1557 = vsel %vm792, %v1549, 0
        %1559 = vmatprep.subr.mxu0 0.0
        %1560 = vmatpush1.msra.mxu0 %v866
        %1561 = vmatprep.subr.mxu0 0.0
        %1562 = vmatpush1.msra.mxu0 %v867
        %1563 = vmatprep.subr.mxu0 0.0
        %1564 = vmatpush1.msra.mxu0 %v868
        %1565 = vmatprep.subr.mxu0 0.0
        %1566 = vmatpush1.msra.mxu0 %v869
        %1567 = vmatprep.subr.mxu0 0.0
        %1568 = vmatpush1.msra.mxu0 0.0
        %1569 = vmatprep.subr.mxu0 0.0
        %1570 = vmatpush1.msra.mxu0 0.0
        %1571 = vmatprep.subr.mxu0 0.0
        %1572 = vmatpush1.msra.mxu0 0.0
        %1573 = vmatprep.subr.mxu0 0.0
        %1574 = vmatpush1.msra.mxu0 0.0
        %1575 = vmatprep.subr.mxu0 0.0
        %1576 = vmatpush1.msra.mxu0 0.0
        %1577 = vmatprep.subr.mxu0 0.0
        %1578 = vmatpush1.msra.mxu0 0.0
        %1579 = vmatprep.subr.mxu0 0.0
        %1580 = vmatpush1.msra.mxu0 0.0
        %1581 = vmatprep.subr.mxu0 0.0
        %1582 = vmatpush1.msra.mxu0 0.0
        %1583 = vmatprep.subr.mxu0 0.0
        %1584 = vmatpush1.msra.mxu0 0.0
        %1585 = vmatprep.subr.mxu0 0.0
        %1586 = vmatpush1.msra.mxu0 0.0
        %1587 = vmatprep.subr.mxu0 0.0
        %1588 = vmatpush1.msra.mxu0 0.0
        %1589 = vmatprep.subr.mxu0 0.0
        %1590 = vmatpush1.msra.mxu0 0.0
        %1591 = vmatprep.subr.mxu0 0.0
        %1592 = vmatpush1.msra.mxu0 0.0
        %1593 = vmatprep.subr.mxu0 0.0
        %1594 = vmatpush1.msra.mxu0 0.0
        %1595 = vmatprep.subr.mxu0 0.0
        %1596 = vmatpush1.msra.mxu0 0.0
        %1597 = vmatprep.subr.mxu0 0.0
        %1598 = vmatpush1.msra.mxu0 0.0
        %1599 = vmatprep.subr.mxu0 0.0
        %1600 = vmatpush1.msra.mxu0 0.0
        %1601 = vmatprep.subr.mxu0 0.0
        %1602 = vmatpush1.msra.mxu0 0.0
        %1603 = vmatprep.subr.mxu0 0.0
        %1604 = vmatpush1.msra.mxu0 0.0
        %1605 = vmatprep.subr.mxu0 0.0
        %1606 = vmatpush1.msra.mxu0 0.0
        %1607 = vmatprep.subr.mxu0 0.0
        %1608 = vmatpush1.msra.mxu0 0.0
        %1609 = vmatprep.subr.mxu0 0.0
        %1610 = vmatpush1.msra.mxu0 0.0
        %1611 = vmatprep.subr.mxu0 0.0
        %1612 = vmatpush1.msra.mxu0 0.0
        %1613 = vmatprep.subr.mxu0 0.0
        %1614 = vmatpush1.msra.mxu0 0.0
        %1615 = vmatprep.subr.mxu0 0.0
        %1616 = vmatpush1.msra.mxu0 0.0
        %1617 = vmatprep.subr.mxu0 0.0
        %1618 = vmatpush1.msra.mxu0 0.0
        %1619 = vmatprep.subr.mxu0 0.0
        %1620 = vmatpush1.msra.mxu0 0.0
        %1621 = vmatprep.subr.mxu0 0.0
        %1622 = vmatpush1.msra.mxu0 0.0
        %1623 = vmatprep.mubr.f32.mxu0 0.0
        %1624 = vmatmul.mubr.f32.gmra.mrb[0].mxu0 %v1557
        %v1625 = vpop.f32.mrb[0].mxu0
        %v1626 = vadd.f32 %v1554, %v1625
        %v1627 = vpop.f32.mrb[0].mxu0
        %1628 = vdwg.mxu0
        %v1629 = vadd.f32 %v779, %v1626
        %v1630 = vld [vmem:[%s16] sm:$0x1]
        %v1631 = vld [vmem:[%s17] sm:$0x1]
        %v1632 = vsel %vm792, %v1629, 0.0
        %1633 = vadd.xlane.f32.xlu0 %v1632
        %v1634 = vpop.xlane.xlu0 %1633
        %v1635 = vrcp.pop 32.0
        %v1636 = vmul.f32 %v1634, %v1635
        %v1637 = vsub.f32 %v1629, %v1636
        %v1638 = vmul.f32 %v1637, %v1637
        %v1639 = vsel %vm792, %v1638, 0.0
        %1640 = vadd.xlane.f32.xlu0 %v1639
        %v1641 = vpop.xlane.xlu0 %1640
        %v1642 = vmul.f32 %v1641, %v1635
        %v1643 = vadd.f32 %v1642, 1e-05
        %v1644 = vrsqrt.pop %v1643
        %v1645 = vmul.f32 %v1637, %v1644
        %v1647 = vlaneseq
        %v1648 = vshrl.u32 %v1647, 7
        %v1649 = vsub.s32 0, %v1648
        %v1650 = vrot.slane %v1630, %v1649
        %v1652 = vmul.f32 %v1645, %v1650
        %v1654 = vlaneseq
        %v1655 = vshrl.u32 %v1654, 7
        %v1656 = vsub.s32 0, %v1655
        %v1657 = vrot.slane %v1631, %v1656
        %v1659 = vadd.f32 %v1652, %v1657
        %v1660 = vld [vmem:[%s6] sm:$0xff]
        %v1661 = vld [vmem:[%s6 + $0x8] sm:$0xff]
        %v1662 = vld [vmem:[%s6 + $0x10] sm:$0xff]
        %v1663 = vld [vmem:[%s6 + $0x18] sm:$0xff]
        %v1664 = vld [vmem:[%s7] sm:$0x1]
        %v1666 = vlaneseq
        %v1667 = vshrl.u32 %v1666, 7
        %v1668 = vsub.s32 0, %v1667
        %v1669 = vrot.slane %v1664, %v1668
        %v1672 = vsel %vm792, %v1659, 0
        %1674 = vmatprep.subr.mxu0 0.0
        %1675 = vmatpush1.msra.mxu0 %v1660
        %1676 = vmatprep.subr.mxu0 0.0
        %1677 = vmatpush1.msra.mxu0 %v1661
        %1678 = vmatprep.subr.mxu0 0.0
        %1679 = vmatpush1.msra.mxu0 %v1662
        %1680 = vmatprep.subr.mxu0 0.0
        %1681 = vmatpush1.msra.mxu0 %v1663
        %1682 = vmatprep.subr.mxu0 0.0
        %1683 = vmatpush1.msra.mxu0 0.0
        %1684 = vmatprep.subr.mxu0 0.0
        %1685 = vmatpush1.msra.mxu0 0.0
        %1686 = vmatprep.subr.mxu0 0.0
        %1687 = vmatpush1.msra.mxu0 0.0
        %1688 = vmatprep.subr.mxu0 0.0
        %1689 = vmatpush1.msra.mxu0 0.0
        %1690 = vmatprep.subr.mxu0 0.0
        %1691 = vmatpush1.msra.mxu0 0.0
        %1692 = vmatprep.subr.mxu0 0.0
        %1693 = vmatpush1.msra.mxu0 0.0
        %1694 = vmatprep.subr.mxu0 0.0
        %1695 = vmatpush1.msra.mxu0 0.0
        %1696 = vmatprep.subr.mxu0 0.0
        %1697 = vmatpush1.msra.mxu0 0.0
        %1698 = vmatprep.subr.mxu0 0.0
        %1699 = vmatpush1.msra.mxu0 0.0
        %1700 = vmatprep.subr.mxu0 0.0
        %1701 = vmatpush1.msra.mxu0 0.0
        %1702 = vmatprep.subr.mxu0 0.0
        %1703 = vmatpush1.msra.mxu0 0.0
        %1704 = vmatprep.subr.mxu0 0.0
        %1705 = vmatpush1.msra.mxu0 0.0
        %1706 = vmatprep.subr.mxu0 0.0
        %1707 = vmatpush1.msra.mxu0 0.0
        %1708 = vmatprep.subr.mxu0 0.0
        %1709 = vmatpush1.msra.mxu0 0.0
        %1710 = vmatprep.subr.mxu0 0.0
        %1711 = vmatpush1.msra.mxu0 0.0
        %1712 = vmatprep.subr.mxu0 0.0
        %1713 = vmatpush1.msra.mxu0 0.0
        %1714 = vmatprep.subr.mxu0 0.0
        %1715 = vmatpush1.msra.mxu0 0.0
        %1716 = vmatprep.subr.mxu0 0.0
        %1717 = vmatpush1.msra.mxu0 0.0
        %1718 = vmatprep.subr.mxu0 0.0
        %1719 = vmatpush1.msra.mxu0 0.0
        %1720 = vmatprep.subr.mxu0 0.0
        %1721 = vmatpush1.msra.mxu0 0.0
        %1722 = vmatprep.subr.mxu0 0.0
        %1723 = vmatpush1.msra.mxu0 0.0
        %1724 = vmatprep.subr.mxu0 0.0
        %1725 = vmatpush1.msra.mxu0 0.0
        %1726 = vmatprep.subr.mxu0 0.0
        %1727 = vmatpush1.msra.mxu0 0.0
        %1728 = vmatprep.subr.mxu0 0.0
        %1729 = vmatpush1.msra.mxu0 0.0
        %1730 = vmatprep.subr.mxu0 0.0
        %1731 = vmatpush1.msra.mxu0 0.0
        %1732 = vmatprep.subr.mxu0 0.0
        %1733 = vmatpush1.msra.mxu0 0.0
        %1734 = vmatprep.subr.mxu0 0.0
        %1735 = vmatpush1.msra.mxu0 0.0
        %1736 = vmatprep.subr.mxu0 0.0
        %1737 = vmatpush1.msra.mxu0 0.0
        %1738 = vmatprep.mubr.f32.mxu0 0.0
        %1739 = vmatmul.mubr.f32.gmra.mrb[0].mxu0 %v1672
        %v1740 = vpop.f32.mrb[0].mxu0
        %v1741 = vadd.f32 %v1669, %v1740
        %v1742 = vpop.f32.mrb[0].mxu0
        %1743 = vdwg.mxu0
        %v1744 = vld [vmem:[#allocation7] sm:$0xff]
        %v1745 = vld [vmem:[#allocation7 + $0x8] sm:$0xff]
        %v1746 = vld [vmem:[#allocation7 + $0x10] sm:$0xff]
        %v1747 = vld [vmem:[#allocation7 + $0x18] sm:$0xff]
        %v1748 = vld [vmem:[%s9] sm:$0x1]
        %v1750 = vlaneseq
        %v1751 = vshrl.u32 %v1750, 7
        %v1752 = vsub.s32 0, %v1751
        %v1753 = vrot.slane %v1748, %v1752
        %v1756 = vsel %vm792, %v780, 0
        %1758 = vmatprep.subr.mxu0 0.0
        %1759 = vmatpush1.msra.mxu0 %v1744
        %1760 = vmatprep.subr.mxu0 0.0
        %1761 = vmatpush1.msra.mxu0 %v1745
        %1762 = vmatprep.subr.mxu0 0.0
        %1763 = vmatpush1.msra.mxu0 %v1746
        %1764 = vmatprep.subr.mxu0 0.0
        %1765 = vmatpush1.msra.mxu0 %v1747
        %1766 = vmatprep.subr.mxu0 0.0
        %1767 = vmatpush1.msra.mxu0 0.0
        %1768 = vmatprep.subr.mxu0 0.0
        %1769 = vmatpush1.msra.mxu0 0.0
        %1770 = vmatprep.subr.mxu0 0.0
        %1771 = vmatpush1.msra.mxu0 0.0
        %1772 = vmatprep.subr.mxu0 0.0
        %1773 = vmatpush1.msra.mxu0 0.0
        %1774 = vmatprep.subr.mxu0 0.0
        %1775 = vmatpush1.msra.mxu0 0.0
        %1776 = vmatprep.subr.mxu0 0.0
        %1777 = vmatpush1.msra.mxu0 0.0
        %1778 = vmatprep.subr.mxu0 0.0
        %1779 = vmatpush1.msra.mxu0 0.0
        %1780 = vmatprep.subr.mxu0 0.0
        %1781 = vmatpush1.msra.mxu0 0.0
        %1782 = vmatprep.subr.mxu0 0.0
        %1783 = vmatpush1.msra.mxu0 0.0
        %1784 = vmatprep.subr.mxu0 0.0
        %1785 = vmatpush1.msra.mxu0 0.0
        %1786 = vmatprep.subr.mxu0 0.0
        %1787 = vmatpush1.msra.mxu0 0.0
        %1788 = vmatprep.subr.mxu0 0.0
        %1789 = vmatpush1.msra.mxu0 0.0
        %1790 = vmatprep.subr.mxu0 0.0
        %1791 = vmatpush1.msra.mxu0 0.0
        %1792 = vmatprep.subr.mxu0 0.0
        %1793 = vmatpush1.msra.mxu0 0.0
        %1794 = vmatprep.subr.mxu0 0.0
        %1795 = vmatpush1.msra.mxu0 0.0
        %1796 = vmatprep.subr.mxu0 0.0
        %1797 = vmatpush1.msra.mxu0 0.0
        %1798 = vmatprep.subr.mxu0 0.0
        %1799 = vmatpush1.msra.mxu0 0.0
        %1800 = vmatprep.subr.mxu0 0.0
        %1801 = vmatpush1.msra.mxu0 0.0
        %1802 = vmatprep.subr.mxu0 0.0
        %1803 = vmatpush1.msra.mxu0 0.0
        %1804 = vmatprep.subr.mxu0 0.0
        %1805 = vmatpush1.msra.mxu0 0.0
        %1806 = vmatprep.subr.mxu0 0.0
        %1807 = vmatpush1.msra.mxu0 0.0
        %1808 = vmatprep.subr.mxu0 0.0
        %1809 = vmatpush1.msra.mxu0 0.0
        %1810 = vmatprep.subr.mxu0 0.0
        %1811 = vmatpush1.msra.mxu0 0.0
        %1812 = vmatprep.subr.mxu0 0.0
        %1813 = vmatpush1.msra.mxu0 0.0
        %1814 = vmatprep.subr.mxu0 0.0
        %1815 = vmatpush1.msra.mxu0 0.0
        %1816 = vmatprep.subr.mxu0 0.0
        %1817 = vmatpush1.msra.mxu0 0.0
        %1818 = vmatprep.subr.mxu0 0.0
        %1819 = vmatpush1.msra.mxu0 0.0
        %1820 = vmatprep.subr.mxu0 0.0
        %1821 = vmatpush1.msra.mxu0 0.0
        %1822 = vmatprep.mubr.f32.mxu0 0.0
        %1823 = vmatmul.mubr.f32.gmra.mrb[0].mxu0 %v1756
        %v1824 = vpop.f32.mrb[0].mxu0
        %v1825 = vadd.f32 %v1753, %v1824
        %v1826 = vpop.f32.mrb[0].mxu0
        %1827 = vdwg.mxu0
        %v1828 = vld [vmem:[#allocation8] sm:$0xff]
        %v1829 = vld [vmem:[#allocation8 + $0x8] sm:$0xff]
        %v1830 = vld [vmem:[#allocation8 + $0x10] sm:$0xff]
        %v1831 = vld [vmem:[#allocation8 + $0x18] sm:$0xff]
        %v1832 = vld [vmem:[%s11] sm:$0x1]
        %v1833 = vmul.f32 %v1741, 0.35355338
        %v1835 = vsel %vm875, %v1833, 0
        %v1838 = vsel %vm875, %v1825, 0
        %1840 = vmatprep.subr.mxu0 0.0
        %1841 = vmatpush1.xpose.msra.mxu0 %v1838
        %1842 = vmatprep.subr.mxu0 0.0
        %1843 = vmatpush1.xpose.msra.mxu0 0.0
        %1844 = vmatprep.subr.mxu0 0.0
        %1845 = vmatpush1.xpose.msra.mxu0 0.0
        %1846 = vmatprep.subr.mxu0 0.0
        %1847 = vmatpush1.xpose.msra.mxu0 0.0
        %1848 = vmatprep.subr.mxu0 0.0
        %1849 = vmatpush1.xpose.msra.mxu0 0.0
        %1850 = vmatprep.subr.mxu0 0.0
        %1851 = vmatpush1.xpose.msra.mxu0 0.0
        %1852 = vmatprep.subr.mxu0 0.0
        %1853 = vmatpush1.xpose.msra.mxu0 0.0
        %1854 = vmatprep.subr.mxu0 0.0
        %1855 = vmatpush1.xpose.msra.mxu0 0.0
        %1856 = vmatprep.subr.mxu0 0.0
        %1857 = vmatpush1.xpose.msra.mxu0 0.0
        %1858 = vmatprep.subr.mxu0 0.0
        %1859 = vmatpush1.xpose.msra.mxu0 0.0
        %1860 = vmatprep.subr.mxu0 0.0
        %1861 = vmatpush1.xpose.msra.mxu0 0.0
        %1862 = vmatprep.subr.mxu0 0.0
        %1863 = vmatpush1.xpose.msra.mxu0 0.0
        %1864 = vmatprep.subr.mxu0 0.0
        %1865 = vmatpush1.xpose.msra.mxu0 0.0
        %1866 = vmatprep.subr.mxu0 0.0
        %1867 = vmatpush1.xpose.msra.mxu0 0.0
        %1868 = vmatprep.subr.mxu0 0.0
        %1869 = vmatpush1.xpose.msra.mxu0 0.0
        %1870 = vmatprep.subr.mxu0 0.0
        %1871 = vmatpush1.xpose.msra.mxu0 0.0
        %1872 = vmatprep.subr.mxu0 0.0
        %1873 = vmatpush1.xpose.msra.mxu0 0.0
        %1874 = vmatprep.subr.mxu0 0.0
        %1875 = vmatpush1.xpose.msra.mxu0 0.0
        %1876 = vmatprep.subr.mxu0 0.0
        %1877 = vmatpush1.xpose.msra.mxu0 0.0
        %1878 = vmatprep.subr.mxu0 0.0
        %1879 = vmatpush1.xpose.msra.mxu0 0.0
        %1880 = vmatprep.subr.mxu0 0.0
        %1881 = vmatpush1.xpose.msra.mxu0 0.0
        %1882 = vmatprep.subr.mxu0 0.0
        %1883 = vmatpush1.xpose.msra.mxu0 0.0
        %1884 = vmatprep.subr.mxu0 0.0
        %1885 = vmatpush1.xpose.msra.mxu0 0.0
        %1886 = vmatprep.subr.mxu0 0.0
        %1887 = vmatpush1.xpose.msra.mxu0 0.0
        %1888 = vmatprep.subr.mxu0 0.0
        %1889 = vmatpush1.xpose.msra.mxu0 0.0
        %1890 = vmatprep.subr.mxu0 0.0
        %1891 = vmatpush1.xpose.msra.mxu0 0.0
        %1892 = vmatprep.subr.mxu0 0.0
        %1893 = vmatpush1.xpose.msra.mxu0 0.0
        %1894 = vmatprep.subr.mxu0 0.0
        %1895 = vmatpush1.xpose.msra.mxu0 0.0
        %1896 = vmatprep.subr.mxu0 0.0
        %1897 = vmatpush1.xpose.msra.mxu0 0.0
        %1898 = vmatprep.subr.mxu0 0.0
        %1899 = vmatpush1.xpose.msra.mxu0 0.0
        %1900 = vmatprep.subr.mxu0 0.0
        %1901 = vmatpush1.xpose.msra.mxu0 0.0
        %1902 = vmatprep.subr.mxu0 0.0
        %1903 = vmatpush1.xpose.msra.mxu0 0.0
        %1904 = vmatprep.mubr.f32.mxu0 0.0
        %1905 = vmatmul.mubr.f32.gmra.mrb[0].mxu0 %v1835
        %v1906 = vpop.f32.mrb[0].mxu0
        %v1907 = vadd.f32 0.0, %v1906
        %v1908 = vpop.f32.mrb[0].mxu0
        %1909 = vdwg.mxu0
        %v1910 = vsel %vm875, %v1907, -inf
        %1911 = vmax.xlane.f32.xlu0 %v1910
        %v1912 = vpop.xlane.xlu0 %1911
        %v1913 = vsub.f32 %v1907, %v1912
        %v1914 = vmul.f32 %v1913, 1.442695
        %v1915 = vpow.pop %v1914
        %v1916 = vsel %vm875, %v1915, 0.0
        %1917 = vadd.xlane.f32.xlu0 %v1916
        %v1918 = vpop.xlane.xlu0 %1917
        %v1919 = vrcp.pop %v1918
        %v1920 = vmul.f32 %v1915, %v1919
        %1921 = vrot.lane.b32.xlu0 %v1825, 96
        %v1922 = vpop.permute.xlu0 %1921
        %v1925 = vsel %vm875, %v1920, 0
        %1927 = vmatprep.subr.mxu0 0.0
        %1928 = vmatpush1.msra.mxu0 %v1922
        %1929 = vmatprep.subr.mxu0 0.0
        %1930 = vmatpush1.msra.mxu0 0.0
        %1931 = vmatprep.subr.mxu0 0.0
        %1932 = vmatpush1.msra.mxu0 0.0
        %1933 = vmatprep.subr.mxu0 0.0
        %1934 = vmatpush1.msra.mxu0 0.0
        %1935 = vmatprep.subr.mxu0 0.0
        %1936 = vmatpush1.msra.mxu0 0.0
        %1937 = vmatprep.subr.mxu0 0.0
        %1938 = vmatpush1.msra.mxu0 0.0
        %1939 = vmatprep.subr.mxu0 0.0
        %1940 = vmatpush1.msra.mxu0 0.0
        %1941 = vmatprep.subr.mxu0 0.0
        %1942 = vmatpush1.msra.mxu0 0.0
        %1943 = vmatprep.subr.mxu0 0.0
        %1944 = vmatpush1.msra.mxu0 0.0
        %1945 = vmatprep.subr.mxu0 0.0
        %1946 = vmatpush1.msra.mxu0 0.0
        %1947 = vmatprep.subr.mxu0 0.0
        %1948 = vmatpush1.msra.mxu0 0.0
        %1949 = vmatprep.subr.mxu0 0.0
        %1950 = vmatpush1.msra.mxu0 0.0
        %1951 = vmatprep.subr.mxu0 0.0
        %1952 = vmatpush1.msra.mxu0 0.0
        %1953 = vmatprep.subr.mxu0 0.0
        %1954 = vmatpush1.msra.mxu0 0.0
        %1955 = vmatprep.subr.mxu0 0.0
        %1956 = vmatpush1.msra.mxu0 0.0
        %1957 = vmatprep.subr.mxu0 0.0
        %1958 = vmatpush1.msra.mxu0 0.0
        %1959 = vmatprep.subr.mxu0 0.0
        %1960 = vmatpush1.msra.mxu0 0.0
        %1961 = vmatprep.subr.mxu0 0.0
        %1962 = vmatpush1.msra.mxu0 0.0
        %1963 = vmatprep.subr.mxu0 0.0
        %1964 = vmatpush1.msra.mxu0 0.0
        %1965 = vmatprep.subr.mxu0 0.0
        %1966 = vmatpush1.msra.mxu0 0.0
        %1967 = vmatprep.subr.mxu0 0.0
        %1968 = vmatpush1.msra.mxu0 0.0
        %1969 = vmatprep.subr.mxu0 0.0
        %1970 = vmatpush1.msra.mxu0 0.0
        %1971 = vmatprep.subr.mxu0 0.0
        %1972 = vmatpush1.msra.mxu0 0.0
        %1973 = vmatprep.subr.mxu0 0.0
        %1974 = vmatpush1.msra.mxu0 0.0
        %1975 = vmatprep.subr.mxu0 0.0
        %1976 = vmatpush1.msra.mxu0 0.0
        %1977 = vmatprep.subr.mxu0 0.0
        %1978 = vmatpush1.msra.mxu0 0.0
        %1979 = vmatprep.subr.mxu0 0.0
        %1980 = vmatpush1.msra.mxu0 0.0
        %1981 = vmatprep.subr.mxu0 0.0
        %1982 = vmatpush1.msra.mxu0 0.0
        %1983 = vmatprep.subr.mxu0 0.0
        %1984 = vmatpush1.msra.mxu0 0.0
        %1985 = vmatprep.subr.mxu0 0.0
        %1986 = vmatpush1.msra.mxu0 0.0
        %1987 = vmatprep.subr.mxu0 0.0
        %1988 = vmatpush1.msra.mxu0 0.0
        %1989 = vmatprep.subr.mxu0 0.0
        %1990 = vmatpush1.msra.mxu0 0.0
        %1991 = vmatprep.mubr.f32.mxu0 0.0
        %1992 = vmatmul.mubr.f32.gmra.mrb[0].mxu0 %v1925
        %v1993 = vpop.f32.mrb[0].mxu0
        %v1994 = vadd.f32 0.0, %v1993
        %v1995 = vpop.f32.mrb[0].mxu0
        %1996 = vdwg.mxu0
        %1997 = vrot.lane.b32.xlu0 %v1833, 120
        %v1998 = vpop.permute.xlu0 %1997
        %1999 = vrot.lane.b32.xlu0 %v1825, 120
        %v2000 = vpop.permute.xlu0 %1999
        %v2001 = vsel %vm875, %v1998, 0
        %v2003 = vsel %vm875, %v2000, 0
        %2005 = vmatprep.subr.mxu0 0.0
        %2006 = vmatpush1.xpose.msra.mxu0 %v2003
        %2007 = vmatprep.subr.mxu0 0.0
        %2008 = vmatpush1.xpose.msra.mxu0 0.0
        %2009 = vmatprep.subr.mxu0 0.0
        %2010 = vmatpush1.xpose.msra.mxu0 0.0
        %2011 = vmatprep.subr.mxu0 0.0
        %2012 = vmatpush1.xpose.msra.mxu0 0.0
        %2013 = vmatprep.subr.mxu0 0.0
        %2014 = vmatpush1.xpose.msra.mxu0 0.0
        %2015 = vmatprep.subr.mxu0 0.0
        %2016 = vmatpush1.xpose.msra.mxu0 0.0
        %2017 = vmatprep.subr.mxu0 0.0
        %2018 = vmatpush1.xpose.msra.mxu0 0.0
        %2019 = vmatprep.subr.mxu0 0.0
        %2020 = vmatpush1.xpose.msra.mxu0 0.0
        %2021 = vmatprep.subr.mxu0 0.0
        %2022 = vmatpush1.xpose.msra.mxu0 0.0
        %2023 = vmatprep.subr.mxu0 0.0
        %2024 = vmatpush1.xpose.msra.mxu0 0.0
        %2025 = vmatprep.subr.mxu0 0.0
        %2026 = vmatpush1.xpose.msra.mxu0 0.0
        %2027 = vmatprep.subr.mxu0 0.0
        %2028 = vmatpush1.xpose.msra.mxu0 0.0
        %2029 = vmatprep.subr.mxu0 0.0
        %2030 = vmatpush1.xpose.msra.mxu0 0.0
        %2031 = vmatprep.subr.mxu0 0.0
        %2032 = vmatpush1.xpose.msra.mxu0 0.0
        %2033 = vmatprep.subr.mxu0 0.0
        %2034 = vmatpush1.xpose.msra.mxu0 0.0
        %2035 = vmatprep.subr.mxu0 0.0
        %2036 = vmatpush1.xpose.msra.mxu0 0.0
        %2037 = vmatprep.subr.mxu0 0.0
        %2038 = vmatpush1.xpose.msra.mxu0 0.0
        %2039 = vmatprep.subr.mxu0 0.0
        %2040 = vmatpush1.xpose.msra.mxu0 0.0
        %2041 = vmatprep.subr.mxu0 0.0
        %2042 = vmatpush1.xpose.msra.mxu0 0.0
        %2043 = vmatprep.subr.mxu0 0.0
        %2044 = vmatpush1.xpose.msra.mxu0 0.0
        %2045 = vmatprep.subr.mxu0 0.0
        %2046 = vmatpush1.xpose.msra.mxu0 0.0
        %2047 = vmatprep.subr.mxu0 0.0
        %2048 = vmatpush1.xpose.msra.mxu0 0.0
        %2049 = vmatprep.subr.mxu0 0.0
        %2050 = vmatpush1.xpose.msra.mxu0 0.0
        %2051 = vmatprep.subr.mxu0 0.0
        %2052 = vmatpush1.xpose.msra.mxu0 0.0
        %2053 = vmatprep.subr.mxu0 0.0
        %2054 = vmatpush1.xpose.msra.mxu0 0.0
        %2055 = vmatprep.subr.mxu0 0.0
        %2056 = vmatpush1.xpose.msra.mxu0 0.0
        %2057 = vmatprep.subr.mxu0 0.0
        %2058 = vmatpush1.xpose.msra.mxu0 0.0
        %2059 = vmatprep.subr.mxu0 0.0
        %2060 = vmatpush1.xpose.msra.mxu0 0.0
        %2061 = vmatprep.subr.mxu0 0.0
        %2062 = vmatpush1.xpose.msra.mxu0 0.0
        %2063 = vmatprep.subr.mxu0 0.0
        %2064 = vmatpush1.xpose.msra.mxu0 0.0
        %2065 = vmatprep.subr.mxu0 0.0
        %2066 = vmatpush1.xpose.msra.mxu0 0.0
        %2067 = vmatprep.subr.mxu0 0.0
        %2068 = vmatpush1.xpose.msra.mxu0 0.0
        %2069 = vmatprep.mubr.f32.mxu0 0.0
        %2070 = vmatmul.mubr.f32.gmra.mrb[0].mxu0 %v2001
        %v2071 = vpop.f32.mrb[0].mxu0
        %v2072 = vadd.f32 0.0, %v2071
        %v2073 = vpop.f32.mrb[0].mxu0
        %2074 = vdwg.mxu0
        %v2075 = vsel %vm875, %v2072, -inf
        %2076 = vmax.xlane.f32.xlu0 %v2075
        %v2077 = vpop.xlane.xlu0 %2076
        %v2078 = vsub.f32 %v2072, %v2077
        %v2079 = vmul.f32 %v2078, 1.442695
        %v2080 = vpow.pop %v2079
        %v2081 = vsel %vm875, %v2080, 0.0
        %2082 = vadd.xlane.f32.xlu0 %v2081
        %v2083 = vpop.xlane.xlu0 %2082
        %v2084 = vrcp.pop %v2083
        %v2085 = vmul.f32 %v2080, %v2084
        %2086 = vrot.lane.b32.xlu0 %v1825, 88
        %v2087 = vpop.permute.xlu0 %2086
        %v2090 = vsel %vm875, %v2085, 0
        %2092 = vmatprep.subr.mxu0 0.0
        %2093 = vmatpush1.msra.mxu0 %v2087
        %2094 = vmatprep.subr.mxu0 0.0
        %2095 = vmatpush1.msra.mxu0 0.0
        %2096 = vmatprep.subr.mxu0 0.0
        %2097 = vmatpush1.msra.mxu0 0.0
        %2098 = vmatprep.subr.mxu0 0.0
        %2099 = vmatpush1.msra.mxu0 0.0
        %2100 = vmatprep.subr.mxu0 0.0
        %2101 = vmatpush1.msra.mxu0 0.0
        %2102 = vmatprep.subr.mxu0 0.0
        %2103 = vmatpush1.msra.mxu0 0.0
        %2104 = vmatprep.subr.mxu0 0.0
        %2105 = vmatpush1.msra.mxu0 0.0
        %2106 = vmatprep.subr.mxu0 0.0
        %2107 = vmatpush1.msra.mxu0 0.0
        %2108 = vmatprep.subr.mxu0 0.0
        %2109 = vmatpush1.msra.mxu0 0.0
        %2110 = vmatprep.subr.mxu0 0.0
        %2111 = vmatpush1.msra.mxu0 0.0
        %2112 = vmatprep.subr.mxu0 0.0
        %2113 = vmatpush1.msra.mxu0 0.0
        %2114 = vmatprep.subr.mxu0 0.0
        %2115 = vmatpush1.msra.mxu0 0.0
        %2116 = vmatprep.subr.mxu0 0.0
        %2117 = vmatpush1.msra.mxu0 0.0
        %2118 = vmatprep.subr.mxu0 0.0
        %2119 = vmatpush1.msra.mxu0 0.0
        %2120 = vmatprep.subr.mxu0 0.0
        %2121 = vmatpush1.msra.mxu0 0.0
        %2122 = vmatprep.subr.mxu0 0.0
        %2123 = vmatpush1.msra.mxu0 0.0
        %2124 = vmatprep.subr.mxu0 0.0
        %2125 = vmatpush1.msra.mxu0 0.0
        %2126 = vmatprep.subr.mxu0 0.0
        %2127 = vmatpush1.msra.mxu0 0.0
        %2128 = vmatprep.subr.mxu0 0.0
        %2129 = vmatpush1.msra.mxu0 0.0
        %2130 = vmatprep.subr.mxu0 0.0
        %2131 = vmatpush1.msra.mxu0 0.0
        %2132 = vmatprep.subr.mxu0 0.0
        %2133 = vmatpush1.msra.mxu0 0.0
        %2134 = vmatprep.subr.mxu0 0.0
        %2135 = vmatpush1.msra.mxu0 0.0
        %2136 = vmatprep.subr.mxu0 0.0
        %2137 = vmatpush1.msra.mxu0 0.0
        %2138 = vmatprep.subr.mxu0 0.0
        %2139 = vmatpush1.msra.mxu0 0.0
        %2140 = vmatprep.subr.mxu0 0.0
        %2141 = vmatpush1.msra.mxu0 0.0
        %2142 = vmatprep.subr.mxu0 0.0
        %2143 = vmatpush1.msra.mxu0 0.0
        %2144 = vmatprep.subr.mxu0 0.0
        %2145 = vmatpush1.msra.mxu0 0.0
        %2146 = vmatprep.subr.mxu0 0.0
        %2147 = vmatpush1.msra.mxu0 0.0
        %2148 = vmatprep.subr.mxu0 0.0
        %2149 = vmatpush1.msra.mxu0 0.0
        %2150 = vmatprep.subr.mxu0 0.0
        %2151 = vmatpush1.msra.mxu0 0.0
        %2152 = vmatprep.subr.mxu0 0.0
        %2153 = vmatpush1.msra.mxu0 0.0
        %2154 = vmatprep.subr.mxu0 0.0
        %2155 = vmatpush1.msra.mxu0 0.0
        %2156 = vmatprep.mubr.f32.mxu0 0.0
        %2157 = vmatmul.mubr.f32.gmra.mrb[0].mxu0 %v2090
        %v2158 = vpop.f32.mrb[0].mxu0
        %v2159 = vadd.f32 0.0, %v2158
        %v2160 = vpop.f32.mrb[0].mxu0
        %2161 = vdwg.mxu0
        %2162 = vrot.lane.b32.xlu0 %v1833, 112
        %v2163 = vpop.permute.xlu0 %2162
        %2164 = vrot.lane.b32.xlu0 %v1825, 112
        %v2165 = vpop.permute.xlu0 %2164
        %v2166 = vsel %vm875, %v2163, 0
        %v2168 = vsel %vm875, %v2165, 0
        %2170 = vmatprep.subr.mxu0 0.0
        %2171 = vmatpush1.xpose.msra.mxu0 %v2168
        %2172 = vmatprep.subr.mxu0 0.0
        %2173 = vmatpush1.xpose.msra.mxu0 0.0
        %2174 = vmatprep.subr.mxu0 0.0
        %2175 = vmatpush1.xpose.msra.mxu0 0.0
        %2176 = vmatprep.subr.mxu0 0.0
        %2177 = vmatpush1.xpose.msra.mxu0 0.0
        %2178 = vmatprep.subr.mxu0 0.0
        %2179 = vmatpush1.xpose.msra.mxu0 0.0
        %2180 = vmatprep.subr.mxu0 0.0
        %2181 = vmatpush1.xpose.msra.mxu0 0.0
        %2182 = vmatprep.subr.mxu0 0.0
        %2183 = vmatpush1.xpose.msra.mxu0 0.0
        %2184 = vmatprep.subr.mxu0 0.0
        %2185 = vmatpush1.xpose.msra.mxu0 0.0
        %2186 = vmatprep.subr.mxu0 0.0
        %2187 = vmatpush1.xpose.msra.mxu0 0.0
        %2188 = vmatprep.subr.mxu0 0.0
        %2189 = vmatpush1.xpose.msra.mxu0 0.0
        %2190 = vmatprep.subr.mxu0 0.0
        %2191 = vmatpush1.xpose.msra.mxu0 0.0
        %2192 = vmatprep.subr.mxu0 0.0
        %2193 = vmatpush1.xpose.msra.mxu0 0.0
        %2194 = vmatprep.subr.mxu0 0.0
        %2195 = vmatpush1.xpose.msra.mxu0 0.0
        %2196 = vmatprep.subr.mxu0 0.0
        %2197 = vmatpush1.xpose.msra.mxu0 0.0
        %2198 = vmatprep.subr.mxu0 0.0
        %2199 = vmatpush1.xpose.msra.mxu0 0.0
        %2200 = vmatprep.subr.mxu0 0.0
        %2201 = vmatpush1.xpose.msra.mxu0 0.0
        %2202 = vmatprep.subr.mxu0 0.0
        %2203 = vmatpush1.xpose.msra.mxu0 0.0
        %2204 = vmatprep.subr.mxu0 0.0
        %2205 = vmatpush1.xpose.msra.mxu0 0.0
        %2206 = vmatprep.subr.mxu0 0.0
        %2207 = vmatpush1.xpose.msra.mxu0 0.0
        %2208 = vmatprep.subr.mxu0 0.0
        %2209 = vmatpush1.xpose.msra.mxu0 0.0
        %2210 = vmatprep.subr.mxu0 0.0
        %2211 = vmatpush1.xpose.msra.mxu0 0.0
        %2212 = vmatprep.subr.mxu0 0.0
        %2213 = vmatpush1.xpose.msra.mxu0 0.0
        %2214 = vmatprep.subr.mxu0 0.0
        %2215 = vmatpush1.xpose.msra.mxu0 0.0
        %2216 = vmatprep.subr.mxu0 0.0
        %2217 = vmatpush1.xpose.msra.mxu0 0.0
        %2218 = vmatprep.subr.mxu0 0.0
        %2219 = vmatpush1.xpose.msra.mxu0 0.0
        %2220 = vmatprep.subr.mxu0 0.0
        %2221 = vmatpush1.xpose.msra.mxu0 0.0
        %2222 = vmatprep.subr.mxu0 0.0
        %2223 = vmatpush1.xpose.msra.mxu0 0.0
        %2224 = vmatprep.subr.mxu0 0.0
        %2225 = vmatpush1.xpose.msra.mxu0 0.0
        %2226 = vmatprep.subr.mxu0 0.0
        %2227 = vmatpush1.xpose.msra.mxu0 0.0
        %2228 = vmatprep.subr.mxu0 0.0
        %2229 = vmatpush1.xpose.msra.mxu0 0.0
        %2230 = vmatprep.subr.mxu0 0.0
        %2231 = vmatpush1.xpose.msra.mxu0 0.0
        %2232 = vmatprep.subr.mxu0 0.0
        %2233 = vmatpush1.xpose.msra.mxu0 0.0
        %2234 = vmatprep.mubr.f32.mxu0 0.0
        %2235 = vmatmul.mubr.f32.gmra.mrb[0].mxu0 %v2166
        %v2236 = vpop.f32.mrb[0].mxu0
        %v2237 = vadd.f32 0.0, %v2236
        %v2238 = vpop.f32.mrb[0].mxu0
        %2239 = vdwg.mxu0
        %v2240 = vsel %vm875, %v2237, -inf
        %2241 = vmax.xlane.f32.xlu0 %v2240
        %v2242 = vpop.xlane.xlu0 %2241
        %v2243 = vsub.f32 %v2237, %v2242
        %v2244 = vmul.f32 %v2243, 1.442695
        %v2245 = vpow.pop %v2244
        %v2246 = vsel %vm875, %v2245, 0.0
        %2247 = vadd.xlane.f32.xlu0 %v2246
        %v2248 = vpop.xlane.xlu0 %2247
        %v2249 = vrcp.pop %v2248
        %v2250 = vmul.f32 %v2245, %v2249
        %2251 = vrot.lane.b32.xlu0 %v1825, 80
        %v2252 = vpop.permute.xlu0 %2251
        %v2255 = vsel %vm875, %v2250, 0
        %2257 = vmatprep.subr.mxu0 0.0
        %2258 = vmatpush1.msra.mxu0 %v2252
        %2259 = vmatprep.subr.mxu0 0.0
        %2260 = vmatpush1.msra.mxu0 0.0
        %2261 = vmatprep.subr.mxu0 0.0
        %2262 = vmatpush1.msra.mxu0 0.0
        %2263 = vmatprep.subr.mxu0 0.0
        %2264 = vmatpush1.msra.mxu0 0.0
        %2265 = vmatprep.subr.mxu0 0.0
        %2266 = vmatpush1.msra.mxu0 0.0
        %2267 = vmatprep.subr.mxu0 0.0
        %2268 = vmatpush1.msra.mxu0 0.0
        %2269 = vmatprep.subr.mxu0 0.0
        %2270 = vmatpush1.msra.mxu0 0.0
        %2271 = vmatprep.subr.mxu0 0.0
        %2272 = vmatpush1.msra.mxu0 0.0
        %2273 = vmatprep.subr.mxu0 0.0
        %2274 = vmatpush1.msra.mxu0 0.0
        %2275 = vmatprep.subr.mxu0 0.0
        %2276 = vmatpush1.msra.mxu0 0.0
        %2277 = vmatprep.subr.mxu0 0.0
        %2278 = vmatpush1.msra.mxu0 0.0
        %2279 = vmatprep.subr.mxu0 0.0
        %2280 = vmatpush1.msra.mxu0 0.0
        %2281 = vmatprep.subr.mxu0 0.0
        %2282 = vmatpush1.msra.mxu0 0.0
        %2283 = vmatprep.subr.mxu0 0.0
        %2284 = vmatpush1.msra.mxu0 0.0
        %2285 = vmatprep.subr.mxu0 0.0
        %2286 = vmatpush1.msra.mxu0 0.0
        %2287 = vmatprep.subr.mxu0 0.0
        %2288 = vmatpush1.msra.mxu0 0.0
        %2289 = vmatprep.subr.mxu0 0.0
        %2290 = vmatpush1.msra.mxu0 0.0
        %2291 = vmatprep.subr.mxu0 0.0
        %2292 = vmatpush1.msra.mxu0 0.0
        %2293 = vmatprep.subr.mxu0 0.0
        %2294 = vmatpush1.msra.mxu0 0.0
        %2295 = vmatprep.subr.mxu0 0.0
        %2296 = vmatpush1.msra.mxu0 0.0
        %2297 = vmatprep.subr.mxu0 0.0
        %2298 = vmatpush1.msra.mxu0 0.0
        %2299 = vmatprep.subr.mxu0 0.0
        %2300 = vmatpush1.msra.mxu0 0.0
        %2301 = vmatprep.subr.mxu0 0.0
        %2302 = vmatpush1.msra.mxu0 0.0
        %2303 = vmatprep.subr.mxu0 0.0
        %2304 = vmatpush1.msra.mxu0 0.0
        %2305 = vmatprep.subr.mxu0 0.0
        %2306 = vmatpush1.msra.mxu0 0.0
        %2307 = vmatprep.subr.mxu0 0.0
        %2308 = vmatpush1.msra.mxu0 0.0
        %2309 = vmatprep.subr.mxu0 0.0
        %2310 = vmatpush1.msra.mxu0 0.0
        %2311 = vmatprep.subr.mxu0 0.0
        %2312 = vmatpush1.msra.mxu0 0.0
        %2313 = vmatprep.subr.mxu0 0.0
        %2314 = vmatpush1.msra.mxu0 0.0
        %2315 = vmatprep.subr.mxu0 0.0
        %2316 = vmatpush1.msra.mxu0 0.0
        %2317 = vmatprep.subr.mxu0 0.0
        %2318 = vmatpush1.msra.mxu0 0.0
        %2319 = vmatprep.subr.mxu0 0.0
        %2320 = vmatpush1.msra.mxu0 0.0
        %2321 = vmatprep.mubr.f32.mxu0 0.0
        %2322 = vmatmul.mubr.f32.gmra.mrb[0].mxu0 %v2255
        %v2323 = vpop.f32.mrb[0].mxu0
        %v2324 = vadd.f32 0.0, %v2323
        %v2325 = vpop.f32.mrb[0].mxu0
        %2326 = vdwg.mxu0
        %2327 = vrot.lane.b32.xlu0 %v1833, 104
        %v2328 = vpop.permute.xlu0 %2327
        %2329 = vrot.lane.b32.xlu0 %v1825, 104
        %v2330 = vpop.permute.xlu0 %2329
        %v2331 = vsel %vm875, %v2328, 0
        %v2333 = vsel %vm875, %v2330, 0
        %2335 = vmatprep.subr.mxu0 0.0
        %2336 = vmatpush1.xpose.msra.mxu0 %v2333
        %2337 = vmatprep.subr.mxu0 0.0
        %2338 = vmatpush1.xpose.msra.mxu0 0.0
        %2339 = vmatprep.subr.mxu0 0.0
        %2340 = vmatpush1.xpose.msra.mxu0 0.0
        %2341 = vmatprep.subr.mxu0 0.0
        %2342 = vmatpush1.xpose.msra.mxu0 0.0
        %2343 = vmatprep.subr.mxu0 0.0
        %2344 = vmatpush1.xpose.msra.mxu0 0.0
        %2345 = vmatprep.subr.mxu0 0.0
        %2346 = vmatpush1.xpose.msra.mxu0 0.0
        %2347 = vmatprep.subr.mxu0 0.0
        %2348 = vmatpush1.xpose.msra.mxu0 0.0
        %2349 = vmatprep.subr.mxu0 0.0
        %2350 = vmatpush1.xpose.msra.mxu0 0.0
        %2351 = vmatprep.subr.mxu0 0.0
        %2352 = vmatpush1.xpose.msra.mxu0 0.0
        %2353 = vmatprep.subr.mxu0 0.0
        %2354 = vmatpush1.xpose.msra.mxu0 0.0
        %2355 = vmatprep.subr.mxu0 0.0
        %2356 = vmatpush1.xpose.msra.mxu0 0.0
        %2357 = vmatprep.subr.mxu0 0.0
        %2358 = vmatpush1.xpose.msra.mxu0 0.0
        %2359 = vmatprep.subr.mxu0 0.0
        %2360 = vmatpush1.xpose.msra.mxu0 0.0
        %2361 = vmatprep.subr.mxu0 0.0
        %2362 = vmatpush1.xpose.msra.mxu0 0.0
        %2363 = vmatprep.subr.mxu0 0.0
        %2364 = vmatpush1.xpose.msra.mxu0 0.0
        %2365 = vmatprep.subr.mxu0 0.0
        %2366 = vmatpush1.xpose.msra.mxu0 0.0
        %2367 = vmatprep.subr.mxu0 0.0
        %2368 = vmatpush1.xpose.msra.mxu0 0.0
        %2369 = vmatprep.subr.mxu0 0.0
        %2370 = vmatpush1.xpose.msra.mxu0 0.0
        %2371 = vmatprep.subr.mxu0 0.0
        %2372 = vmatpush1.xpose.msra.mxu0 0.0
        %2373 = vmatprep.subr.mxu0 0.0
        %2374 = vmatpush1.xpose.msra.mxu0 0.0
        %2375 = vmatprep.subr.mxu0 0.0
        %2376 = vmatpush1.xpose.msra.mxu0 0.0
        %2377 = vmatprep.subr.mxu0 0.0
        %2378 = vmatpush1.xpose.msra.mxu0 0.0
        %2379 = vmatprep.subr.mxu0 0.0
        %2380 = vmatpush1.xpose.msra.mxu0 0.0
        %2381 = vmatprep.subr.mxu0 0.0
        %2382 = vmatpush1.xpose.msra.mxu0 0.0
        %2383 = vmatprep.subr.mxu0 0.0
        %2384 = vmatpush1.xpose.msra.mxu0 0.0
        %2385 = vmatprep.subr.mxu0 0.0
        %2386 = vmatpush1.xpose.msra.mxu0 0.0
        %2387 = vmatprep.subr.mxu0 0.0
        %2388 = vmatpush1.xpose.msra.mxu0 0.0
        %2389 = vmatprep.subr.mxu0 0.0
        %2390 = vmatpush1.xpose.msra.mxu0 0.0
        %2391 = vmatprep.subr.mxu0 0.0
        %2392 = vmatpush1.xpose.msra.mxu0 0.0
        %2393 = vmatprep.subr.mxu0 0.0
        %2394 = vmatpush1.xpose.msra.mxu0 0.0
        %2395 = vmatprep.subr.mxu0 0.0
        %2396 = vmatpush1.xpose.msra.mxu0 0.0
        %2397 = vmatprep.subr.mxu0 0.0
        %2398 = vmatpush1.xpose.msra.mxu0 0.0
        %2399 = vmatprep.mubr.f32.mxu0 0.0
        %2400 = vmatmul.mubr.f32.gmra.mrb[0].mxu0 %v2331
        %v2401 = vpop.f32.mrb[0].mxu0
        %v2402 = vadd.f32 0.0, %v2401
        %v2403 = vpop.f32.mrb[0].mxu0
        %2404 = vdwg.mxu0
        %v2405 = vsel %vm875, %v2402, -inf
        %2406 = vmax.xlane.f32.xlu0 %v2405
        %v2407 = vpop.xlane.xlu0 %2406
        %v2408 = vsub.f32 %v2402, %v2407
        %v2409 = vmul.f32 %v2408, 1.442695
        %v2410 = vpow.pop %v2409
        %v2411 = vsel %vm875, %v2410, 0.0
        %2412 = vadd.xlane.f32.xlu0 %v2411
        %v2413 = vpop.xlane.xlu0 %2412
        %v2414 = vrcp.pop %v2413
        %v2415 = vmul.f32 %v2410, %v2414
        %2416 = vrot.lane.b32.xlu0 %v1825, 72
        %v2417 = vpop.permute.xlu0 %2416
        %v2420 = vsel %vm875, %v2415, 0
        %2422 = vmatprep.subr.mxu0 0.0
        %2423 = vmatpush1.msra.mxu0 %v2417
        %2424 = vmatprep.subr.mxu0 0.0
        %2425 = vmatpush1.msra.mxu0 0.0
        %2426 = vmatprep.subr.mxu0 0.0
        %2427 = vmatpush1.msra.mxu0 0.0
        %2428 = vmatprep.subr.mxu0 0.0
        %2429 = vmatpush1.msra.mxu0 0.0
        %2430 = vmatprep.subr.mxu0 0.0
        %2431 = vmatpush1.msra.mxu0 0.0
        %2432 = vmatprep.subr.mxu0 0.0
        %2433 = vmatpush1.msra.mxu0 0.0
        %2434 = vmatprep.subr.mxu0 0.0
        %2435 = vmatpush1.msra.mxu0 0.0
        %2436 = vmatprep.subr.mxu0 0.0
        %2437 = vmatpush1.msra.mxu0 0.0
        %2438 = vmatprep.subr.mxu0 0.0
        %2439 = vmatpush1.msra.mxu0 0.0
        %2440 = vmatprep.subr.mxu0 0.0
        %2441 = vmatpush1.msra.mxu0 0.0
        %2442 = vmatprep.subr.mxu0 0.0
        %2443 = vmatpush1.msra.mxu0 0.0
        %2444 = vmatprep.subr.mxu0 0.0
        %2445 = vmatpush1.msra.mxu0 0.0
        %2446 = vmatprep.subr.mxu0 0.0
        %2447 = vmatpush1.msra.mxu0 0.0
        %2448 = vmatprep.subr.mxu0 0.0
        %2449 = vmatpush1.msra.mxu0 0.0
        %2450 = vmatprep.subr.mxu0 0.0
        %2451 = vmatpush1.msra.mxu0 0.0
        %2452 = vmatprep.subr.mxu0 0.0
        %2453 = vmatpush1.msra.mxu0 0.0
        %2454 = vmatprep.subr.mxu0 0.0
        %2455 = vmatpush1.msra.mxu0 0.0
        %2456 = vmatprep.subr.mxu0 0.0
        %2457 = vmatpush1.msra.mxu0 0.0
        %2458 = vmatprep.subr.mxu0 0.0
        %2459 = vmatpush1.msra.mxu0 0.0
        %2460 = vmatprep.subr.mxu0 0.0
        %2461 = vmatpush1.msra.mxu0 0.0
        %2462 = vmatprep.subr.mxu0 0.0
        %2463 = vmatpush1.msra.mxu0 0.0
        %2464 = vmatprep.subr.mxu0 0.0
        %2465 = vmatpush1.msra.mxu0 0.0
        %2466 = vmatprep.subr.mxu0 0.0
        %2467 = vmatpush1.msra.mxu0 0.0
        %2468 = vmatprep.subr.mxu0 0.0
        %2469 = vmatpush1.msra.mxu0 0.0
        %2470 = vmatprep.subr.mxu0 0.0
        %2471 = vmatpush1.msra.mxu0 0.0
        %2472 = vmatprep.subr.mxu0 0.0
        %2473 = vmatpush1.msra.mxu0 0.0
        %2474 = vmatprep.subr.mxu0 0.0
        %2475 = vmatpush1.msra.mxu0 0.0
        %2476 = vmatprep.subr.mxu0 0.0
        %2477 = vmatpush1.msra.mxu0 0.0
        %2478 = vmatprep.subr.mxu0 0.0
        %2479 = vmatpush1.msra.mxu0 0.0
        %2480 = vmatprep.subr.mxu0 0.0
        %2481 = vmatpush1.msra.mxu0 0.0
        %2482 = vmatprep.subr.mxu0 0.0
        %2483 = vmatpush1.msra.mxu0 0.0
        %2484 = vmatprep.subr.mxu0 0.0
        %2485 = vmatpush1.msra.mxu0 0.0
        %2486 = vmatprep.mubr.f32.mxu0 0.0
        %2487 = vmatmul.mubr.f32.gmra.mrb[0].mxu0 %v2420
        %v2488 = vpop.f32.mrb[0].mxu0
        %v2489 = vadd.f32 0.0, %v2488
        %v2490 = vpop.f32.mrb[0].mxu0
        %2491 = vdwg.mxu0
        %2493 = vrot.lane.b32.xlu0 %v2159, 8
        %v2494 = vpop.permute.xlu0 %2493
        %2497 = vrot.lane.b32.xlu0 %v2324, 16
        %v2498 = vpop.permute.xlu0 %2497
        %2501 = vrot.lane.b32.xlu0 %v2489, 24
        %v2502 = vpop.permute.xlu0 %2501
        %v2504 = vsel %vm875, %v1994, %v2494
        %v2505 = vsel %vm1546, %v2504, %v2498
        %v2506 = vsel %vm1548, %v2505, %v2502
        %v2508 = vlaneseq
        %v2509 = vshrl.u32 %v2508, 7
        %v2510 = vsub.s32 0, %v2509
        %v2511 = vrot.slane %v1832, %v2510
        %v2514 = vsel %vm792, %v2506, 0
        %2516 = vmatprep.subr.mxu0 0.0
        %2517 = vmatpush1.msra.mxu0 %v1828
        %2518 = vmatprep.subr.mxu0 0.0
        %2519 = vmatpush1.msra.mxu0 %v1829
        %2520 = vmatprep.subr.mxu0 0.0
        %2521 = vmatpush1.msra.mxu0 %v1830
        %2522 = vmatprep.subr.mxu0 0.0
        %2523 = vmatpush1.msra.mxu0 %v1831
        %2524 = vmatprep.subr.mxu0 0.0
        %2525 = vmatpush1.msra.mxu0 0.0
        %2526 = vmatprep.subr.mxu0 0.0
        %2527 = vmatpush1.msra.mxu0 0.0
        %2528 = vmatprep.subr.mxu0 0.0
        %2529 = vmatpush1.msra.mxu0 0.0
        %2530 = vmatprep.subr.mxu0 0.0
        %2531 = vmatpush1.msra.mxu0 0.0
        %2532 = vmatprep.subr.mxu0 0.0
        %2533 = vmatpush1.msra.mxu0 0.0
        %2534 = vmatprep.subr.mxu0 0.0
        %2535 = vmatpush1.msra.mxu0 0.0
        %2536 = vmatprep.subr.mxu0 0.0
        %2537 = vmatpush1.msra.mxu0 0.0
        %2538 = vmatprep.subr.mxu0 0.0
        %2539 = vmatpush1.msra.mxu0 0.0
        %2540 = vmatprep.subr.mxu0 0.0
        %2541 = vmatpush1.msra.mxu0 0.0
        %2542 = vmatprep.subr.mxu0 0.0
        %2543 = vmatpush1.msra.mxu0 0.0
        %2544 = vmatprep.subr.mxu0 0.0
        %2545 = vmatpush1.msra.mxu0 0.0
        %2546 = vmatprep.subr.mxu0 0.0
        %2547 = vmatpush1.msra.mxu0 0.0
        %2548 = vmatprep.subr.mxu0 0.0
        %2549 = vmatpush1.msra.mxu0 0.0
        %2550 = vmatprep.subr.mxu0 0.0
        %2551 = vmatpush1.msra.mxu0 0.0
        %2552 = vmatprep.subr.mxu0 0.0
        %2553 = vmatpush1.msra.mxu0 0.0
        %2554 = vmatprep.subr.mxu0 0.0
        %2555 = vmatpush1.msra.mxu0 0.0
        %2556 = vmatprep.subr.mxu0 0.0
        %2557 = vmatpush1.msra.mxu0 0.0
        %2558 = vmatprep.subr.mxu0 0.0
        %2559 = vmatpush1.msra.mxu0 0.0
        %2560 = vmatprep.subr.mxu0 0.0
        %2561 = vmatpush1.msra.mxu0 0.0
        %2562 = vmatprep.subr.mxu0 0.0
        %2563 = vmatpush1.msra.mxu0 0.0
        %2564 = vmatprep.subr.mxu0 0.0
        %2565 = vmatpush1.msra.mxu0 0.0
        %2566 = vmatprep.subr.mxu0 0.0
        %2567 = vmatpush1.msra.mxu0 0.0
        %2568 = vmatprep.subr.mxu0 0.0
        %2569 = vmatpush1.msra.mxu0 0.0
        %2570 = vmatprep.subr.mxu0 0.0
        %2571 = vmatpush1.msra.mxu0 0.0
        %2572 = vmatprep.subr.mxu0 0.0
        %2573 = vmatpush1.msra.mxu0 0.0
        %2574 = vmatprep.subr.mxu0 0.0
        %2575 = vmatpush1.msra.mxu0 0.0
        %2576 = vmatprep.subr.mxu0 0.0
        %2577 = vmatpush1.msra.mxu0 0.0
        %2578 = vmatprep.subr.mxu0 0.0
        %2579 = vmatpush1.msra.mxu0 0.0
        %2580 = vmatprep.mubr.f32.mxu0 0.0
        %2581 = vmatmul.mubr.f32.gmra.mrb[0].mxu0 %v2514
        %v2582 = vpop.f32.mrb[0].mxu0
        %v2583 = vadd.f32 %v2511, %v2582
        %v2584 = vpop.f32.mrb[0].mxu0
        %2585 = vdwg.mxu0
        %v2586 = vadd.f32 %v1659, %v2583
        %v2587 = vld [vmem:[%s18] sm:$0x1]
        %v2588 = vld [vmem:[%s19] sm:$0x1]
        %v2589 = vsel %vm792, %v2586, 0.0
        %2590 = vadd.xlane.f32.xlu0 %v2589
        %v2591 = vpop.xlane.xlu0 %2590
        %v2592 = vmul.f32 %v2591, %v1635
        %v2593 = vsub.f32 %v2586, %v2592
        %v2594 = vmul.f32 %v2593, %v2593
        %v2595 = vsel %vm792, %v2594, 0.0
        %2596 = vadd.xlane.f32.xlu0 %v2595
        %v2597 = vpop.xlane.xlu0 %2596
        %v2598 = vmul.f32 %v2597, %v1635
        %v2599 = vadd.f32 %v2598, 1e-05
        %v2600 = vrsqrt.pop %v2599
        %v2601 = vmul.f32 %v2593, %v2600
        %v2603 = vlaneseq
        %v2604 = vshrl.u32 %v2603, 7
        %v2605 = vsub.s32 0, %v2604
        %v2606 = vrot.slane %v2587, %v2605
        %v2608 = vmul.f32 %v2601, %v2606
        %v2610 = vlaneseq
        %v2611 = vshrl.u32 %v2610, 7
        %v2612 = vsub.s32 0, %v2611
        %v2613 = vrot.slane %v2588, %v2612
        %v2615 = vadd.f32 %v2608, %v2613
        %v2616 = vld [vmem:[#allocation10] sm:$0xff]
        %v2617 = vld [vmem:[#allocation10 + $0x8] sm:$0xff]
        %v2618 = vld [vmem:[#allocation10 + $0x10] sm:$0xff]
        %v2619 = vld [vmem:[#allocation10 + $0x18] sm:$0xff]
        %v2620 = vld [vmem:[%s13] sm:$0x1]
        %v2622 = vlaneseq
        %v2623 = vshrl.u32 %v2622, 7
        %v2624 = vsub.s32 0, %v2623
        %v2625 = vrot.slane %v2620, %v2624
        %v2628 = vsel %vm792, %v2615, 0
        %2630 = vmatprep.subr.mxu0 0.0
        %2631 = vmatpush1.msra.mxu0 %v2616
        %2632 = vmatprep.subr.mxu0 0.0
        %2633 = vmatpush1.msra.mxu0 %v2617
        %2634 = vmatprep.subr.mxu0 0.0
        %2635 = vmatpush1.msra.mxu0 %v2618
        %2636 = vmatprep.subr.mxu0 0.0
        %2637 = vmatpush1.msra.mxu0 %v2619
        %2638 = vmatprep.subr.mxu0 0.0
        %2639 = vmatpush1.msra.mxu0 0.0
        %2640 = vmatprep.subr.mxu0 0.0
        %2641 = vmatpush1.msra.mxu0 0.0
        %2642 = vmatprep.subr.mxu0 0.0
        %2643 = vmatpush1.msra.mxu0 0.0
        %2644 = vmatprep.subr.mxu0 0.0
        %2645 = vmatpush1.msra.mxu0 0.0
        %2646 = vmatprep.subr.mxu0 0.0
        %2647 = vmatpush1.msra.mxu0 0.0
        %2648 = vmatprep.subr.mxu0 0.0
        %2649 = vmatpush1.msra.mxu0 0.0
        %2650 = vmatprep.subr.mxu0 0.0
        %2651 = vmatpush1.msra.mxu0 0.0
        %2652 = vmatprep.subr.mxu0 0.0
        %2653 = vmatpush1.msra.mxu0 0.0
        %2654 = vmatprep.subr.mxu0 0.0
        %2655 = vmatpush1.msra.mxu0 0.0
        %2656 = vmatprep.subr.mxu0 0.0
        %2657 = vmatpush1.msra.mxu0 0.0
        %2658 = vmatprep.subr.mxu0 0.0
        %2659 = vmatpush1.msra.mxu0 0.0
        %2660 = vmatprep.subr.mxu0 0.0
        %2661 = vmatpush1.msra.mxu0 0.0
        %2662 = vmatprep.subr.mxu0 0.0
        %2663 = vmatpush1.msra.mxu0 0.0
        %2664 = vmatprep.subr.mxu0 0.0
        %2665 = vmatpush1.msra.mxu0 0.0
        %2666 = vmatprep.subr.mxu0 0.0
        %2667 = vmatpush1.msra.mxu0 0.0
        %2668 = vmatprep.subr.mxu0 0.0
        %2669 = vmatpush1.msra.mxu0 0.0
        %2670 = vmatprep.subr.mxu0 0.0
        %2671 = vmatpush1.msra.mxu0 0.0
        %2672 = vmatprep.subr.mxu0 0.0
        %2673 = vmatpush1.msra.mxu0 0.0
        %2674 = vmatprep.subr.mxu0 0.0
        %2675 = vmatpush1.msra.mxu0 0.0
        %2676 = vmatprep.subr.mxu0 0.0
        %2677 = vmatpush1.msra.mxu0 0.0
        %2678 = vmatprep.subr.mxu0 0.0
        %2679 = vmatpush1.msra.mxu0 0.0
        %2680 = vmatprep.subr.mxu0 0.0
        %2681 = vmatpush1.msra.mxu0 0.0
        %2682 = vmatprep.subr.mxu0 0.0
        %2683 = vmatpush1.msra.mxu0 0.0
        %2684 = vmatprep.subr.mxu0 0.0
        %2685 = vmatpush1.msra.mxu0 0.0
        %2686 = vmatprep.subr.mxu0 0.0
        %2687 = vmatpush1.msra.mxu0 0.0
        %2688 = vmatprep.subr.mxu0 0.0
        %2689 = vmatpush1.msra.mxu0 0.0
        %2690 = vmatprep.subr.mxu0 0.0
        %2691 = vmatpush1.msra.mxu0 0.0
        %2692 = vmatprep.subr.mxu0 0.0
        %2693 = vmatpush1.msra.mxu0 0.0
        %2694 = vmatprep.mubr.f32.mxu0 0.0
        %2695 = vmatmul.mubr.f32.gmra.mrb[0].mxu0 %v2628
        %v2696 = vpop.f32.mrb[0].mxu0
        %v2697 = vadd.f32 %v2625, %v2696
        %v2698 = vpop.f32.mrb[0].mxu0
        %2699 = vdwg.mxu0
        %v2700 = vmax.f32 %v2697, 0.0
        %v2701 = vld [vmem:[%s14] sm:$0xff]
        %v2702 = vld [vmem:[%s14 + $0x8] sm:$0xff]
        %v2703 = vld [vmem:[%s14 + $0x10] sm:$0xff]
        %v2704 = vld [vmem:[%s14 + $0x18] sm:$0xff]
        %v2705 = vld [vmem:[%s14 + $0x20] sm:$0xff]
        %v2706 = vld [vmem:[%s14 + $0x28] sm:$0xff]
        %v2707 = vld [vmem:[%s14 + $0x30] sm:$0xff]
        %v2708 = vld [vmem:[%s14 + $0x38] sm:$0xff]
        %v2709 = vld [vmem:[%s15] sm:$0x1]
        %v2711 = vlaneseq
        %v2712 = vshrl.u32 %v2711, 7
        %v2713 = vsub.s32 0, %v2712
        %v2714 = vrot.slane %v2709, %v2713
        %vm2716 = vcmask 523264
        %v2718 = vsel %vm2716, %v2700, 0
        %2720 = vmatprep.subr.mxu0 0.0
        %2721 = vmatpush1.msra.mxu0 %v2701
        %2722 = vmatprep.subr.mxu0 0.0
        %2723 = vmatpush1.msra.mxu0 %v2702
        %2724 = vmatprep.subr.mxu0 0.0
        %2725 = vmatpush1.msra.mxu0 %v2703
        %2726 = vmatprep.subr.mxu0 0.0
        %2727 = vmatpush1.msra.mxu0 %v2704
        %2728 = vmatprep.subr.mxu0 0.0
        %2729 = vmatpush1.msra.mxu0 %v2705
        %2730 = vmatprep.subr.mxu0 0.0
        %2731 = vmatpush1.msra.mxu0 %v2706
        %2732 = vmatprep.subr.mxu0 0.0
        %2733 = vmatpush1.msra.mxu0 %v2707
        %2734 = vmatprep.subr.mxu0 0.0
        %2735 = vmatpush1.msra.mxu0 %v2708
        %2736 = vmatprep.subr.mxu0 0.0
        %2737 = vmatpush1.msra.mxu0 0.0
        %2738 = vmatprep.subr.mxu0 0.0
        %2739 = vmatpush1.msra.mxu0 0.0
        %2740 = vmatprep.subr.mxu0 0.0
        %2741 = vmatpush1.msra.mxu0 0.0
        %2742 = vmatprep.subr.mxu0 0.0
        %2743 = vmatpush1.msra.mxu0 0.0
        %2744 = vmatprep.subr.mxu0 0.0
        %2745 = vmatpush1.msra.mxu0 0.0
        %2746 = vmatprep.subr.mxu0 0.0
        %2747 = vmatpush1.msra.mxu0 0.0
        %2748 = vmatprep.subr.mxu0 0.0
        %2749 = vmatpush1.msra.mxu0 0.0
        %2750 = vmatprep.subr.mxu0 0.0
        %2751 = vmatpush1.msra.mxu0 0.0
        %2752 = vmatprep.subr.mxu0 0.0
        %2753 = vmatpush1.msra.mxu0 0.0
        %2754 = vmatprep.subr.mxu0 0.0
        %2755 = vmatpush1.msra.mxu0 0.0
        %2756 = vmatprep.subr.mxu0 0.0
        %2757 = vmatpush1.msra.mxu0 0.0
        %2758 = vmatprep.subr.mxu0 0.0
        %2759 = vmatpush1.msra.mxu0 0.0
        %2760 = vmatprep.subr.mxu0 0.0
        %2761 = vmatpush1.msra.mxu0 0.0
        %2762 = vmatprep.subr.mxu0 0.0
        %2763 = vmatpush1.msra.mxu0 0.0
        %2764 = vmatprep.subr.mxu0 0.0
        %2765 = vmatpush1.msra.mxu0 0.0
        %2766 = vmatprep.subr.mxu0 0.0
        %2767 = vmatpush1.msra.mxu0 0.0
        %2768 = vmatprep.subr.mxu0 0.0
        %2769 = vmatpush1.msra.mxu0 0.0
        %2770 = vmatprep.subr.mxu0 0.0
        %2771 = vmatpush1.msra.mxu0 0.0
        %2772 = vmatprep.subr.mxu0 0.0
        %2773 = vmatpush1.msra.mxu0 0.0
        %2774 = vmatprep.subr.mxu0 0.0
        %2775 = vmatpush1.msra.mxu0 0.0
        %2776 = vmatprep.subr.mxu0 0.0
        %2777 = vmatpush1.msra.mxu0 0.0
        %2778 = vmatprep.subr.mxu0 0.0
        %2779 = vmatpush1.msra.mxu0 0.0
        %2780 = vmatprep.subr.mxu0 0.0
        %2781 = vmatpush1.msra.mxu0 0.0
        %2782 = vmatprep.subr.mxu0 0.0
        %2783 = vmatpush1.msra.mxu0 0.0
        %2784 = vmatprep.mubr.f32.mxu0 0.0
        %2785 = vmatmul.mubr.f32.gmra.mrb[0].mxu0 %v2718
        %v2786 = vpop.f32.mrb[0].mxu0
        %v2787 = vadd.f32 %v2714, %v2786
        %v2788 = vpop.f32.mrb[0].mxu0
        %2789 = vdwg.mxu0
        %v2790 = vadd.f32 %v2615, %v2787
        %v2791 = vld [vmem:[%s20] sm:$0x1]
        %v2792 = vld [vmem:[%s21] sm:$0x1]
        %v2793 = vsel %vm792, %v2790, 0.0
        %2794 = vadd.xlane.f32.xlu0 %v2793
        %v2795 = vpop.xlane.xlu0 %2794
        %v2796 = vmul.f32 %v2795, %v1635
        %v2797 = vsub.f32 %v2790, %v2796
        %v2798 = vmul.f32 %v2797, %v2797
        %v2799 = vsel %vm792, %v2798, 0.0
        %2800 = vadd.xlane.f32.xlu0 %v2799
        %v2801 = vpop.xlane.xlu0 %2800
        %v2802 = vmul.f32 %v2801, %v1635
        %v2803 = vadd.f32 %v2802, 1e-05
        %v2804 = vrsqrt.pop %v2803
        %v2805 = vmul.f32 %v2797, %v2804
        %v2807 = vlaneseq
        %v2808 = vshrl.u32 %v2807, 7
        %v2809 = vsub.s32 0, %v2808
        %v2810 = vrot.slane %v2791, %v2809
        %v2812 = vmul.f32 %v2805, %v2810
        %v2814 = vlaneseq
        %v2815 = vshrl.u32 %v2814, 7
        %v2816 = vsub.s32 0, %v2815
        %v2817 = vrot.slane %v2792, %v2816
        %v2819 = vadd.f32 %v2812, %v2817
        %2820 = vst.msk [vmem:[%s778] sm:$0xff] %vm792, %v2819
        %s2821 = sand.u32 %s523, 1
        %s2822 = scalar_lea.sflag [#allocation4], %s2821
        %s2823 = sand.u32 %s523, 1
        %s2824 = smul.addr %s2823, 8
        %s2825 = scalar_lea.vmem [#allocation11], %s2824
        // Predicated region
        $region129: #{tpu_custom_call.1} parent=107 // pred_check
          %p2826 = pneg %p533
        $region130: #{tpu_custom_call.1} parent=107 // pred_check_branch
          %2828 = sbr.rel (%p2826) target = $region132
        $region131: #{tpu_custom_call.1} parent=107 // pred_region
          %s2830 = ssub.s32 128, 128
          %2831 = vsyncadd %s2822, %s2830
          %s2832 = smul.addr %s43, 128
          %s2833 = scalar_lea.hbm %s22, %s2832
          %s2835 = sshll.u32 %s2825, 4
          %s2836 = int_to_ptr.vmem [resolvable:$true] %s2835
          %2838 = dma.vmem_to_hbm [thread:$0]  %s2836, 128, %s2833, %s2822
        $region132: #{tpu_custom_call.1} parent=107 // pred_fallthru
          _
      $region108: #{tpu_custom_call.1} parent=5 // pred_fallthru
        _
      %p2839 = scmp.le.s32.totalorder 2, %s38
      // Predicated region
      $region133: #{tpu_custom_call.1} parent=5 // pred_check
        %p2840 = pneg %p2839
      $region134: #{tpu_custom_call.1} parent=5 // pred_check_branch
        %2842 = sbr.rel (%p2840) target = $region136
      $region135: #{tpu_custom_call.1} parent=5 // pred_region
        %s2843 = ssub.s32 %s38, 2
        // Predicated region
        $region137: #{tpu_custom_call.1} parent=135 // pred_check
          %p2844 = pneg %p539
        $region138: #{tpu_custom_call.1} parent=135 // pred_check_branch
          %2846 = sbr.rel (%p2844) target = $region140
        $region139: #{tpu_custom_call.1} parent=135 // pred_region
          %s2847 = sand.u32 %s524, 1
          %s2848 = scalar_lea.sflag [#allocation4], %s2847
          %s2849 = sand.u32 %s524, 1
          %s2850 = smul.addr %s2849, 8
          %s2851 = scalar_lea.vmem [#allocation11], %s2850
          %2852 = dma.done %s2848, 128
        $region140: #{tpu_custom_call.1} parent=135 // pred_fallthru
          _
      $region136: #{tpu_custom_call.1} parent=5 // pred_fallthru
        _
    $region6: #{tpu_custom_call.1} parent=1 // loop_footer
      %s42 = sadd.s32 1, %s38
    $region7: #{tpu_custom_call.1} parent=1 // loop_footer_branch
      %37 = sbr.rel target = $region3
    $region8: #{tpu_custom_call.1} parent=1 // loop_exit
      _
    %2853 = vsyncpa [#allocation3], 1
    %s2854 = scalar_lea.sflag [#allocation3], 1
    %2855 = vsyncpa %s2854, 1
    %2856 = vsyncpa [#allocation6], 1
    %s2857 = scalar_lea.sflag [#allocation6], 1
    %2858 = vsyncpa %s2857, 1
    %2859 = vsyncpa [#allocation9], 1
    %2860 = vsyncpa [#allocation4], 1
    %s2861 = scalar_lea.sflag [#allocation4], 1
    %2862 = vsyncpa %s2861, 1

</llo_original>
